<compile_context>
chip_gen: v6e
topology: v6e:2x2x1
jax: 0.10.0
libtpu: 0.0.40
codegen_flags: <defaults>
</compile_context>

<pallas_src>
import functools

import jax
import jax.numpy as jnp
from jax.experimental import pallas as pl
from jax.experimental.pallas import tpu as pltpu


def _round_up(x, m):
    return (x + m - 1) // m * m


def _pad_to(a, rows=None, cols=None):
    r = a.shape[0] if rows is None else rows
    c = a.shape[1] if cols is None else cols
    return jnp.zeros((r, c), a.dtype).at[: a.shape[0], : a.shape[1]].set(a)


# ----------------------------------------------------------------------------
# Fused whole-network kernel: 21 small lane-aligned MXU matmuls.
# ----------------------------------------------------------------------------
def _fused_forward_kernel(x_ref, w1_ref, b1_ref, w2_ref, b2_ref, w3_ref, b3_ref,
                          w4_ref, b4_ref, w5_ref, b5_ref, o_ref, *,
                          actions, ho1, ho2, ho3, band_stride, band_k):
    # ---- conv1 + BN + ReLU: one band matmul per output row -----------------
    b1 = b1_ref[...]
    a1 = []
    for i in range(ho1):
        xb = x_ref[:, band_stride * i: band_stride * i + band_k]       # (NB, K1) bf16
        h = jnp.dot(xb, w1_ref[...], preferred_element_type=jnp.float32) + b1
        a1.append(jnp.maximum(h, 0.0).astype(jnp.bfloat16))            # fused bias+ReLU+cast

    # ---- conv2 + BN + ReLU: output row j consumes conv1 rows 2j..2j+2 ------
    b2 = b2_ref[...]
    a2 = []
    for j in range(ho2):
        acc = b2
        for r in range(3):
            acc = acc + jnp.dot(a1[2 * j + r], w2_ref[r],
                                preferred_element_type=jnp.float32)
        a2.append(jnp.maximum(acc, 0.0).astype(jnp.bfloat16))

    # ---- conv3 + BN + ReLU --------------------------------------------------
    b3 = b3_ref[...]
    feat = []
    for m in range(ho3):
        acc = b3
        for r in range(3):
            acc = acc + jnp.dot(a2[2 * m + r], w3_ref[r],
                                preferred_element_type=jnp.float32)
        feat.append(jnp.maximum(acc, 0.0).astype(jnp.bfloat16))

    # ---- actor & critic first layers fused into one 128-wide matmul --------
    acc = b4_ref[...]
    for m in range(ho3):
        acc = acc + jnp.dot(feat[m], w4_ref[m], preferred_element_type=jnp.float32)
    hid = jnp.tanh(acc).astype(jnp.bfloat16)                           # (NB, 128)

    # ---- block-diagonal second layers: actor logits + critic value ---------
    z = jnp.dot(hid, w5_ref[...], preferred_element_type=jnp.float32) + b5_ref[...]
    col = jax.lax.broadcasted_iota(jnp.int32, z.shape, 1)
    logits = jnp.where(col < actions, z, -1e30)
    mx = jnp.max(logits, axis=-1, keepdims=True)
    e = jnp.exp(logits - mx)
    denom = jnp.sum(e, axis=-1, keepdims=True)
    probs = e * (1.0 / denom)            # exact reciprocal: unbiased PPO ratios
    # lane-dense output slab: [0:A) = softmax policy, [A] = value, rest zeros
    o_ref[...] = jnp.where(col < actions, probs,
                           jnp.where(col == actions, z, 0.0))


# ----------------------------------------------------------------------------
# Init-time folding: Conv2d(k=3,s=2) + eval BatchNorm -> per-band dense matrix
# ----------------------------------------------------------------------------
def _conv_band_dense(wconv, bconv, gamma, beta, mean, var, w_in, eps=1e-5):
    """Dense matrix mapping a 3-row input window flattened (row, w, c) to one
    conv output row flattened (w, cout).  Translation invariance over H lets a
    single matrix be reused for every output row ("band")."""
    cout, cin, k, _ = wconv.shape
    wo = (w_in - k) // 2 + 1
    scale = gamma / jnp.sqrt(var + eps)                       # (cout,)
    shift = (bconv - mean) * scale + beta                     # (cout,)
    wmat = jnp.transpose(wconv, (2, 3, 1, 0)) * scale         # (k, k, cin, cout)
    ew = jax.nn.one_hot(2 * jnp.arange(wo)[:, None] + jnp.arange(k)[None, :],
                        w_in, dtype=jnp.float32)              # (wo, k, w_in)
    dense = jnp.einsum("jlw,klcd->kwcjd", ew, wmat)           # (k, w_in, cin, wo, cout)
    dense = dense.reshape(k * w_in * cin, wo * cout)
    bias = jnp.tile(shift, wo)                                # col order (w, cout)
    return dense, bias, wo


def init_params(key, size, actions_count):
    C, H, W = size
    A = actions_count
    assert A + 1 <= 128
    keys = jax.random.split(key, 16)
    ki = 0

    # ---- raw conv + BN parameters (also kept for the pure-JAX reference) ----
    convs_raw = []
    cin, h, w = C, H, W
    spatial = []
    for _ in range(3):
        cout = 32
        wconv = 0.1 * jax.random.normal(keys[ki], (cout, cin, 3, 3), jnp.float32); ki += 1
        bconv = 0.1 * jax.random.normal(keys[ki], (cout,), jnp.float32); ki += 1
        gamma = 1.0 + 0.1 * jax.random.normal(keys[ki], (cout,), jnp.float32); ki += 1
        beta = 0.1 * jax.random.normal(keys[ki], (cout,), jnp.float32); ki += 1
        # TODO(synk): BatchNorm2d folded with eval-mode running statistics
        # (mean=0, var=1), not PyTorch training-mode batch statistics.
        mean = jnp.zeros((cout,), jnp.float32)
        var = jnp.ones((cout,), jnp.float32)
        convs_raw.append((wconv, bconv, gamma, beta, mean, var))
        ho, wo = (h - 3) // 2 + 1, (w - 3) // 2 + 1
        spatial.append((h, w, ho, wo))
        cin, h, w = cout, ho, wo

    def linear(k, dout, din):
        kw_, kb_ = jax.random.split(k)
        return (0.1 * jax.random.normal(kw_, (dout, din), jnp.float32),
                0.1 * jax.random.normal(kb_, (dout,), jnp.float32))

    cout3 = 32
    (_, _, ho3, wo3) = spatial[2]
    feat_dim = cout3 * ho3 * wo3
    wa1, ba1 = linear(keys[ki], 64, feat_dim); ki += 1
    wa2, ba2 = linear(keys[ki], A, 64); ki += 1
    wc1, bc1 = linear(keys[ki], 64, feat_dim); ki += 1
    wc2, bc2 = linear(keys[ki], 1, 64); ki += 1

    # ---- layer 1: raw frame flattened (h, w, c); band i = lane slice --------
    (h0, w0, ho1, wo1) = spatial[0]
    d1, bias1, _ = _conv_band_dense(*convs_raw[0], w_in=w0)
    band_stride = 2 * w0 * C
    band_k_real = 3 * w0 * C
    total_in = h0 * w0 * C
    band_k = min(_round_up(band_k_real, 128), total_in - (ho1 - 1) * band_stride)
    band_k = max(band_k, band_k_real)
    P1 = _round_up(wo1 * 32, 128)
    w1 = _pad_to(d1, rows=band_k, cols=P1).astype(jnp.bfloat16)
    b1 = _pad_to(bias1.reshape(1, -1), cols=P1)                 # f32 bias row

    # ---- layer 2: per-window-row weight chunks (3, P1, P2) ------------------
    (_, w1_, ho2, wo2) = spatial[1]
    d2, bias2, _ = _conv_band_dense(*convs_raw[1], w_in=w1_)
    chunk1 = w1_ * 32
    P2 = _round_up(wo2 * 32, 128)
    w2 = jnp.stack([_pad_to(d2[r * chunk1:(r + 1) * chunk1], rows=P1, cols=P2)
                    for r in range(3)]).astype(jnp.bfloat16)
    b2 = _pad_to(bias2.reshape(1, -1), cols=P2)

    # ---- layer 3 -------------------------------------------------------------
    (_, w2_, ho3, wo3) = spatial[2]
    d3, bias3, _ = _conv_band_dense(*convs_raw[2], w_in=w2_)
    chunk2 = w2_ * 32
    P3 = _round_up(wo3 * 32, 128)
    w3 = jnp.stack([_pad_to(d3[r * chunk2:(r + 1) * chunk2], rows=P2, cols=P3)
                    for r in range(3)]).astype(jnp.bfloat16)
    b3 = _pad_to(bias3.reshape(1, -1), cols=P3)

    # ---- actor/critic first layers (fused, 128 wide) -------------------------
    # Kernel features arrive as ho3 bands of width P3 laid out (w, c) per band;
    # torch flattens features (c, h, w) -> build the permutation per band.
    wcat = jnp.concatenate([wa1.T, wc1.T], axis=1)              # (feat_dim, 128)
    w4_chunks = []
    for m in range(ho3):
        idx = (jnp.arange(cout3)[None, :] * (ho3 * wo3)
               + m * wo3 + jnp.arange(wo3)[:, None]).reshape(-1)
        w4_chunks.append(_pad_to(wcat[idx], rows=P3, cols=128))
    w4 = jnp.stack(w4_chunks).astype(jnp.bfloat16)              # (ho3, P3, 128)
    b4 = jnp.concatenate([ba1, bc1]).reshape(1, -1)             # (1, 128) f32

    # ---- second layers: block diagonal (128, 128) ----------------------------
    w5 = jnp.zeros((128, 128), jnp.float32)
    w5 = w5.at[:64, :A].set(wa2.T)                              # actor logits
    w5 = w5.at[64:128, A:A + 1].set(wc2.T)                      # critic value
    w5 = w5.astype(jnp.bfloat16)
    b5 = jnp.zeros((128,), jnp.float32).at[:A].set(ba2).at[A].set(bc2[0]).reshape(1, -1)

    weights = (w1, b1, w2, b2, w3, b3, w4, b4, w5, b5)
    raw = dict(convs=convs_raw, actor=(wa1, ba1, wa2, ba2), critic=(wc1, bc1, wc2, bc2))
    return dict(weights=weights, raw=raw, actions_count=A,
                in_width=C * H * W, ho1=ho1, ho2=ho2, ho3=ho3,
                band_stride=band_stride, band_k=band_k)


# ----------------------------------------------------------------------------
# Forward pass (matches Model.forward with recurrent=False)
# ----------------------------------------------------------------------------
def _weight_spec(a, pipeline_mode):
    nd = a.ndim
    if pipeline_mode is None:
        return pl.BlockSpec(a.shape, lambda *_: (0,) * nd)
    return pl.BlockSpec(a.shape, lambda *_: (0,) * nd, pipeline_mode=pipeline_mode)


def _large_batch_tile():
    # 256-wide MXUs (v6e / v7x) fill best with 256-row tiles; 128 elsewhere (v5e).
    try:
        kind = jax.devices()[0].device_kind.lower()
    except Exception:
        return 128
    return 256 if ("v6" in kind or "v7" in kind or "7x" in kind) else 128


def forward(params, x, hidden_state=None):
    assert x.ndim == 5                        # (B, S, C, H, W)
    B, S = x.shape[0], x.shape[1]
    N = B * S
    A = params["actions_count"]

    # Layout plumbing only: flatten each frame (h, w, c) so conv1 band slices
    # are contiguous, 128-aligned lane ranges inside the kernel.
    xr = x.reshape(N, *x.shape[2:]).transpose(0, 2, 3, 1).reshape(N, -1)
    assert xr.shape[1] == params["in_width"]

    if N <= 512:
        NB = max(_round_up(N, 16), 16)        # one grid step, bf16-native rows
    else:
        NB = _large_batch_tile()
    n_pad = _round_up(N, NB)
    if n_pad != N:
        xr = jnp.concatenate([xr, jnp.zeros((n_pad - N, xr.shape[1]), xr.dtype)], axis=0)
    xr = xr.astype(jnp.bfloat16)              # bf16 MXU operand, halves input DMA

    grid_steps = n_pad // NB
    # Don't megacore-shard tiny grids (each core would re-DMA its own weights).
    semantics = "parallel" if grid_steps > 2 else "arbitrary"

    weights = params["weights"]
    kernel = functools.partial(
        _fused_forward_kernel, actions=A,
        ho1=params["ho1"], ho2=params["ho2"], ho3=params["ho3"],
        band_stride=params["band_stride"], band_k=params["band_k"])

    def build(weight_mode):
        in_specs = [pl.BlockSpec((NB, xr.shape[1]), lambda i: (i, 0))]
        in_specs += [_weight_spec(wgt, weight_mode) for wgt in weights]
        return pl.pallas_call(
            kernel,
            out_shape=jax.ShapeDtypeStruct((n_pad, 128), jnp.float32),
            grid=(grid_steps,),
            in_specs=in_specs,
            out_specs=pl.BlockSpec((NB, 128), lambda i: (i, 0)),
            compiler_params=pltpu.CompilerParams(
                dimension_semantics=(semantics,),
                vmem_limit_bytes=32 * 1024 * 1024),
        )

    # TODO(synk): in a tight RL rollout loop the ~0.5 MB weight fetch could be
    # hidden with a cross-pallas_call prefetch (semaphore + VMEM ref outputs).
    try:
        # Weights/biases have a constant index_map -> single-buffer them.
        out = build(pl.Buffered(1))(xr, *weights)
    except Exception:
        out = build(None)(xr, *weights)       # fall back to default buffering

    out = out[:N]
    policy = out[:, :A].reshape(B, S, A)
    value = out[:, A].reshape(B, S)           # critic(x).squeeze(2)
    # TODO(synk): recurrent=True GRU path not implemented; hidden_state passthrough.
    return policy, value, hidden_state


# ----------------------------------------------------------------------------
# Pure-JAX f32 reference (same semantics as the PyTorch module, eval-mode BN)
# ----------------------------------------------------------------------------
def forward_ref(params, x):
    raw = params["raw"]
    B, S = x.shape[0], x.shape[1]
    N = B * S
    y = x.reshape(N, *x.shape[2:])
    for (wconv, bconv, gamma, beta, mean, var) in raw["convs"]:
        y = jax.lax.conv_general_dilated(
            y, wconv, window_strides=(2, 2), padding="VALID",
            dimension_numbers=("NCHW", "OIHW", "NCHW"))
        y = y + bconv[None, :, None, None]
        y = ((y - mean[None, :, None, None])
             / jnp.sqrt(var[None, :, None, None] + 1e-5)
             * gamma[None, :, None, None] + beta[None, :, None, None])
        y = jnp.maximum(y, 0.0)
    feat = y.reshape(N, -1)                   # torch (c, h, w) flatten
    wa1, ba1, wa2, ba2 = raw["actor"]
    wc1, bc1, wc2, bc2 = raw["critic"]
    logits = jnp.tanh(feat @ wa1.T + ba1) @ wa2.T + ba2
    policy = jax.nn.softmax(logits, axis=-1)
    value = (jnp.tanh(feat @ wc1.T + bc1) @ wc2.T + bc2)[:, 0]
    A = params["actions_count"]
    return policy.reshape(B, S, A), value.reshape(B, S)


# ----------------------------------------------------------------------------
if __name__ == "__main__":
    size = (4, 16, 16)        # (C, H, W)
    actions_count = 5
    B, S = 2, 8

    key = jax.random.PRNGKey(0)
    pkey, xkey = jax.random.split(key)
    params = init_params(pkey, size, actions_count)
    x = jax.random.normal(xkey, (B, S, *size), jnp.float32)   # (B, S, C, H, W)

    policy, value, hidden = forward(params, x, hidden_state=None)
    policy = jax.block_until_ready(policy)
    value = jax.block_until_ready(value)

    assert policy.shape == (B, S, actions_count)
    assert value.shape == (B, S)
    assert bool(jnp.all(jnp.isfinite(policy))) and bool(jnp.all(jnp.isfinite(value)))
    assert bool(jnp.allclose(jnp.sum(policy, axis=-1), 1.0, atol=1e-3))

    # correctness vs pure-JAX reference (kernel uses bf16 MXU operands)
    policy_ref, value_ref = forward_ref(params, x)
    assert bool(jnp.allclose(policy, policy_ref, atol=5e-2))
    assert bool(jnp.allclose(value, value_ref, atol=1e-1))
    print("KERNEL_OK")
</pallas_src>

<mosaic_0001>
module attributes {stable_mosaic.version = 11 : i64} {
  func.func @_fused_forward_kernel(%arg0: i32, %arg1: memref<16x1024xbf16, #tpu.memory_space<vmem>>, %arg2: memref<256x256xbf16, #tpu.memory_space<vmem>>, %arg3: memref<1x256xf32, #tpu.memory_space<vmem>>, %arg4: memref<3x256x128xbf16, #tpu.memory_space<vmem>>, %arg5: memref<1x128xf32, #tpu.memory_space<vmem>>, %arg6: memref<3x128x128xbf16, #tpu.memory_space<vmem>>, %arg7: memref<1x128xf32, #tpu.memory_space<vmem>>, %arg8: memref<1x128x128xbf16, #tpu.memory_space<vmem>>, %arg9: memref<1x128xf32, #tpu.memory_space<vmem>>, %arg10: memref<128x128xbf16, #tpu.memory_space<vmem>>, %arg11: memref<1x128xf32, #tpu.memory_space<vmem>>, %arg12: memref<16x128xf32, #tpu.memory_space<vmem>>) attributes {dimension_semantics = [#tpu.dimension_semantics<arbitrary>], iteration_bounds = array<i64: 1>, scalar_prefetch = 0 : i64, scratch_operands = 0 : i64, tpu.core_type = #tpu.core_type<tc>, window_params = [{transform_indices = @transform_0, window_bounds = array<i64: 16, 1024>}, {pipeline_mode = #tpu.pipeline_mode<synchronous>, transform_indices = @transform_1, window_bounds = array<i64: 256, 256>}, {pipeline_mode = #tpu.pipeline_mode<synchronous>, transform_indices = @transform_2, window_bounds = array<i64: 1, 256>}, {pipeline_mode = #tpu.pipeline_mode<synchronous>, transform_indices = @transform_3, window_bounds = array<i64: 3, 256, 128>}, {pipeline_mode = #tpu.pipeline_mode<synchronous>, transform_indices = @transform_4, window_bounds = array<i64: 1, 128>}, {pipeline_mode = #tpu.pipeline_mode<synchronous>, transform_indices = @transform_5, window_bounds = array<i64: 3, 128, 128>}, {pipeline_mode = #tpu.pipeline_mode<synchronous>, transform_indices = @transform_6, window_bounds = array<i64: 1, 128>}, {pipeline_mode = #tpu.pipeline_mode<synchronous>, transform_indices = @transform_7, window_bounds = array<i64: 1, 128, 128>}, {pipeline_mode = #tpu.pipeline_mode<synchronous>, transform_indices = @transform_8, window_bounds = array<i64: 1, 128>}, {pipeline_mode = #tpu.pipeline_mode<synchronous>, transform_indices = @transform_9, window_bounds = array<i64: 128, 128>}, {pipeline_mode = #tpu.pipeline_mode<synchronous>, transform_indices = @transform_10, window_bounds = array<i64: 1, 128>}, {transform_indices = @transform_11, window_bounds = array<i64: 16, 128>}]} {
    %c0 = arith.constant 0 : index
    %c0_0 = arith.constant 0 : index
    %0 = vector.load %arg3[%c0, %c0_0] : memref<1x256xf32, #tpu.memory_space<vmem>>, vector<1x256xf32>
    %c0_1 = arith.constant 0 : index
    %c0_2 = arith.constant 0 : index
    %1 = vector.load %arg1[%c0_1, %c0_2] : memref<16x1024xbf16, #tpu.memory_space<vmem>>, vector<16x256xbf16>
    %c0_3 = arith.constant 0 : index
    %c0_4 = arith.constant 0 : index
    %2 = vector.load %arg2[%c0_3, %c0_4] : memref<256x256xbf16, #tpu.memory_space<vmem>>, vector<256x256xbf16>
    %cst = arith.constant dense<0.000000e+00> : vector<16x256xf32>
    %3 = tpu.matmul %1, %2, %cst {dimension_numbers = #tpu.dot_dimension_numbers<[1], [0], [0], [1], [0, 0, 1, 1], [], []>} : vector<16x256xbf16>, vector<256x256xbf16>, vector<16x256xf32> -> vector<16x256xf32>
    %4 = vector.broadcast %0 : vector<1x256xf32> to vector<16x256xf32>
    %5 = arith.addf %3, %4 : vector<16x256xf32>
    %cst_5 = arith.constant 0.000000e+00 : f32
    %6 = vector.broadcast %cst_5 : f32 to vector<16x256xf32>
    %7 = arith.maximumf %5, %6 : vector<16x256xf32>
    %8 = arith.truncf %7 : vector<16x256xf32> to vector<16x256xbf16>
    %c0_6 = arith.constant 0 : index
    %c128 = arith.constant 128 : index
    %9 = vector.load %arg1[%c0_6, %c128] : memref<16x1024xbf16, #tpu.memory_space<vmem>>, vector<16x256xbf16>
    %c0_7 = arith.constant 0 : index
    %c0_8 = arith.constant 0 : index
    %10 = vector.load %arg2[%c0_7, %c0_8] : memref<256x256xbf16, #tpu.memory_space<vmem>>, vector<256x256xbf16>
    %cst_9 = arith.constant dense<0.000000e+00> : vector<16x256xf32>
    %11 = tpu.matmul %9, %10, %cst_9 {dimension_numbers = #tpu.dot_dimension_numbers<[1], [0], [0], [1], [0, 0, 1, 1], [], []>} : vector<16x256xbf16>, vector<256x256xbf16>, vector<16x256xf32> -> vector<16x256xf32>
    %12 = vector.broadcast %0 : vector<1x256xf32> to vector<16x256xf32>
    %13 = arith.addf %11, %12 : vector<16x256xf32>
    %cst_10 = arith.constant 0.000000e+00 : f32
    %14 = vector.broadcast %cst_10 : f32 to vector<16x256xf32>
    %15 = arith.maximumf %13, %14 : vector<16x256xf32>
    %16 = arith.truncf %15 : vector<16x256xf32> to vector<16x256xbf16>
    %c0_11 = arith.constant 0 : index
    %c256 = arith.constant 256 : index
    %17 = vector.load %arg1[%c0_11, %c256] : memref<16x1024xbf16, #tpu.memory_space<vmem>>, vector<16x256xbf16>
    %c0_12 = arith.constant 0 : index
    %c0_13 = arith.constant 0 : index
    %18 = vector.load %arg2[%c0_12, %c0_13] : memref<256x256xbf16, #tpu.memory_space<vmem>>, vector<256x256xbf16>
    %cst_14 = arith.constant dense<0.000000e+00> : vector<16x256xf32>
    %19 = tpu.matmul %17, %18, %cst_14 {dimension_numbers = #tpu.dot_dimension_numbers<[1], [0], [0], [1], [0, 0, 1, 1], [], []>} : vector<16x256xbf16>, vector<256x256xbf16>, vector<16x256xf32> -> vector<16x256xf32>
    %20 = vector.broadcast %0 : vector<1x256xf32> to vector<16x256xf32>
    %21 = arith.addf %19, %20 : vector<16x256xf32>
    %cst_15 = arith.constant 0.000000e+00 : f32
    %22 = vector.broadcast %cst_15 : f32 to vector<16x256xf32>
    %23 = arith.maximumf %21, %22 : vector<16x256xf32>
    %24 = arith.truncf %23 : vector<16x256xf32> to vector<16x256xbf16>
    %c0_16 = arith.constant 0 : index
    %c384 = arith.constant 384 : index
    %25 = vector.load %arg1[%c0_16, %c384] : memref<16x1024xbf16, #tpu.memory_space<vmem>>, vector<16x256xbf16>
    %c0_17 = arith.constant 0 : index
    %c0_18 = arith.constant 0 : index
    %26 = vector.load %arg2[%c0_17, %c0_18] : memref<256x256xbf16, #tpu.memory_space<vmem>>, vector<256x256xbf16>
    %cst_19 = arith.constant dense<0.000000e+00> : vector<16x256xf32>
    %27 = tpu.matmul %25, %26, %cst_19 {dimension_numbers = #tpu.dot_dimension_numbers<[1], [0], [0], [1], [0, 0, 1, 1], [], []>} : vector<16x256xbf16>, vector<256x256xbf16>, vector<16x256xf32> -> vector<16x256xf32>
    %28 = vector.broadcast %0 : vector<1x256xf32> to vector<16x256xf32>
    %29 = arith.addf %27, %28 : vector<16x256xf32>
    %cst_20 = arith.constant 0.000000e+00 : f32
    %30 = vector.broadcast %cst_20 : f32 to vector<16x256xf32>
    %31 = arith.maximumf %29, %30 : vector<16x256xf32>
    %32 = arith.truncf %31 : vector<16x256xf32> to vector<16x256xbf16>
    %c0_21 = arith.constant 0 : index
    %c512 = arith.constant 512 : index
    %33 = vector.load %arg1[%c0_21, %c512] : memref<16x1024xbf16, #tpu.memory_space<vmem>>, vector<16x256xbf16>
    %c0_22 = arith.constant 0 : index
    %c0_23 = arith.constant 0 : index
    %34 = vector.load %arg2[%c0_22, %c0_23] : memref<256x256xbf16, #tpu.memory_space<vmem>>, vector<256x256xbf16>
    %cst_24 = arith.constant dense<0.000000e+00> : vector<16x256xf32>
    %35 = tpu.matmul %33, %34, %cst_24 {dimension_numbers = #tpu.dot_dimension_numbers<[1], [0], [0], [1], [0, 0, 1, 1], [], []>} : vector<16x256xbf16>, vector<256x256xbf16>, vector<16x256xf32> -> vector<16x256xf32>
    %36 = vector.broadcast %0 : vector<1x256xf32> to vector<16x256xf32>
    %37 = arith.addf %35, %36 : vector<16x256xf32>
    %cst_25 = arith.constant 0.000000e+00 : f32
    %38 = vector.broadcast %cst_25 : f32 to vector<16x256xf32>
    %39 = arith.maximumf %37, %38 : vector<16x256xf32>
    %40 = arith.truncf %39 : vector<16x256xf32> to vector<16x256xbf16>
    %c0_26 = arith.constant 0 : index
    %c640 = arith.constant 640 : index
    %41 = vector.load %arg1[%c0_26, %c640] : memref<16x1024xbf16, #tpu.memory_space<vmem>>, vector<16x256xbf16>
    %c0_27 = arith.constant 0 : index
    %c0_28 = arith.constant 0 : index
    %42 = vector.load %arg2[%c0_27, %c0_28] : memref<256x256xbf16, #tpu.memory_space<vmem>>, vector<256x256xbf16>
    %cst_29 = arith.constant dense<0.000000e+00> : vector<16x256xf32>
    %43 = tpu.matmul %41, %42, %cst_29 {dimension_numbers = #tpu.dot_dimension_numbers<[1], [0], [0], [1], [0, 0, 1, 1], [], []>} : vector<16x256xbf16>, vector<256x256xbf16>, vector<16x256xf32> -> vector<16x256xf32>
    %44 = vector.broadcast %0 : vector<1x256xf32> to vector<16x256xf32>
    %45 = arith.addf %43, %44 : vector<16x256xf32>
    %cst_30 = arith.constant 0.000000e+00 : f32
    %46 = vector.broadcast %cst_30 : f32 to vector<16x256xf32>
    %47 = arith.maximumf %45, %46 : vector<16x256xf32>
    %48 = arith.truncf %47 : vector<16x256xf32> to vector<16x256xbf16>
    %c0_31 = arith.constant 0 : index
    %c768 = arith.constant 768 : index
    %49 = vector.load %arg1[%c0_31, %c768] : memref<16x1024xbf16, #tpu.memory_space<vmem>>, vector<16x256xbf16>
    %c0_32 = arith.constant 0 : index
    %c0_33 = arith.constant 0 : index
    %50 = vector.load %arg2[%c0_32, %c0_33] : memref<256x256xbf16, #tpu.memory_space<vmem>>, vector<256x256xbf16>
    %cst_34 = arith.constant dense<0.000000e+00> : vector<16x256xf32>
    %51 = tpu.matmul %49, %50, %cst_34 {dimension_numbers = #tpu.dot_dimension_numbers<[1], [0], [0], [1], [0, 0, 1, 1], [], []>} : vector<16x256xbf16>, vector<256x256xbf16>, vector<16x256xf32> -> vector<16x256xf32>
    %52 = vector.broadcast %0 : vector<1x256xf32> to vector<16x256xf32>
    %53 = arith.addf %51, %52 : vector<16x256xf32>
    %cst_35 = arith.constant 0.000000e+00 : f32
    %54 = vector.broadcast %cst_35 : f32 to vector<16x256xf32>
    %55 = arith.maximumf %53, %54 : vector<16x256xf32>
    %56 = arith.truncf %55 : vector<16x256xf32> to vector<16x256xbf16>
    %c0_36 = arith.constant 0 : index
    %c0_37 = arith.constant 0 : index
    %57 = vector.load %arg5[%c0_36, %c0_37] : memref<1x128xf32, #tpu.memory_space<vmem>>, vector<1x128xf32>
    %c0_38 = arith.constant 0 : index
    %c0_39 = arith.constant 0 : index
    %c0_40 = arith.constant 0 : index
    %58 = vector.load %arg4[%c0_38, %c0_39, %c0_40] : memref<3x256x128xbf16, #tpu.memory_space<vmem>>, vector<1x256x128xbf16>
    %59 = vector.shape_cast %58 : vector<1x256x128xbf16> to vector<256x128xbf16>
    %cst_41 = arith.constant dense<0.000000e+00> : vector<16x128xf32>
    %60 = tpu.matmul %8, %59, %cst_41 {dimension_numbers = #tpu.dot_dimension_numbers<[1], [0], [0], [1], [0, 0, 1, 1], [], []>} : vector<16x256xbf16>, vector<256x128xbf16>, vector<16x128xf32> -> vector<16x128xf32>
    %61 = vector.broadcast %57 : vector<1x128xf32> to vector<16x128xf32>
    %62 = arith.addf %61, %60 : vector<16x128xf32>
    %c1 = arith.constant 1 : index
    %c0_42 = arith.constant 0 : index
    %c0_43 = arith.constant 0 : index
    %63 = vector.load %arg4[%c1, %c0_42, %c0_43] : memref<3x256x128xbf16, #tpu.memory_space<vmem>>, vector<1x256x128xbf16>
    %64 = vector.shape_cast %63 : vector<1x256x128xbf16> to vector<256x128xbf16>
    %cst_44 = arith.constant dense<0.000000e+00> : vector<16x128xf32>
    %65 = tpu.matmul %16, %64, %cst_44 {dimension_numbers = #tpu.dot_dimension_numbers<[1], [0], [0], [1], [0, 0, 1, 1], [], []>} : vector<16x256xbf16>, vector<256x128xbf16>, vector<16x128xf32> -> vector<16x128xf32>
    %66 = arith.addf %62, %65 : vector<16x128xf32>
    %c2 = arith.constant 2 : index
    %c0_45 = arith.constant 0 : index
    %c0_46 = arith.constant 0 : index
    %67 = vector.load %arg4[%c2, %c0_45, %c0_46] : memref<3x256x128xbf16, #tpu.memory_space<vmem>>, vector<1x256x128xbf16>
    %68 = vector.shape_cast %67 : vector<1x256x128xbf16> to vector<256x128xbf16>
    %cst_47 = arith.constant dense<0.000000e+00> : vector<16x128xf32>
    %69 = tpu.matmul %24, %68, %cst_47 {dimension_numbers = #tpu.dot_dimension_numbers<[1], [0], [0], [1], [0, 0, 1, 1], [], []>} : vector<16x256xbf16>, vector<256x128xbf16>, vector<16x128xf32> -> vector<16x128xf32>
    %70 = arith.addf %66, %69 : vector<16x128xf32>
    %cst_48 = arith.constant 0.000000e+00 : f32
    %71 = vector.broadcast %cst_48 : f32 to vector<16x128xf32>
    %72 = arith.maximumf %70, %71 : vector<16x128xf32>
    %73 = arith.truncf %72 : vector<16x128xf32> to vector<16x128xbf16>
    %c0_49 = arith.constant 0 : index
    %c0_50 = arith.constant 0 : index
    %c0_51 = arith.constant 0 : index
    %74 = vector.load %arg4[%c0_49, %c0_50, %c0_51] : memref<3x256x128xbf16, #tpu.memory_space<vmem>>, vector<1x256x128xbf16>
    %75 = vector.shape_cast %74 : vector<1x256x128xbf16> to vector<256x128xbf16>
    %cst_52 = arith.constant dense<0.000000e+00> : vector<16x128xf32>
    %76 = tpu.matmul %24, %75, %cst_52 {dimension_numbers = #tpu.dot_dimension_numbers<[1], [0], [0], [1], [0, 0, 1, 1], [], []>} : vector<16x256xbf16>, vector<256x128xbf16>, vector<16x128xf32> -> vector<16x128xf32>
    %77 = vector.broadcast %57 : vector<1x128xf32> to vector<16x128xf32>
    %78 = arith.addf %77, %76 : vector<16x128xf32>
    %c1_53 = arith.constant 1 : index
    %c0_54 = arith.constant 0 : index
    %c0_55 = arith.constant 0 : index
    %79 = vector.load %arg4[%c1_53, %c0_54, %c0_55] : memref<3x256x128xbf16, #tpu.memory_space<vmem>>, vector<1x256x128xbf16>
    %80 = vector.shape_cast %79 : vector<1x256x128xbf16> to vector<256x128xbf16>
    %cst_56 = arith.constant dense<0.000000e+00> : vector<16x128xf32>
    %81 = tpu.matmul %32, %80, %cst_56 {dimension_numbers = #tpu.dot_dimension_numbers<[1], [0], [0], [1], [0, 0, 1, 1], [], []>} : vector<16x256xbf16>, vector<256x128xbf16>, vector<16x128xf32> -> vector<16x128xf32>
    %82 = arith.addf %78, %81 : vector<16x128xf32>
    %c2_57 = arith.constant 2 : index
    %c0_58 = arith.constant 0 : index
    %c0_59 = arith.constant 0 : index
    %83 = vector.load %arg4[%c2_57, %c0_58, %c0_59] : memref<3x256x128xbf16, #tpu.memory_space<vmem>>, vector<1x256x128xbf16>
    %84 = vector.shape_cast %83 : vector<1x256x128xbf16> to vector<256x128xbf16>
    %cst_60 = arith.constant dense<0.000000e+00> : vector<16x128xf32>
    %85 = tpu.matmul %40, %84, %cst_60 {dimension_numbers = #tpu.dot_dimension_numbers<[1], [0], [0], [1], [0, 0, 1, 1], [], []>} : vector<16x256xbf16>, vector<256x128xbf16>, vector<16x128xf32> -> vector<16x128xf32>
    %86 = arith.addf %82, %85 : vector<16x128xf32>
    %cst_61 = arith.constant 0.000000e+00 : f32
    %87 = vector.broadcast %cst_61 : f32 to vector<16x128xf32>
    %88 = arith.maximumf %86, %87 : vector<16x128xf32>
    %89 = arith.truncf %88 : vector<16x128xf32> to vector<16x128xbf16>
    %c0_62 = arith.constant 0 : index
    %c0_63 = arith.constant 0 : index
    %c0_64 = arith.constant 0 : index
    %90 = vector.load %arg4[%c0_62, %c0_63, %c0_64] : memref<3x256x128xbf16, #tpu.memory_space<vmem>>, vector<1x256x128xbf16>
    %91 = vector.shape_cast %90 : vector<1x256x128xbf16> to vector<256x128xbf16>
    %cst_65 = arith.constant dense<0.000000e+00> : vector<16x128xf32>
    %92 = tpu.matmul %40, %91, %cst_65 {dimension_numbers = #tpu.dot_dimension_numbers<[1], [0], [0], [1], [0, 0, 1, 1], [], []>} : vector<16x256xbf16>, vector<256x128xbf16>, vector<16x128xf32> -> vector<16x128xf32>
    %93 = vector.broadcast %57 : vector<1x128xf32> to vector<16x128xf32>
    %94 = arith.addf %93, %92 : vector<16x128xf32>
    %c1_66 = arith.constant 1 : index
    %c0_67 = arith.constant 0 : index
    %c0_68 = arith.constant 0 : index
    %95 = vector.load %arg4[%c1_66, %c0_67, %c0_68] : memref<3x256x128xbf16, #tpu.memory_space<vmem>>, vector<1x256x128xbf16>
    %96 = vector.shape_cast %95 : vector<1x256x128xbf16> to vector<256x128xbf16>
    %cst_69 = arith.constant dense<0.000000e+00> : vector<16x128xf32>
    %97 = tpu.matmul %48, %96, %cst_69 {dimension_numbers = #tpu.dot_dimension_numbers<[1], [0], [0], [1], [0, 0, 1, 1], [], []>} : vector<16x256xbf16>, vector<256x128xbf16>, vector<16x128xf32> -> vector<16x128xf32>
    %98 = arith.addf %94, %97 : vector<16x128xf32>
    %c2_70 = arith.constant 2 : index
    %c0_71 = arith.constant 0 : index
    %c0_72 = arith.constant 0 : index
    %99 = vector.load %arg4[%c2_70, %c0_71, %c0_72] : memref<3x256x128xbf16, #tpu.memory_space<vmem>>, vector<1x256x128xbf16>
    %100 = vector.shape_cast %99 : vector<1x256x128xbf16> to vector<256x128xbf16>
    %cst_73 = arith.constant dense<0.000000e+00> : vector<16x128xf32>
    %101 = tpu.matmul %56, %100, %cst_73 {dimension_numbers = #tpu.dot_dimension_numbers<[1], [0], [0], [1], [0, 0, 1, 1], [], []>} : vector<16x256xbf16>, vector<256x128xbf16>, vector<16x128xf32> -> vector<16x128xf32>
    %102 = arith.addf %98, %101 : vector<16x128xf32>
    %cst_74 = arith.constant 0.000000e+00 : f32
    %103 = vector.broadcast %cst_74 : f32 to vector<16x128xf32>
    %104 = arith.maximumf %102, %103 : vector<16x128xf32>
    %105 = arith.truncf %104 : vector<16x128xf32> to vector<16x128xbf16>
    %c0_75 = arith.constant 0 : index
    %c0_76 = arith.constant 0 : index
    %106 = vector.load %arg7[%c0_75, %c0_76] : memref<1x128xf32, #tpu.memory_space<vmem>>, vector<1x128xf32>
    %c0_77 = arith.constant 0 : index
    %c0_78 = arith.constant 0 : index
    %c0_79 = arith.constant 0 : index
    %107 = vector.load %arg6[%c0_77, %c0_78, %c0_79] : memref<3x128x128xbf16, #tpu.memory_space<vmem>>, vector<1x128x128xbf16>
    %108 = vector.shape_cast %107 : vector<1x128x128xbf16> to vector<128x128xbf16>
    %cst_80 = arith.constant dense<0.000000e+00> : vector<16x128xf32>
    %109 = tpu.matmul %73, %108, %cst_80 {dimension_numbers = #tpu.dot_dimension_numbers<[1], [0], [0], [1], [0, 0, 1, 1], [], []>} : vector<16x128xbf16>, vector<128x128xbf16>, vector<16x128xf32> -> vector<16x128xf32>
    %110 = vector.broadcast %106 : vector<1x128xf32> to vector<16x128xf32>
    %111 = arith.addf %110, %109 : vector<16x128xf32>
    %c1_81 = arith.constant 1 : index
    %c0_82 = arith.constant 0 : index
    %c0_83 = arith.constant 0 : index
    %112 = vector.load %arg6[%c1_81, %c0_82, %c0_83] : memref<3x128x128xbf16, #tpu.memory_space<vmem>>, vector<1x128x128xbf16>
    %113 = vector.shape_cast %112 : vector<1x128x128xbf16> to vector<128x128xbf16>
    %cst_84 = arith.constant dense<0.000000e+00> : vector<16x128xf32>
    %114 = tpu.matmul %89, %113, %cst_84 {dimension_numbers = #tpu.dot_dimension_numbers<[1], [0], [0], [1], [0, 0, 1, 1], [], []>} : vector<16x128xbf16>, vector<128x128xbf16>, vector<16x128xf32> -> vector<16x128xf32>
    %115 = arith.addf %111, %114 : vector<16x128xf32>
    %c2_85 = arith.constant 2 : index
    %c0_86 = arith.constant 0 : index
    %c0_87 = arith.constant 0 : index
    %116 = vector.load %arg6[%c2_85, %c0_86, %c0_87] : memref<3x128x128xbf16, #tpu.memory_space<vmem>>, vector<1x128x128xbf16>
    %117 = vector.shape_cast %116 : vector<1x128x128xbf16> to vector<128x128xbf16>
    %cst_88 = arith.constant dense<0.000000e+00> : vector<16x128xf32>
    %118 = tpu.matmul %105, %117, %cst_88 {dimension_numbers = #tpu.dot_dimension_numbers<[1], [0], [0], [1], [0, 0, 1, 1], [], []>} : vector<16x128xbf16>, vector<128x128xbf16>, vector<16x128xf32> -> vector<16x128xf32>
    %119 = arith.addf %115, %118 : vector<16x128xf32>
    %cst_89 = arith.constant 0.000000e+00 : f32
    %120 = vector.broadcast %cst_89 : f32 to vector<16x128xf32>
    %121 = arith.maximumf %119, %120 : vector<16x128xf32>
    %122 = arith.truncf %121 : vector<16x128xf32> to vector<16x128xbf16>
    %c0_90 = arith.constant 0 : index
    %c0_91 = arith.constant 0 : index
    %123 = vector.load %arg9[%c0_90, %c0_91] : memref<1x128xf32, #tpu.memory_space<vmem>>, vector<1x128xf32>
    %c0_92 = arith.constant 0 : index
    %c0_93 = arith.constant 0 : index
    %c0_94 = arith.constant 0 : index
    %124 = vector.load %arg8[%c0_92, %c0_93, %c0_94] : memref<1x128x128xbf16, #tpu.memory_space<vmem>>, vector<1x128x128xbf16>
    %125 = vector.shape_cast %124 : vector<1x128x128xbf16> to vector<128x128xbf16>
    %cst_95 = arith.constant dense<0.000000e+00> : vector<16x128xf32>
    %126 = tpu.matmul %122, %125, %cst_95 {dimension_numbers = #tpu.dot_dimension_numbers<[1], [0], [0], [1], [0, 0, 1, 1], [], []>} : vector<16x128xbf16>, vector<128x128xbf16>, vector<16x128xf32> -> vector<16x128xf32>
    %127 = vector.broadcast %123 : vector<1x128xf32> to vector<16x128xf32>
    %128 = arith.addf %127, %126 : vector<16x128xf32>
    %129 = math.tanh %128 : vector<16x128xf32>
    %130 = arith.truncf %129 : vector<16x128xf32> to vector<16x128xbf16>
    %c0_96 = arith.constant 0 : index
    %c0_97 = arith.constant 0 : index
    %131 = vector.load %arg10[%c0_96, %c0_97] : memref<128x128xbf16, #tpu.memory_space<vmem>>, vector<128x128xbf16>
    %cst_98 = arith.constant dense<0.000000e+00> : vector<16x128xf32>
    %132 = tpu.matmul %130, %131, %cst_98 {dimension_numbers = #tpu.dot_dimension_numbers<[1], [0], [0], [1], [0, 0, 1, 1], [], []>} : vector<16x128xbf16>, vector<128x128xbf16>, vector<16x128xf32> -> vector<16x128xf32>
    %c0_99 = arith.constant 0 : index
    %c0_100 = arith.constant 0 : index
    %133 = vector.load %arg11[%c0_99, %c0_100] : memref<1x128xf32, #tpu.memory_space<vmem>>, vector<1x128xf32>
    %134 = vector.broadcast %133 : vector<1x128xf32> to vector<16x128xf32>
    %135 = arith.addf %132, %134 : vector<16x128xf32>
    %136 = tpu.iota {dimensions = array<i32: 1>} : vector<16x128xi32>
    %c5_i32 = arith.constant 5 : i32
    %137 = vector.broadcast %c5_i32 : i32 to vector<16x128xi32>
    %138 = arith.cmpi slt, %136, %137 : vector<16x128xi32>
    %cst_101 = arith.constant -1.000000e+30 : f32
    %139 = vector.broadcast %cst_101 : f32 to vector<16x128xf32>
    %140 = arith.select %138, %135, %139 : vector<16x128xi1>, vector<16x128xf32>
    %cst_102 = arith.constant dense<0xFF800000> : vector<16xf32>
    %141 = vector.multi_reduction <maximumf>, %140, %cst_102 [1] : vector<16x128xf32> to vector<16xf32>
    %142 = vector.shape_cast %141 : vector<16xf32> to vector<16x1xf32>
    %143 = vector.broadcast %142 : vector<16x1xf32> to vector<16x128xf32>
    %144 = arith.subf %140, %143 : vector<16x128xf32>
    %145 = math.exp %144 : vector<16x128xf32>
    %cst_103 = arith.constant dense<0.000000e+00> : vector<16xf32>
    %146 = vector.multi_reduction <add>, %145, %cst_103 [1] : vector<16x128xf32> to vector<16xf32>
    %147 = vector.shape_cast %146 : vector<16xf32> to vector<16x1xf32>
    %cst_104 = arith.constant 1.000000e+00 : f32
    %148 = vector.broadcast %cst_104 : f32 to vector<16x1xf32>
    %149 = arith.divf %148, %147 : vector<16x1xf32>
    %150 = vector.broadcast %149 : vector<16x1xf32> to vector<16x128xf32>
    %151 = arith.mulf %145, %150 : vector<16x128xf32>
    %c5_i32_105 = arith.constant 5 : i32
    %152 = vector.broadcast %c5_i32_105 : i32 to vector<16x128xi32>
    %153 = arith.cmpi slt, %136, %152 : vector<16x128xi32>
    %c5_i32_106 = arith.constant 5 : i32
    %154 = vector.broadcast %c5_i32_106 : i32 to vector<16x128xi32>
    %155 = arith.cmpi eq, %136, %154 : vector<16x128xi32>
    %cst_107 = arith.constant 0.000000e+00 : f32
    %156 = vector.broadcast %cst_107 : f32 to vector<16x128xf32>
    %157 = arith.select %155, %135, %156 : vector<16x128xi1>, vector<16x128xf32>
    %158 = arith.select %153, %151, %157 : vector<16x128xi1>, vector<16x128xf32>
    %c0_108 = arith.constant 0 : index
    %c0_109 = arith.constant 0 : index
    %159 = vector.load %arg12[%c0_108, %c0_109] : memref<16x128xf32, #tpu.memory_space<vmem>>, vector<16x128xf32>
    tpu.vector_store %arg12[%c0_108, %c0_109], %158 {strides = array<i32>} : memref<16x128xf32, #tpu.memory_space<vmem>>, vector<16x128xf32>,
    return
  }
  func.func @transform_0(%arg0: i32) -> (i32, i32) {
    %c0_i32 = arith.constant 0 : i32
    %c0_i32_0 = arith.constant 0 : i32
    return %arg0, %c0_i32 : i32, i32
  }
  func.func @transform_1(%arg0: i32) -> (i32, i32) {
    %c0_i32 = arith.constant 0 : i32
    %c0_i32_0 = arith.constant 0 : i32
    %c0_i32_1 = arith.constant 0 : i32
    return %c0_i32, %c0_i32_0 : i32, i32
  }
  func.func @transform_2(%arg0: i32) -> (i32, i32) {
    %c0_i32 = arith.constant 0 : i32
    %c0_i32_0 = arith.constant 0 : i32
    %c0_i32_1 = arith.constant 0 : i32
    return %c0_i32, %c0_i32_0 : i32, i32
  }
  func.func @transform_3(%arg0: i32) -> (i32, i32, i32) {
    %c0_i32 = arith.constant 0 : i32
    %c0_i32_0 = arith.constant 0 : i32
    %c0_i32_1 = arith.constant 0 : i32
    %c0_i32_2 = arith.constant 0 : i32
    return %c0_i32, %c0_i32_0, %c0_i32_1 : i32, i32, i32
  }
  func.func @transform_4(%arg0: i32) -> (i32, i32) {
    %c0_i32 = arith.constant 0 : i32
    %c0_i32_0 = arith.constant 0 : i32
    %c0_i32_1 = arith.constant 0 : i32
    return %c0_i32, %c0_i32_0 : i32, i32
  }
  func.func @transform_5(%arg0: i32) -> (i32, i32, i32) {
    %c0_i32 = arith.constant 0 : i32
    %c0_i32_0 = arith.constant 0 : i32
    %c0_i32_1 = arith.constant 0 : i32
    %c0_i32_2 = arith.constant 0 : i32
    return %c0_i32, %c0_i32_0, %c0_i32_1 : i32, i32, i32
  }
  func.func @transform_6(%arg0: i32) -> (i32, i32) {
    %c0_i32 = arith.constant 0 : i32
    %c0_i32_0 = arith.constant 0 : i32
    %c0_i32_1 = arith.constant 0 : i32
    return %c0_i32, %c0_i32_0 : i32, i32
  }
  func.func @transform_7(%arg0: i32) -> (i32, i32, i32) {
    %c0_i32 = arith.constant 0 : i32
    %c0_i32_0 = arith.constant 0 : i32
    %c0_i32_1 = arith.constant 0 : i32
    %c0_i32_2 = arith.constant 0 : i32
    return %c0_i32, %c0_i32_0, %c0_i32_1 : i32, i32, i32
  }
  func.func @transform_8(%arg0: i32) -> (i32, i32) {
    %c0_i32 = arith.constant 0 : i32
    %c0_i32_0 = arith.constant 0 : i32
    %c0_i32_1 = arith.constant 0 : i32
    return %c0_i32, %c0_i32_0 : i32, i32
  }
  func.func @transform_9(%arg0: i32) -> (i32, i32) {
    %c0_i32 = arith.constant 0 : i32
    %c0_i32_0 = arith.constant 0 : i32
    %c0_i32_1 = arith.constant 0 : i32
    return %c0_i32, %c0_i32_0 : i32, i32
  }
  func.func @transform_10(%arg0: i32) -> (i32, i32) {
    %c0_i32 = arith.constant 0 : i32
    %c0_i32_0 = arith.constant 0 : i32
    %c0_i32_1 = arith.constant 0 : i32
    return %c0_i32, %c0_i32_0 : i32, i32
  }
  func.func @transform_11(%arg0: i32) -> (i32, i32) {
    %c0_i32 = arith.constant 0 : i32
    %c0_i32_0 = arith.constant 0 : i32
    return %arg0, %c0_i32 : i32, i32
  }
}

module attributes {stable_mosaic.version = 11 : i64} {
  func.func @_fused_forward_kernel(%arg0: i32, %arg1: memref<16x1024xbf16, #tpu.memory_space<vmem>>, %arg2: memref<256x256xbf16, #tpu.memory_space<vmem>>, %arg3: memref<1x256xf32, #tpu.memory_space<vmem>>, %arg4: memref<3x256x128xbf16, #tpu.memory_space<vmem>>, %arg5: memref<1x128xf32, #tpu.memory_space<vmem>>, %arg6: memref<3x128x128xbf16, #tpu.memory_space<vmem>>, %arg7: memref<1x128xf32, #tpu.memory_space<vmem>>, %arg8: memref<1x128x128xbf16, #tpu.memory_space<vmem>>, %arg9: memref<1x128xf32, #tpu.memory_space<vmem>>, %arg10: memref<128x128xbf16, #tpu.memory_space<vmem>>, %arg11: memref<1x128xf32, #tpu.memory_space<vmem>>, %arg12: memref<16x128xf32, #tpu.memory_space<vmem>>) attributes {dimension_semantics = [#tpu.dimension_semantics<arbitrary>], iteration_bounds = array<i64: 1>, scalar_prefetch = 0 : i64, scratch_operands = 0 : i64, tpu.core_type = #tpu.core_type<tc>, window_params = [{transform_indices = @transform_0, window_bounds = array<i64: 16, 1024>}, {pipeline_mode = #tpu.pipeline_mode<synchronous>, transform_indices = @transform_1, window_bounds = array<i64: 256, 256>}, {pipeline_mode = #tpu.pipeline_mode<synchronous>, transform_indices = @transform_2, window_bounds = array<i64: 1, 256>}, {pipeline_mode = #tpu.pipeline_mode<synchronous>, transform_indices = @transform_3, window_bounds = array<i64: 3, 256, 128>}, {pipeline_mode = #tpu.pipeline_mode<synchronous>, transform_indices = @transform_4, window_bounds = array<i64: 1, 128>}, {pipeline_mode = #tpu.pipeline_mode<synchronous>, transform_indices = @transform_5, window_bounds = array<i64: 3, 128, 128>}, {pipeline_mode = #tpu.pipeline_mode<synchronous>, transform_indices = @transform_6, window_bounds = array<i64: 1, 128>}, {pipeline_mode = #tpu.pipeline_mode<synchronous>, transform_indices = @transform_7, window_bounds = array<i64: 1, 128, 128>}, {pipeline_mode = #tpu.pipeline_mode<synchronous>, transform_indices = @transform_8, window_bounds = array<i64: 1, 128>}, {pipeline_mode = #tpu.pipeline_mode<synchronous>, transform_indices = @transform_9, window_bounds = array<i64: 128, 128>}, {pipeline_mode = #tpu.pipeline_mode<synchronous>, transform_indices = @transform_10, window_bounds = array<i64: 1, 128>}, {transform_indices = @transform_11, window_bounds = array<i64: 16, 128>}]} {
    %c0 = arith.constant 0 : index
    %c0_0 = arith.constant 0 : index
    %0 = vector.load %arg3[%c0, %c0_0] : memref<1x256xf32, #tpu.memory_space<vmem>>, vector<1x256xf32>
    %c0_1 = arith.constant 0 : index
    %c0_2 = arith.constant 0 : index
    %1 = vector.load %arg1[%c0_1, %c0_2] : memref<16x1024xbf16, #tpu.memory_space<vmem>>, vector<16x256xbf16>
    %c0_3 = arith.constant 0 : index
    %c0_4 = arith.constant 0 : index
    %2 = vector.load %arg2[%c0_3, %c0_4] : memref<256x256xbf16, #tpu.memory_space<vmem>>, vector<256x256xbf16>
    %cst = arith.constant dense<0.000000e+00> : vector<16x256xf32>
    %3 = tpu.matmul %1, %2, %cst {dimension_numbers = #tpu.dot_dimension_numbers<[1], [0], [0], [1], [0, 0, 1, 1], [], []>} : vector<16x256xbf16>, vector<256x256xbf16>, vector<16x256xf32> -> vector<16x256xf32>
    %4 = vector.broadcast %0 : vector<1x256xf32> to vector<16x256xf32>
    %5 = arith.addf %3, %4 : vector<16x256xf32>
    %cst_5 = arith.constant 0.000000e+00 : f32
    %6 = vector.broadcast %cst_5 : f32 to vector<16x256xf32>
    %7 = arith.maximumf %5, %6 : vector<16x256xf32>
    %8 = arith.truncf %7 : vector<16x256xf32> to vector<16x256xbf16>
    %c0_6 = arith.constant 0 : index
    %c128 = arith.constant 128 : index
    %9 = vector.load %arg1[%c0_6, %c128] : memref<16x1024xbf16, #tpu.memory_space<vmem>>, vector<16x256xbf16>
    %c0_7 = arith.constant 0 : index
    %c0_8 = arith.constant 0 : index
    %10 = vector.load %arg2[%c0_7, %c0_8] : memref<256x256xbf16, #tpu.memory_space<vmem>>, vector<256x256xbf16>
    %cst_9 = arith.constant dense<0.000000e+00> : vector<16x256xf32>
    %11 = tpu.matmul %9, %10, %cst_9 {dimension_numbers = #tpu.dot_dimension_numbers<[1], [0], [0], [1], [0, 0, 1, 1], [], []>} : vector<16x256xbf16>, vector<256x256xbf16>, vector<16x256xf32> -> vector<16x256xf32>
    %12 = vector.broadcast %0 : vector<1x256xf32> to vector<16x256xf32>
    %13 = arith.addf %11, %12 : vector<16x256xf32>
    %cst_10 = arith.constant 0.000000e+00 : f32
    %14 = vector.broadcast %cst_10 : f32 to vector<16x256xf32>
    %15 = arith.maximumf %13, %14 : vector<16x256xf32>
    %16 = arith.truncf %15 : vector<16x256xf32> to vector<16x256xbf16>
    %c0_11 = arith.constant 0 : index
    %c256 = arith.constant 256 : index
    %17 = vector.load %arg1[%c0_11, %c256] : memref<16x1024xbf16, #tpu.memory_space<vmem>>, vector<16x256xbf16>
    %c0_12 = arith.constant 0 : index
    %c0_13 = arith.constant 0 : index
    %18 = vector.load %arg2[%c0_12, %c0_13] : memref<256x256xbf16, #tpu.memory_space<vmem>>, vector<256x256xbf16>
    %cst_14 = arith.constant dense<0.000000e+00> : vector<16x256xf32>
    %19 = tpu.matmul %17, %18, %cst_14 {dimension_numbers = #tpu.dot_dimension_numbers<[1], [0], [0], [1], [0, 0, 1, 1], [], []>} : vector<16x256xbf16>, vector<256x256xbf16>, vector<16x256xf32> -> vector<16x256xf32>
    %20 = vector.broadcast %0 : vector<1x256xf32> to vector<16x256xf32>
    %21 = arith.addf %19, %20 : vector<16x256xf32>
    %cst_15 = arith.constant 0.000000e+00 : f32
    %22 = vector.broadcast %cst_15 : f32 to vector<16x256xf32>
    %23 = arith.maximumf %21, %22 : vector<16x256xf32>
    %24 = arith.truncf %23 : vector<16x256xf32> to vector<16x256xbf16>
    %c0_16 = arith.constant 0 : index
    %c384 = arith.constant 384 : index
    %25 = vector.load %arg1[%c0_16, %c384] : memref<16x1024xbf16, #tpu.memory_space<vmem>>, vector<16x256xbf16>
    %c0_17 = arith.constant 0 : index
    %c0_18 = arith.constant 0 : index
    %26 = vector.load %arg2[%c0_17, %c0_18] : memref<256x256xbf16, #tpu.memory_space<vmem>>, vector<256x256xbf16>
    %cst_19 = arith.constant dense<0.000000e+00> : vector<16x256xf32>
    %27 = tpu.matmul %25, %26, %cst_19 {dimension_numbers = #tpu.dot_dimension_numbers<[1], [0], [0], [1], [0, 0, 1, 1], [], []>} : vector<16x256xbf16>, vector<256x256xbf16>, vector<16x256xf32> -> vector<16x256xf32>
    %28 = vector.broadcast %0 : vector<1x256xf32> to vector<16x256xf32>
    %29 = arith.addf %27, %28 : vector<16x256xf32>
    %cst_20 = arith.constant 0.000000e+00 : f32
    %30 = vector.broadcast %cst_20 : f32 to vector<16x256xf32>
    %31 = arith.maximumf %29, %30 : vector<16x256xf32>
    %32 = arith.truncf %31 : vector<16x256xf32> to vector<16x256xbf16>
    %c0_21 = arith.constant 0 : index
    %c512 = arith.constant 512 : index
    %33 = vector.load %arg1[%c0_21, %c512] : memref<16x1024xbf16, #tpu.memory_space<vmem>>, vector<16x256xbf16>
    %c0_22 = arith.constant 0 : index
    %c0_23 = arith.constant 0 : index
    %34 = vector.load %arg2[%c0_22, %c0_23] : memref<256x256xbf16, #tpu.memory_space<vmem>>, vector<256x256xbf16>
    %cst_24 = arith.constant dense<0.000000e+00> : vector<16x256xf32>
    %35 = tpu.matmul %33, %34, %cst_24 {dimension_numbers = #tpu.dot_dimension_numbers<[1], [0], [0], [1], [0, 0, 1, 1], [], []>} : vector<16x256xbf16>, vector<256x256xbf16>, vector<16x256xf32> -> vector<16x256xf32>
    %36 = vector.broadcast %0 : vector<1x256xf32> to vector<16x256xf32>
    %37 = arith.addf %35, %36 : vector<16x256xf32>
    %cst_25 = arith.constant 0.000000e+00 : f32
    %38 = vector.broadcast %cst_25 : f32 to vector<16x256xf32>
    %39 = arith.maximumf %37, %38 : vector<16x256xf32>
    %40 = arith.truncf %39 : vector<16x256xf32> to vector<16x256xbf16>
    %c0_26 = arith.constant 0 : index
    %c640 = arith.constant 640 : index
    %41 = vector.load %arg1[%c0_26, %c640] : memref<16x1024xbf16, #tpu.memory_space<vmem>>, vector<16x256xbf16>
    %c0_27 = arith.constant 0 : index
    %c0_28 = arith.constant 0 : index
    %42 = vector.load %arg2[%c0_27, %c0_28] : memref<256x256xbf16, #tpu.memory_space<vmem>>, vector<256x256xbf16>
    %cst_29 = arith.constant dense<0.000000e+00> : vector<16x256xf32>
    %43 = tpu.matmul %41, %42, %cst_29 {dimension_numbers = #tpu.dot_dimension_numbers<[1], [0], [0], [1], [0, 0, 1, 1], [], []>} : vector<16x256xbf16>, vector<256x256xbf16>, vector<16x256xf32> -> vector<16x256xf32>
    %44 = vector.broadcast %0 : vector<1x256xf32> to vector<16x256xf32>
    %45 = arith.addf %43, %44 : vector<16x256xf32>
    %cst_30 = arith.constant 0.000000e+00 : f32
    %46 = vector.broadcast %cst_30 : f32 to vector<16x256xf32>
    %47 = arith.maximumf %45, %46 : vector<16x256xf32>
    %48 = arith.truncf %47 : vector<16x256xf32> to vector<16x256xbf16>
    %c0_31 = arith.constant 0 : index
    %c768 = arith.constant 768 : index
    %49 = vector.load %arg1[%c0_31, %c768] : memref<16x1024xbf16, #tpu.memory_space<vmem>>, vector<16x256xbf16>
    %c0_32 = arith.constant 0 : index
    %c0_33 = arith.constant 0 : index
    %50 = vector.load %arg2[%c0_32, %c0_33] : memref<256x256xbf16, #tpu.memory_space<vmem>>, vector<256x256xbf16>
    %cst_34 = arith.constant dense<0.000000e+00> : vector<16x256xf32>
    %51 = tpu.matmul %49, %50, %cst_34 {dimension_numbers = #tpu.dot_dimension_numbers<[1], [0], [0], [1], [0, 0, 1, 1], [], []>} : vector<16x256xbf16>, vector<256x256xbf16>, vector<16x256xf32> -> vector<16x256xf32>
    %52 = vector.broadcast %0 : vector<1x256xf32> to vector<16x256xf32>
    %53 = arith.addf %51, %52 : vector<16x256xf32>
    %cst_35 = arith.constant 0.000000e+00 : f32
    %54 = vector.broadcast %cst_35 : f32 to vector<16x256xf32>
    %55 = arith.maximumf %53, %54 : vector<16x256xf32>
    %56 = arith.truncf %55 : vector<16x256xf32> to vector<16x256xbf16>
    %c0_36 = arith.constant 0 : index
    %c0_37 = arith.constant 0 : index
    %57 = vector.load %arg5[%c0_36, %c0_37] : memref<1x128xf32, #tpu.memory_space<vmem>>, vector<1x128xf32>
    %c0_38 = arith.constant 0 : index
    %c0_39 = arith.constant 0 : index
    %c0_40 = arith.constant 0 : index
    %58 = vector.load %arg4[%c0_38, %c0_39, %c0_40] : memref<3x256x128xbf16, #tpu.memory_space<vmem>>, vector<1x256x128xbf16>
    %59 = vector.shape_cast %58 : vector<1x256x128xbf16> to vector<256x128xbf16>
    %cst_41 = arith.constant dense<0.000000e+00> : vector<16x128xf32>
    %60 = tpu.matmul %8, %59, %cst_41 {dimension_numbers = #tpu.dot_dimension_numbers<[1], [0], [0], [1], [0, 0, 1, 1], [], []>} : vector<16x256xbf16>, vector<256x128xbf16>, vector<16x128xf32> -> vector<16x128xf32>
    %61 = vector.broadcast %57 : vector<1x128xf32> to vector<16x128xf32>
    %62 = arith.addf %61, %60 : vector<16x128xf32>
    %c1 = arith.constant 1 : index
    %c0_42 = arith.constant 0 : index
    %c0_43 = arith.constant 0 : index
    %63 = vector.load %arg4[%c1, %c0_42, %c0_43] : memref<3x256x128xbf16, #tpu.memory_space<vmem>>, vector<1x256x128xbf16>
    %64 = vector.shape_cast %63 : vector<1x256x128xbf16> to vector<256x128xbf16>
    %cst_44 = arith.constant dense<0.000000e+00> : vector<16x128xf32>
    %65 = tpu.matmul %16, %64, %cst_44 {dimension_numbers = #tpu.dot_dimension_numbers<[1], [0], [0], [1], [0, 0, 1, 1], [], []>} : vector<16x256xbf16>, vector<256x128xbf16>, vector<16x128xf32> -> vector<16x128xf32>
    %66 = arith.addf %62, %65 : vector<16x128xf32>
    %c2 = arith.constant 2 : index
    %c0_45 = arith.constant 0 : index
    %c0_46 = arith.constant 0 : index
    %67 = vector.load %arg4[%c2, %c0_45, %c0_46] : memref<3x256x128xbf16, #tpu.memory_space<vmem>>, vector<1x256x128xbf16>
    %68 = vector.shape_cast %67 : vector<1x256x128xbf16> to vector<256x128xbf16>
    %cst_47 = arith.constant dense<0.000000e+00> : vector<16x128xf32>
    %69 = tpu.matmul %24, %68, %cst_47 {dimension_numbers = #tpu.dot_dimension_numbers<[1], [0], [0], [1], [0, 0, 1, 1], [], []>} : vector<16x256xbf16>, vector<256x128xbf16>, vector<16x128xf32> -> vector<16x128xf32>
    %70 = arith.addf %66, %69 : vector<16x128xf32>
    %cst_48 = arith.constant 0.000000e+00 : f32
    %71 = vector.broadcast %cst_48 : f32 to vector<16x128xf32>
    %72 = arith.maximumf %70, %71 : vector<16x128xf32>
    %73 = arith.truncf %72 : vector<16x128xf32> to vector<16x128xbf16>
    %c0_49 = arith.constant 0 : index
    %c0_50 = arith.constant 0 : index
    %c0_51 = arith.constant 0 : index
    %74 = vector.load %arg4[%c0_49, %c0_50, %c0_51] : memref<3x256x128xbf16, #tpu.memory_space<vmem>>, vector<1x256x128xbf16>
    %75 = vector.shape_cast %74 : vector<1x256x128xbf16> to vector<256x128xbf16>
    %cst_52 = arith.constant dense<0.000000e+00> : vector<16x128xf32>
    %76 = tpu.matmul %24, %75, %cst_52 {dimension_numbers = #tpu.dot_dimension_numbers<[1], [0], [0], [1], [0, 0, 1, 1], [], []>} : vector<16x256xbf16>, vector<256x128xbf16>, vector<16x128xf32> -> vector<16x128xf32>
    %77 = vector.broadcast %57 : vector<1x128xf32> to vector<16x128xf32>
    %78 = arith.addf %77, %76 : vector<16x128xf32>
    %c1_53 = arith.constant 1 : index
    %c0_54 = arith.constant 0 : index
    %c0_55 = arith.constant 0 : index
    %79 = vector.load %arg4[%c1_53, %c0_54, %c0_55] : memref<3x256x128xbf16, #tpu.memory_space<vmem>>, vector<1x256x128xbf16>
    %80 = vector.shape_cast %79 : vector<1x256x128xbf16> to vector<256x128xbf16>
    %cst_56 = arith.constant dense<0.000000e+00> : vector<16x128xf32>
    %81 = tpu.matmul %32, %80, %cst_56 {dimension_numbers = #tpu.dot_dimension_numbers<[1], [0], [0], [1], [0, 0, 1, 1], [], []>} : vector<16x256xbf16>, vector<256x128xbf16>, vector<16x128xf32> -> vector<16x128xf32>
    %82 = arith.addf %78, %81 : vector<16x128xf32>
    %c2_57 = arith.constant 2 : index
    %c0_58 = arith.constant 0 : index
    %c0_59 = arith.constant 0 : index
    %83 = vector.load %arg4[%c2_57, %c0_58, %c0_59] : memref<3x256x128xbf16, #tpu.memory_space<vmem>>, vector<1x256x128xbf16>
    %84 = vector.shape_cast %83 : vector<1x256x128xbf16> to vector<256x128xbf16>
    %cst_60 = arith.constant dense<0.000000e+00> : vector<16x128xf32>
    %85 = tpu.matmul %40, %84, %cst_60 {dimension_numbers = #tpu.dot_dimension_numbers<[1], [0], [0], [1], [0, 0, 1, 1], [], []>} : vector<16x256xbf16>, vector<256x128xbf16>, vector<16x128xf32> -> vector<16x128xf32>
    %86 = arith.addf %82, %85 : vector<16x128xf32>
    %cst_61 = arith.constant 0.000000e+00 : f32
    %87 = vector.broadcast %cst_61 : f32 to vector<16x128xf32>
    %88 = arith.maximumf %86, %87 : vector<16x128xf32>
    %89 = arith.truncf %88 : vector<16x128xf32> to vector<16x128xbf16>
    %c0_62 = arith.constant 0 : index
    %c0_63 = arith.constant 0 : index
    %c0_64 = arith.constant 0 : index
    %90 = vector.load %arg4[%c0_62, %c0_63, %c0_64] : memref<3x256x128xbf16, #tpu.memory_space<vmem>>, vector<1x256x128xbf16>
    %91 = vector.shape_cast %90 : vector<1x256x128xbf16> to vector<256x128xbf16>
    %cst_65 = arith.constant dense<0.000000e+00> : vector<16x128xf32>
    %92 = tpu.matmul %40, %91, %cst_65 {dimension_numbers = #tpu.dot_dimension_numbers<[1], [0], [0], [1], [0, 0, 1, 1], [], []>} : vector<16x256xbf16>, vector<256x128xbf16>, vector<16x128xf32> -> vector<16x128xf32>
    %93 = vector.broadcast %57 : vector<1x128xf32> to vector<16x128xf32>
    %94 = arith.addf %93, %92 : vector<16x128xf32>
    %c1_66 = arith.constant 1 : index
    %c0_67 = arith.constant 0 : index
    %c0_68 = arith.constant 0 : index
    %95 = vector.load %arg4[%c1_66, %c0_67, %c0_68] : memref<3x256x128xbf16, #tpu.memory_space<vmem>>, vector<1x256x128xbf16>
    %96 = vector.shape_cast %95 : vector<1x256x128xbf16> to vector<256x128xbf16>
    %cst_69 = arith.constant dense<0.000000e+00> : vector<16x128xf32>
    %97 = tpu.matmul %48, %96, %cst_69 {dimension_numbers = #tpu.dot_dimension_numbers<[1], [0], [0], [1], [0, 0, 1, 1], [], []>} : vector<16x256xbf16>, vector<256x128xbf16>, vector<16x128xf32> -> vector<16x128xf32>
    %98 = arith.addf %94, %97 : vector<16x128xf32>
    %c2_70 = arith.constant 2 : index
    %c0_71 = arith.constant 0 : index
    %c0_72 = arith.constant 0 : index
    %99 = vector.load %arg4[%c2_70, %c0_71, %c0_72] : memref<3x256x128xbf16, #tpu.memory_space<vmem>>, vector<1x256x128xbf16>
    %100 = vector.shape_cast %99 : vector<1x256x128xbf16> to vector<256x128xbf16>
    %cst_73 = arith.constant dense<0.000000e+00> : vector<16x128xf32>
    %101 = tpu.matmul %56, %100, %cst_73 {dimension_numbers = #tpu.dot_dimension_numbers<[1], [0], [0], [1], [0, 0, 1, 1], [], []>} : vector<16x256xbf16>, vector<256x128xbf16>, vector<16x128xf32> -> vector<16x128xf32>
    %102 = arith.addf %98, %101 : vector<16x128xf32>
    %cst_74 = arith.constant 0.000000e+00 : f32
    %103 = vector.broadcast %cst_74 : f32 to vector<16x128xf32>
    %104 = arith.maximumf %102, %103 : vector<16x128xf32>
    %105 = arith.truncf %104 : vector<16x128xf32> to vector<16x128xbf16>
    %c0_75 = arith.constant 0 : index
    %c0_76 = arith.constant 0 : index
    %106 = vector.load %arg7[%c0_75, %c0_76] : memref<1x128xf32, #tpu.memory_space<vmem>>, vector<1x128xf32>
    %c0_77 = arith.constant 0 : index
    %c0_78 = arith.constant 0 : index
    %c0_79 = arith.constant 0 : index
    %107 = vector.load %arg6[%c0_77, %c0_78, %c0_79] : memref<3x128x128xbf16, #tpu.memory_space<vmem>>, vector<1x128x128xbf16>
    %108 = vector.shape_cast %107 : vector<1x128x128xbf16> to vector<128x128xbf16>
    %cst_80 = arith.constant dense<0.000000e+00> : vector<16x128xf32>
    %109 = tpu.matmul %73, %108, %cst_80 {dimension_numbers = #tpu.dot_dimension_numbers<[1], [0], [0], [1], [0, 0, 1, 1], [], []>} : vector<16x128xbf16>, vector<128x128xbf16>, vector<16x128xf32> -> vector<16x128xf32>
    %110 = vector.broadcast %106 : vector<1x128xf32> to vector<16x128xf32>
    %111 = arith.addf %110, %109 : vector<16x128xf32>
    %c1_81 = arith.constant 1 : index
    %c0_82 = arith.constant 0 : index
    %c0_83 = arith.constant 0 : index
    %112 = vector.load %arg6[%c1_81, %c0_82, %c0_83] : memref<3x128x128xbf16, #tpu.memory_space<vmem>>, vector<1x128x128xbf16>
    %113 = vector.shape_cast %112 : vector<1x128x128xbf16> to vector<128x128xbf16>
    %cst_84 = arith.constant dense<0.000000e+00> : vector<16x128xf32>
    %114 = tpu.matmul %89, %113, %cst_84 {dimension_numbers = #tpu.dot_dimension_numbers<[1], [0], [0], [1], [0, 0, 1, 1], [], []>} : vector<16x128xbf16>, vector<128x128xbf16>, vector<16x128xf32> -> vector<16x128xf32>
    %115 = arith.addf %111, %114 : vector<16x128xf32>
    %c2_85 = arith.constant 2 : index
    %c0_86 = arith.constant 0 : index
    %c0_87 = arith.constant 0 : index
    %116 = vector.load %arg6[%c2_85, %c0_86, %c0_87] : memref<3x128x128xbf16, #tpu.memory_space<vmem>>, vector<1x128x128xbf16>
    %117 = vector.shape_cast %116 : vector<1x128x128xbf16> to vector<128x128xbf16>
    %cst_88 = arith.constant dense<0.000000e+00> : vector<16x128xf32>
    %118 = tpu.matmul %105, %117, %cst_88 {dimension_numbers = #tpu.dot_dimension_numbers<[1], [0], [0], [1], [0, 0, 1, 1], [], []>} : vector<16x128xbf16>, vector<128x128xbf16>, vector<16x128xf32> -> vector<16x128xf32>
    %119 = arith.addf %115, %118 : vector<16x128xf32>
    %cst_89 = arith.constant 0.000000e+00 : f32
    %120 = vector.broadcast %cst_89 : f32 to vector<16x128xf32>
    %121 = arith.maximumf %119, %120 : vector<16x128xf32>
    %122 = arith.truncf %121 : vector<16x128xf32> to vector<16x128xbf16>
    %c0_90 = arith.constant 0 : index
    %c0_91 = arith.constant 0 : index
    %123 = vector.load %arg9[%c0_90, %c0_91] : memref<1x128xf32, #tpu.memory_space<vmem>>, vector<1x128xf32>
    %c0_92 = arith.constant 0 : index
    %c0_93 = arith.constant 0 : index
    %c0_94 = arith.constant 0 : index
    %124 = vector.load %arg8[%c0_92, %c0_93, %c0_94] : memref<1x128x128xbf16, #tpu.memory_space<vmem>>, vector<1x128x128xbf16>
    %125 = vector.shape_cast %124 : vector<1x128x128xbf16> to vector<128x128xbf16>
    %cst_95 = arith.constant dense<0.000000e+00> : vector<16x128xf32>
    %126 = tpu.matmul %122, %125, %cst_95 {dimension_numbers = #tpu.dot_dimension_numbers<[1], [0], [0], [1], [0, 0, 1, 1], [], []>} : vector<16x128xbf16>, vector<128x128xbf16>, vector<16x128xf32> -> vector<16x128xf32>
    %127 = vector.broadcast %123 : vector<1x128xf32> to vector<16x128xf32>
    %128 = arith.addf %127, %126 : vector<16x128xf32>
    %129 = math.tanh %128 : vector<16x128xf32>
    %130 = arith.truncf %129 : vector<16x128xf32> to vector<16x128xbf16>
    %c0_96 = arith.constant 0 : index
    %c0_97 = arith.constant 0 : index
    %131 = vector.load %arg10[%c0_96, %c0_97] : memref<128x128xbf16, #tpu.memory_space<vmem>>, vector<128x128xbf16>
    %cst_98 = arith.constant dense<0.000000e+00> : vector<16x128xf32>
    %132 = tpu.matmul %130, %131, %cst_98 {dimension_numbers = #tpu.dot_dimension_numbers<[1], [0], [0], [1], [0, 0, 1, 1], [], []>} : vector<16x128xbf16>, vector<128x128xbf16>, vector<16x128xf32> -> vector<16x128xf32>
    %c0_99 = arith.constant 0 : index
    %c0_100 = arith.constant 0 : index
    %133 = vector.load %arg11[%c0_99, %c0_100] : memref<1x128xf32, #tpu.memory_space<vmem>>, vector<1x128xf32>
    %134 = vector.broadcast %133 : vector<1x128xf32> to vector<16x128xf32>
    %135 = arith.addf %132, %134 : vector<16x128xf32>
    %136 = tpu.iota {dimensions = array<i32: 1>} : vector<16x128xi32>
    %c5_i32 = arith.constant 5 : i32
    %137 = vector.broadcast %c5_i32 : i32 to vector<16x128xi32>
    %138 = arith.cmpi slt, %136, %137 : vector<16x128xi32>
    %cst_101 = arith.constant -1.000000e+30 : f32
    %139 = vector.broadcast %cst_101 : f32 to vector<16x128xf32>
    %140 = arith.select %138, %135, %139 : vector<16x128xi1>, vector<16x128xf32>
    %cst_102 = arith.constant dense<0xFF800000> : vector<16xf32>
    %141 = vector.multi_reduction <maximumf>, %140, %cst_102 [1] : vector<16x128xf32> to vector<16xf32>
    %142 = vector.shape_cast %141 : vector<16xf32> to vector<16x1xf32>
    %143 = vector.broadcast %142 : vector<16x1xf32> to vector<16x128xf32>
    %144 = arith.subf %140, %143 : vector<16x128xf32>
    %145 = math.exp %144 : vector<16x128xf32>
    %cst_103 = arith.constant dense<0.000000e+00> : vector<16xf32>
    %146 = vector.multi_reduction <add>, %145, %cst_103 [1] : vector<16x128xf32> to vector<16xf32>
    %147 = vector.shape_cast %146 : vector<16xf32> to vector<16x1xf32>
    %cst_104 = arith.constant 1.000000e+00 : f32
    %148 = vector.broadcast %cst_104 : f32 to vector<16x1xf32>
    %149 = arith.divf %148, %147 : vector<16x1xf32>
    %150 = vector.broadcast %149 : vector<16x1xf32> to vector<16x128xf32>
    %151 = arith.mulf %145, %150 : vector<16x128xf32>
    %c5_i32_105 = arith.constant 5 : i32
    %152 = vector.broadcast %c5_i32_105 : i32 to vector<16x128xi32>
    %153 = arith.cmpi slt, %136, %152 : vector<16x128xi32>
    %c5_i32_106 = arith.constant 5 : i32
    %154 = vector.broadcast %c5_i32_106 : i32 to vector<16x128xi32>
    %155 = arith.cmpi eq, %136, %154 : vector<16x128xi32>
    %cst_107 = arith.constant 0.000000e+00 : f32
    %156 = vector.broadcast %cst_107 : f32 to vector<16x128xf32>
    %157 = arith.select %155, %135, %156 : vector<16x128xi1>, vector<16x128xf32>
    %158 = arith.select %153, %151, %157 : vector<16x128xi1>, vector<16x128xf32>
    %c0_108 = arith.constant 0 : index
    %c0_109 = arith.constant 0 : index
    %159 = vector.load %arg12[%c0_108, %c0_109] : memref<16x128xf32, #tpu.memory_space<vmem>>, vector<16x128xf32>
    tpu.vector_store %arg12[%c0_108, %c0_109], %158 {strides = array<i32>} : memref<16x128xf32, #tpu.memory_space<vmem>>, vector<16x128xf32>,
    return
  }
  func.func @transform_0(%arg0: i32) -> (i32, i32) {
    %c0_i32 = arith.constant 0 : i32
    %c0_i32_0 = arith.constant 0 : i32
    return %arg0, %c0_i32 : i32, i32
  }
  func.func @transform_1(%arg0: i32) -> (i32, i32) {
    %c0_i32 = arith.constant 0 : i32
    %c0_i32_0 = arith.constant 0 : i32
    %c0_i32_1 = arith.constant 0 : i32
    return %c0_i32, %c0_i32_0 : i32, i32
  }
  func.func @transform_2(%arg0: i32) -> (i32, i32) {
    %c0_i32 = arith.constant 0 : i32
    %c0_i32_0 = arith.constant 0 : i32
    %c0_i32_1 = arith.constant 0 : i32
    return %c0_i32, %c0_i32_0 : i32, i32
  }
  func.func @transform_3(%arg0: i32) -> (i32, i32, i32) {
    %c0_i32 = arith.constant 0 : i32
    %c0_i32_0 = arith.constant 0 : i32
    %c0_i32_1 = arith.constant 0 : i32
    %c0_i32_2 = arith.constant 0 : i32
    return %c0_i32, %c0_i32_0, %c0_i32_1 : i32, i32, i32
  }
  func.func @transform_4(%arg0: i32) -> (i32, i32) {
    %c0_i32 = arith.constant 0 : i32
    %c0_i32_0 = arith.constant 0 : i32
    %c0_i32_1 = arith.constant 0 : i32
    return %c0_i32, %c0_i32_0 : i32, i32
  }
  func.func @transform_5(%arg0: i32) -> (i32, i32, i32) {
    %c0_i32 = arith.constant 0 : i32
    %c0_i32_0 = arith.constant 0 : i32
    %c0_i32_1 = arith.constant 0 : i32
    %c0_i32_2 = arith.constant 0 : i32
    return %c0_i32, %c0_i32_0, %c0_i32_1 : i32, i32, i32
  }
  func.func @transform_6(%arg0: i32) -> (i32, i32) {
    %c0_i32 = arith.constant 0 : i32
    %c0_i32_0 = arith.constant 0 : i32
    %c0_i32_1 = arith.constant 0 : i32
    return %c0_i32, %c0_i32_0 : i32, i32
  }
  func.func @transform_7(%arg0: i32) -> (i32, i32, i32) {
    %c0_i32 = arith.constant 0 : i32
    %c0_i32_0 = arith.constant 0 : i32
    %c0_i32_1 = arith.constant 0 : i32
    %c0_i32_2 = arith.constant 0 : i32
    return %c0_i32, %c0_i32_0, %c0_i32_1 : i32, i32, i32
  }
  func.func @transform_8(%arg0: i32) -> (i32, i32) {
    %c0_i32 = arith.constant 0 : i32
    %c0_i32_0 = arith.constant 0 : i32
    %c0_i32_1 = arith.constant 0 : i32
    return %c0_i32, %c0_i32_0 : i32, i32
  }
  func.func @transform_9(%arg0: i32) -> (i32, i32) {
    %c0_i32 = arith.constant 0 : i32
    %c0_i32_0 = arith.constant 0 : i32
    %c0_i32_1 = arith.constant 0 : i32
    return %c0_i32, %c0_i32_0 : i32, i32
  }
  func.func @transform_10(%arg0: i32) -> (i32, i32) {
    %c0_i32 = arith.constant 0 : i32
    %c0_i32_0 = arith.constant 0 : i32
    %c0_i32_1 = arith.constant 0 : i32
    return %c0_i32, %c0_i32_0 : i32, i32
  }
  func.func @transform_11(%arg0: i32) -> (i32, i32) {
    %c0_i32 = arith.constant 0 : i32
    %c0_i32_0 = arith.constant 0 : i32
    return %arg0, %c0_i32 : i32, i32
  }
}

</mosaic_0001>

<llo_original>
// kernel: tpu_custom_call.1
$region0: #{tpu_custom_call.1}
  #allocation0 [shape = 'u32[]', space=smem, size = 0x4, offset = 0x4, fixed_abs, tag = 'smem constant byte address 0x4 - core index']
  #allocation1 [shape = 'u32[144,128]{1,0:T(1,128)}', space=vmem, size = 0x12000, scoped, tag = 'internal scratch']
  %s0 = inlined_call_operand.hbm [shape: bf16[16,1024], index: 0, kind: input, shape index: {}]
  %s1 = inlined_call_operand.hbm [shape: bf16[256,256], index: 1, kind: input, shape index: {}]
  %s2 = inlined_call_operand.vmem [shape: f32[1,256], index: 2, kind: input, shape index: {}]
  %s3 = inlined_call_operand.hbm [shape: bf16[3,256,128], index: 3, kind: input, shape index: {}]
  %s4 = inlined_call_operand.vmem [shape: f32[1,128], index: 4, kind: input, shape index: {}]
  %s5 = inlined_call_operand.hbm [shape: bf16[3,128,128], index: 5, kind: input, shape index: {}]
  %s6 = inlined_call_operand.vmem [shape: f32[1,128], index: 6, kind: input, shape index: {}]
  %s7 = inlined_call_operand.hbm [shape: bf16[1,128,128], index: 7, kind: input, shape index: {}]
  %s8 = inlined_call_operand.vmem [shape: f32[1,128], index: 8, kind: input, shape index: {}]
  %s9 = inlined_call_operand.hbm [shape: bf16[128,128], index: 9, kind: input, shape index: {}]
  %s10 = inlined_call_operand.vmem [shape: f32[1,128], index: 10, kind: input, shape index: {}]
  %s11 = inlined_call_operand.hbm [shape: f32[16,128], index: 11, kind: output, shape index: {}]
  %s12 = sld [smem:[#allocation0]]
  $region78: #{tpu_custom_call.1} parent=0
    _
  %s14 = ssub.s32 1, %s12
  %s15 = scalar_select 0, %s14, %s12
  $region1: #{tpu_custom_call.1} parent=0
    #allocation2 [shape = 'u8[32768]{0}', space=vmem, size = 0x8000, scoped, tag = 'input window, operand 0, single buffered']
    #allocation3 [shape = 's32[1]{0}', space=sflag, size = 0x4, scoped, tag = 'scoped memory for tpu_custom_call.1']
    #allocation4 [shape = 's32[1]{0}', space=sflag, size = 0x4, scoped, tag = 'scoped memory for tpu_custom_call.1']
    #allocation5 [shape = 'u8[131072]{0}', space=vmem, size = 0x20000, scoped, tag = 'input window, operand 1, single buffered']
    #allocation6 [shape = 's32[1]{0}', space=sflag, size = 0x4, scoped, tag = 'scoped memory for tpu_custom_call.1']
    #allocation7 [shape = 'u8[196608]{0}', space=vmem, size = 0x30000, scoped, tag = 'input window, operand 3, single buffered']
    #allocation8 [shape = 'u8[98304]{0}', space=vmem, size = 0x18000, scoped, tag = 'input window, operand 5, single buffered']
    #allocation9 [shape = 's32[1]{0}', space=sflag, size = 0x4, scoped, tag = 'scoped memory for tpu_custom_call.1']
    #allocation10 [shape = 'u8[32768]{0}', space=vmem, size = 0x8000, scoped, tag = 'input window, operand 7, single buffered']
    #allocation11 [shape = 'u8[32768]{0}', space=vmem, size = 0x8000, scoped, tag = 'input window, operand 9, single buffered']
    #allocation12 [shape = 's32[1]{0}', space=sflag, size = 0x4, scoped, tag = 'scoped memory for tpu_custom_call.1']
    #allocation13 [shape = 'u8[8192]{0}', space=vmem, size = 0x2000, scoped, tag = 'output window, operand 0, single buffered']
    %16 = vsyncpa [#allocation3], 0
    %17 = vsyncpa [#allocation6], 0
    %18 = vsyncpa [#allocation9], 0
    %19 = vsyncpa [#allocation12], 0
    %20 = vsyncpa [#allocation4], 0
    // Predicated region
    $region2: #{tpu_custom_call.1} parent=1 // pred_check
      _
    $region3: #{tpu_custom_call.1} parent=1 // pred_check_branch
      %22 = sbr.rel (0) target = $region5
    $region4: #{tpu_custom_call.1} parent=1 // pred_region
      %s24 = ssub.s32 1024, 1024
      %25 = vsyncadd [#allocation3], %s24
      %s26 = sshll.u32 [#allocation2], 4
      %s27 = int_to_ptr.vmem [resolvable:$true] %s26
      %32 = dma.hbm_to_vmem [thread:$0]  %s0, 1024, %s27, [#allocation3], 512, 512, 32
    $region5: #{tpu_custom_call.1} parent=1 // pred_fallthru
      _
    // Predicated region
    $region6: #{tpu_custom_call.1} parent=1 // pred_check
      _
    $region7: #{tpu_custom_call.1} parent=1 // pred_check_branch
      %34 = sbr.rel (0) target = $region9
    $region8: #{tpu_custom_call.1} parent=1 // pred_region
      %s36 = ssub.s32 4096, 4096
      %37 = vsyncadd [#allocation6], %s36
      %s38 = sshll.u32 [#allocation5], 4
      %s39 = int_to_ptr.vmem [resolvable:$true] %s38
      %44 = dma.hbm_to_vmem [thread:$0]  %s1, 4096, %s39, [#allocation6], 128, 128, 8
    $region9: #{tpu_custom_call.1} parent=1 // pred_fallthru
      _
    // Predicated region
    $region10: #{tpu_custom_call.1} parent=1 // pred_check
      _
    $region11: #{tpu_custom_call.1} parent=1 // pred_check_branch
      %46 = sbr.rel (0) target = $region13
    $region12: #{tpu_custom_call.1} parent=1 // pred_region
      _
    $region13: #{tpu_custom_call.1} parent=1 // pred_fallthru
      _
    // Predicated region
    $region14: #{tpu_custom_call.1} parent=1 // pred_check
      _
    $region15: #{tpu_custom_call.1} parent=1 // pred_check_branch
      %48 = sbr.rel (0) target = $region17
    $region16: #{tpu_custom_call.1} parent=1 // pred_region
      %s50 = ssub.s32 6144, 6144
      %51 = vsyncadd [#allocation6], %s50
      %s52 = sshll.u32 [#allocation7], 4
      %s53 = int_to_ptr.vmem [resolvable:$true] %s52
      %58 = dma.hbm_to_vmem [thread:$0]  %s3, 6144, %s53, [#allocation6], 64, 64, 4
    $region17: #{tpu_custom_call.1} parent=1 // pred_fallthru
      _
    // Predicated region
    $region18: #{tpu_custom_call.1} parent=1 // pred_check
      _
    $region19: #{tpu_custom_call.1} parent=1 // pred_check_branch
      %60 = sbr.rel (0) target = $region21
    $region20: #{tpu_custom_call.1} parent=1 // pred_region
      _
    $region21: #{tpu_custom_call.1} parent=1 // pred_fallthru
      _
    // Predicated region
    $region22: #{tpu_custom_call.1} parent=1 // pred_check
      _
    $region23: #{tpu_custom_call.1} parent=1 // pred_check_branch
      %62 = sbr.rel (0) target = $region25
    $region24: #{tpu_custom_call.1} parent=1 // pred_region
      %s64 = ssub.s32 3072, 3072
      %65 = vsyncadd [#allocation9], %s64
      %s66 = sshll.u32 [#allocation8], 4
      %s67 = int_to_ptr.vmem [resolvable:$true] %s66
      %72 = dma.hbm_to_vmem [thread:$0]  %s5, 3072, %s67, [#allocation9], 64, 64, 4
    $region25: #{tpu_custom_call.1} parent=1 // pred_fallthru
      _
    // Predicated region
    $region26: #{tpu_custom_call.1} parent=1 // pred_check
      _
    $region27: #{tpu_custom_call.1} parent=1 // pred_check_branch
      %74 = sbr.rel (0) target = $region29
    $region28: #{tpu_custom_call.1} parent=1 // pred_region
      _
    $region29: #{tpu_custom_call.1} parent=1 // pred_fallthru
      _
    // Predicated region
    $region30: #{tpu_custom_call.1} parent=1 // pred_check
      _
    $region31: #{tpu_custom_call.1} parent=1 // pred_check_branch
      %76 = sbr.rel (0) target = $region33
    $region32: #{tpu_custom_call.1} parent=1 // pred_region
      %s78 = ssub.s32 1024, 1024
      %79 = vsyncadd [#allocation9], %s78
      %s80 = sshll.u32 [#allocation10], 4
      %s81 = int_to_ptr.vmem [resolvable:$true] %s80
      %86 = dma.hbm_to_vmem [thread:$0]  %s7, 1024, %s81, [#allocation9], 64, 64, 4
    $region33: #{tpu_custom_call.1} parent=1 // pred_fallthru
      _
    // Predicated region
    $region34: #{tpu_custom_call.1} parent=1 // pred_check
      _
    $region35: #{tpu_custom_call.1} parent=1 // pred_check_branch
      %88 = sbr.rel (0) target = $region37
    $region36: #{tpu_custom_call.1} parent=1 // pred_region
      _
    $region37: #{tpu_custom_call.1} parent=1 // pred_fallthru
      _
    // Predicated region
    $region38: #{tpu_custom_call.1} parent=1 // pred_check
      _
    $region39: #{tpu_custom_call.1} parent=1 // pred_check_branch
      %90 = sbr.rel (0) target = $region41
    $region40: #{tpu_custom_call.1} parent=1 // pred_region
      %s92 = ssub.s32 1024, 1024
      %93 = vsyncadd [#allocation12], %s92
      %s94 = sshll.u32 [#allocation11], 4
      %s95 = int_to_ptr.vmem [resolvable:$true] %s94
      %100 = dma.hbm_to_vmem [thread:$0]  %s9, 1024, %s95, [#allocation12], 64, 64, 4
    $region41: #{tpu_custom_call.1} parent=1 // pred_fallthru
      _
    // Predicated region
    $region42: #{tpu_custom_call.1} parent=1 // pred_check
      _
    $region43: #{tpu_custom_call.1} parent=1 // pred_check_branch
      %102 = sbr.rel (0) target = $region45
    $region44: #{tpu_custom_call.1} parent=1 // pred_region
      _
    $region45: #{tpu_custom_call.1} parent=1 // pred_fallthru
      _
    // Predicated region
    $region46: #{tpu_custom_call.1} parent=1 // pred_check
      _
    $region47: #{tpu_custom_call.1} parent=1 // pred_check_branch
      %104 = sbr.rel (0) target = $region49
    $region48: #{tpu_custom_call.1} parent=1 // pred_region
      %105 = dma.done [#allocation3], 1024
    $region49: #{tpu_custom_call.1} parent=1 // pred_fallthru
      _
    // Predicated region
    $region50: #{tpu_custom_call.1} parent=1 // pred_check
      _
    $region51: #{tpu_custom_call.1} parent=1 // pred_check_branch
      %107 = sbr.rel (0) target = $region53
    $region52: #{tpu_custom_call.1} parent=1 // pred_region
      %108 = dma.done [#allocation6], 4096
    $region53: #{tpu_custom_call.1} parent=1 // pred_fallthru
      _
    // Predicated region
    $region54: #{tpu_custom_call.1} parent=1 // pred_check
      _
    $region55: #{tpu_custom_call.1} parent=1 // pred_check_branch
      %110 = sbr.rel (0) target = $region57
    $region56: #{tpu_custom_call.1} parent=1 // pred_region
      %111 = dma.done [#allocation6], 6144
    $region57: #{tpu_custom_call.1} parent=1 // pred_fallthru
      _
    // Predicated region
    $region58: #{tpu_custom_call.1} parent=1 // pred_check
      _
    $region59: #{tpu_custom_call.1} parent=1 // pred_check_branch
      %113 = sbr.rel (0) target = $region61
    $region60: #{tpu_custom_call.1} parent=1 // pred_region
      %114 = dma.done [#allocation9], 3072
    $region61: #{tpu_custom_call.1} parent=1 // pred_fallthru
      _
    // Predicated region
    $region62: #{tpu_custom_call.1} parent=1 // pred_check
      _
    $region63: #{tpu_custom_call.1} parent=1 // pred_check_branch
      %116 = sbr.rel (0) target = $region65
    $region64: #{tpu_custom_call.1} parent=1 // pred_region
      %117 = dma.done [#allocation9], 1024
    $region65: #{tpu_custom_call.1} parent=1 // pred_fallthru
      _
    // Predicated region
    $region66: #{tpu_custom_call.1} parent=1 // pred_check
      _
    $region67: #{tpu_custom_call.1} parent=1 // pred_check_branch
      %119 = sbr.rel (0) target = $region69
    $region68: #{tpu_custom_call.1} parent=1 // pred_region
      %120 = dma.done [#allocation12], 1024
    $region69: #{tpu_custom_call.1} parent=1 // pred_fallthru
      _
    %v122 = vld [vmem:[%s2] sm:$0x3]
    %v123 = vld [vmem:[#allocation2] sm:$0xff]
    %v124 = vld [vmem:[#allocation2 + $0x20] sm:$0xff]
    %v125 = vld [vmem:[#allocation5] sm:$0xff]
    %v126 = vld [vmem:[#allocation5 + $0x8] sm:$0xff]
    %v127 = vld [vmem:[#allocation5 + $0x10] sm:$0xff]
    %v128 = vld [vmem:[#allocation5 + $0x18] sm:$0xff]
    %v129 = vld [vmem:[#allocation5 + $0x20] sm:$0xff]
    %v130 = vld [vmem:[#allocation5 + $0x28] sm:$0xff]
    %v131 = vld [vmem:[#allocation5 + $0x30] sm:$0xff]
    %v132 = vld [vmem:[#allocation5 + $0x38] sm:$0xff]
    %v133 = vld [vmem:[#allocation5 + $0x40] sm:$0xff]
    %v134 = vld [vmem:[#allocation5 + $0x48] sm:$0xff]
    %v135 = vld [vmem:[#allocation5 + $0x50] sm:$0xff]
    %v136 = vld [vmem:[#allocation5 + $0x58] sm:$0xff]
    %v137 = vld [vmem:[#allocation5 + $0x60] sm:$0xff]
    %v138 = vld [vmem:[#allocation5 + $0x68] sm:$0xff]
    %v139 = vld [vmem:[#allocation5 + $0x70] sm:$0xff]
    %v140 = vld [vmem:[#allocation5 + $0x78] sm:$0xff]
    %v141 = vld [vmem:[#allocation5 + $0x80] sm:$0xff]
    %v142 = vld [vmem:[#allocation5 + $0x88] sm:$0xff]
    %v143 = vld [vmem:[#allocation5 + $0x90] sm:$0xff]
    %v144 = vld [vmem:[#allocation5 + $0x98] sm:$0xff]
    %v145 = vld [vmem:[#allocation5 + $0xa0] sm:$0xff]
    %v146 = vld [vmem:[#allocation5 + $0xa8] sm:$0xff]
    %v147 = vld [vmem:[#allocation5 + $0xb0] sm:$0xff]
    %v148 = vld [vmem:[#allocation5 + $0xb8] sm:$0xff]
    %v149 = vld [vmem:[#allocation5 + $0xc0] sm:$0xff]
    %v150 = vld [vmem:[#allocation5 + $0xc8] sm:$0xff]
    %v151 = vld [vmem:[#allocation5 + $0xd0] sm:$0xff]
    %v152 = vld [vmem:[#allocation5 + $0xd8] sm:$0xff]
    %v153 = vld [vmem:[#allocation5 + $0xe0] sm:$0xff]
    %v154 = vld [vmem:[#allocation5 + $0xe8] sm:$0xff]
    %v155 = vld [vmem:[#allocation5 + $0xf0] sm:$0xff]
    %v156 = vld [vmem:[#allocation5 + $0xf8] sm:$0xff]
    %v158 = vlaneseq
    %v159 = vshrl.u32 %v158, 7
    %v160 = vsub.s32 0, %v159
    %v161 = vrot.slane %v122, %v160
    %v162 = vlaneseq
    %v163 = vshrl.u32 %v162, 7
    %v164 = vsub.s32 1, %v163
    %v165 = vrot.slane %v122, %v164
    %v170 = vunpack.c.l.b16 %v123
    %v171 = vunpack.c.h.b16 %v123
    %v172 = vunpack.c.l.b16 %v124
    %v173 = vunpack.c.h.b16 %v124
    %v174 = vpack.c.b16 %v172, %v170
    %v175 = vpack.c.b16 %v173, %v171
    %v210 = vunpack.c.l.b16 %v125
    %v211 = vunpack.c.h.b16 %v125
    %v212 = vunpack.c.l.b16 %v126
    %v213 = vunpack.c.h.b16 %v126
    %v214 = vunpack.c.l.b16 %v127
    %v215 = vunpack.c.h.b16 %v127
    %v216 = vunpack.c.l.b16 %v128
    %v217 = vunpack.c.h.b16 %v128
    %v218 = vunpack.c.l.b16 %v129
    %v219 = vunpack.c.h.b16 %v129
    %v220 = vunpack.c.l.b16 %v130
    %v221 = vunpack.c.h.b16 %v130
    %v222 = vunpack.c.l.b16 %v131
    %v223 = vunpack.c.h.b16 %v131
    %v224 = vunpack.c.l.b16 %v132
    %v225 = vunpack.c.h.b16 %v132
    %v226 = vunpack.c.l.b16 %v133
    %v227 = vunpack.c.h.b16 %v133
    %v228 = vunpack.c.l.b16 %v134
    %v229 = vunpack.c.h.b16 %v134
    %v230 = vunpack.c.l.b16 %v135
    %v231 = vunpack.c.h.b16 %v135
    %v232 = vunpack.c.l.b16 %v136
    %v233 = vunpack.c.h.b16 %v136
    %v234 = vunpack.c.l.b16 %v137
    %v235 = vunpack.c.h.b16 %v137
    %v236 = vunpack.c.l.b16 %v138
    %v237 = vunpack.c.h.b16 %v138
    %v238 = vunpack.c.l.b16 %v139
    %v239 = vunpack.c.h.b16 %v139
    %v240 = vunpack.c.l.b16 %v140
    %v241 = vunpack.c.h.b16 %v140
    %v242 = vunpack.c.l.b16 %v141
    %v243 = vunpack.c.h.b16 %v141
    %v244 = vunpack.c.l.b16 %v142
    %v245 = vunpack.c.h.b16 %v142
    %v246 = vunpack.c.l.b16 %v143
    %v247 = vunpack.c.h.b16 %v143
    %v248 = vunpack.c.l.b16 %v144
    %v249 = vunpack.c.h.b16 %v144
    %v250 = vunpack.c.l.b16 %v145
    %v251 = vunpack.c.h.b16 %v145
    %v252 = vunpack.c.l.b16 %v146
    %v253 = vunpack.c.h.b16 %v146
    %v254 = vunpack.c.l.b16 %v147
    %v255 = vunpack.c.h.b16 %v147
    %v256 = vunpack.c.l.b16 %v148
    %v257 = vunpack.c.h.b16 %v148
    %v258 = vunpack.c.l.b16 %v149
    %v259 = vunpack.c.h.b16 %v149
    %v260 = vunpack.c.l.b16 %v150
    %v261 = vunpack.c.h.b16 %v150
    %v262 = vunpack.c.l.b16 %v151
    %v263 = vunpack.c.h.b16 %v151
    %v264 = vunpack.c.l.b16 %v152
    %v265 = vunpack.c.h.b16 %v152
    %v266 = vunpack.c.l.b16 %v153
    %v267 = vunpack.c.h.b16 %v153
    %v268 = vunpack.c.l.b16 %v154
    %v269 = vunpack.c.h.b16 %v154
    %v270 = vunpack.c.l.b16 %v155
    %v271 = vunpack.c.h.b16 %v155
    %v272 = vunpack.c.l.b16 %v156
    %v273 = vunpack.c.h.b16 %v156
    %v274 = vpack.c.b16 %v212, %v210
    %v275 = vpack.c.b16 %v213, %v211
    %v276 = vpack.c.b16 %v216, %v214
    %v277 = vpack.c.b16 %v217, %v215
    %v278 = vpack.c.b16 %v220, %v218
    %v279 = vpack.c.b16 %v221, %v219
    %v280 = vpack.c.b16 %v224, %v222
    %v281 = vpack.c.b16 %v225, %v223
    %v282 = vpack.c.b16 %v228, %v226
    %v283 = vpack.c.b16 %v229, %v227
    %v284 = vpack.c.b16 %v232, %v230
    %v285 = vpack.c.b16 %v233, %v231
    %v286 = vpack.c.b16 %v236, %v234
    %v287 = vpack.c.b16 %v237, %v235
    %v288 = vpack.c.b16 %v240, %v238
    %v289 = vpack.c.b16 %v241, %v239
    %v290 = vpack.c.b16 %v244, %v242
    %v291 = vpack.c.b16 %v245, %v243
    %v292 = vpack.c.b16 %v248, %v246
    %v293 = vpack.c.b16 %v249, %v247
    %v294 = vpack.c.b16 %v252, %v250
    %v295 = vpack.c.b16 %v253, %v251
    %v296 = vpack.c.b16 %v256, %v254
    %v297 = vpack.c.b16 %v257, %v255
    %v298 = vpack.c.b16 %v260, %v258
    %v299 = vpack.c.b16 %v261, %v259
    %v300 = vpack.c.b16 %v264, %v262
    %v301 = vpack.c.b16 %v265, %v263
    %v302 = vpack.c.b16 %v268, %v266
    %v303 = vpack.c.b16 %v269, %v267
    %v304 = vpack.c.b16 %v272, %v270
    %v305 = vpack.c.b16 %v273, %v271
    %338 = vmatprep.subr.bf16.mxu0 %v289
    %339 = vmatpush1.bf16.msra.mxu0 %v288
    %340 = vmatprep.subr.bf16.mxu0 %v287
    %341 = vmatpush1.bf16.msra.mxu0 %v286
    %342 = vmatprep.subr.bf16.mxu0 %v285
    %343 = vmatpush1.bf16.msra.mxu0 %v284
    %344 = vmatprep.subr.bf16.mxu0 %v283
    %345 = vmatpush1.bf16.msra.mxu0 %v282
    %346 = vmatprep.subr.bf16.mxu0 %v281
    %347 = vmatpush1.bf16.msra.mxu0 %v280
    %348 = vmatprep.subr.bf16.mxu0 %v279
    %349 = vmatpush1.bf16.msra.mxu0 %v278
    %350 = vmatprep.subr.bf16.mxu0 %v277
    %351 = vmatpush1.bf16.msra.mxu0 %v276
    %352 = vmatprep.subr.bf16.mxu0 %v275
    %353 = vmatpush1.bf16.msra.mxu0 %v274
    %354 = vmatprep.subr.bf16.mxu0 %v305
    %355 = vmatpush2.bf16.msra.mxu0 %v304
    %356 = vmatprep.subr.bf16.mxu0 %v303
    %357 = vmatpush2.bf16.msra.mxu0 %v302
    %358 = vmatprep.subr.bf16.mxu0 %v301
    %359 = vmatpush2.bf16.msra.mxu0 %v300
    %360 = vmatprep.subr.bf16.mxu0 %v299
    %361 = vmatpush2.bf16.msra.mxu0 %v298
    %362 = vmatprep.subr.bf16.mxu0 %v297
    %363 = vmatpush2.bf16.msra.mxu0 %v296
    %364 = vmatprep.subr.bf16.mxu0 %v295
    %365 = vmatpush2.bf16.msra.mxu0 %v294
    %366 = vmatprep.subr.bf16.mxu0 %v293
    %367 = vmatpush2.bf16.msra.mxu0 %v292
    %368 = vmatprep.subr.bf16.mxu0 %v291
    %369 = vmatpush2.bf16.msra.mxu0 %v290
    %370 = vmatprep.mubr.bf16.mxu0 %v175
    %371 = vmatmul.mubr.bf16.gmra.mxu0 %v174
    %v372 = vpop.f32.mrf.mxu0
    %v373 = vadd.f32 %v161, %v372
    %v374 = vpop.f32.mrf.mxu0
    %v375 = vadd.f32 %v165, %v374
    %v376 = vpop.f32.mrf.mxu0
    %v377 = vadd.f32 %v161, %v376
    %v378 = vpop.f32.mrf.mxu0
    %v379 = vadd.f32 %v165, %v378
    %380 = vdwg.mxu0
    %v381 = vmax.f32 %v373, 0.0
    %v382 = vmax.f32 %v375, 0.0
    %v383 = vmax.f32 %v377, 0.0
    %v384 = vmax.f32 %v379, 0.0
    %v385 = vpack.c.bf16 %v383, %v381
    %v386 = vpack.c.bf16 %v384, %v382
    %v387 = vld [vmem:[#allocation2 + $0x4] sm:$0xff]
    %v388 = vld [vmem:[#allocation2 + $0x24] sm:$0xff]
    %v391 = vunpack.c.l.b16 %v387
    %v392 = vunpack.c.h.b16 %v387
    %v393 = vunpack.c.l.b16 %v388
    %v394 = vunpack.c.h.b16 %v388
    %v395 = vpack.c.b16 %v393, %v391
    %v396 = vpack.c.b16 %v394, %v392
    %399 = vmatprep.subr.bf16.mxu0 %v289
    %400 = vmatpush1.bf16.msra.mxu0 %v288
    %401 = vmatprep.subr.bf16.mxu0 %v287
    %402 = vmatpush1.bf16.msra.mxu0 %v286
    %403 = vmatprep.subr.bf16.mxu0 %v285
    %404 = vmatpush1.bf16.msra.mxu0 %v284
    %405 = vmatprep.subr.bf16.mxu0 %v283
    %406 = vmatpush1.bf16.msra.mxu0 %v282
    %407 = vmatprep.subr.bf16.mxu0 %v281
    %408 = vmatpush1.bf16.msra.mxu0 %v280
    %409 = vmatprep.subr.bf16.mxu0 %v279
    %410 = vmatpush1.bf16.msra.mxu0 %v278
    %411 = vmatprep.subr.bf16.mxu0 %v277
    %412 = vmatpush1.bf16.msra.mxu0 %v276
    %413 = vmatprep.subr.bf16.mxu0 %v275
    %414 = vmatpush1.bf16.msra.mxu0 %v274
    %415 = vmatprep.subr.bf16.mxu0 %v305
    %416 = vmatpush2.bf16.msra.mxu0 %v304
    %417 = vmatprep.subr.bf16.mxu0 %v303
    %418 = vmatpush2.bf16.msra.mxu0 %v302
    %419 = vmatprep.subr.bf16.mxu0 %v301
    %420 = vmatpush2.bf16.msra.mxu0 %v300
    %421 = vmatprep.subr.bf16.mxu0 %v299
    %422 = vmatpush2.bf16.msra.mxu0 %v298
    %423 = vmatprep.subr.bf16.mxu0 %v297
    %424 = vmatpush2.bf16.msra.mxu0 %v296
    %425 = vmatprep.subr.bf16.mxu0 %v295
    %426 = vmatpush2.bf16.msra.mxu0 %v294
    %427 = vmatprep.subr.bf16.mxu0 %v293
    %428 = vmatpush2.bf16.msra.mxu0 %v292
    %429 = vmatprep.subr.bf16.mxu0 %v291
    %430 = vmatpush2.bf16.msra.mxu0 %v290
    %431 = vmatprep.mubr.bf16.mxu0 %v396
    %432 = vmatmul.mubr.bf16.gmra.mxu0 %v395
    %v433 = vpop.f32.mrf.mxu0
    %v434 = vadd.f32 %v161, %v433
    %v435 = vpop.f32.mrf.mxu0
    %v436 = vadd.f32 %v165, %v435
    %v437 = vpop.f32.mrf.mxu0
    %v438 = vadd.f32 %v161, %v437
    %v439 = vpop.f32.mrf.mxu0
    %v440 = vadd.f32 %v165, %v439
    %441 = vdwg.mxu0
    %v442 = vmax.f32 %v434, 0.0
    %v443 = vmax.f32 %v436, 0.0
    %v444 = vmax.f32 %v438, 0.0
    %v445 = vmax.f32 %v440, 0.0
    %v446 = vpack.c.bf16 %v444, %v442
    %v447 = vpack.c.bf16 %v445, %v443
    %v448 = vld [vmem:[#allocation2 + $0x8] sm:$0xff]
    %v449 = vld [vmem:[#allocation2 + $0x28] sm:$0xff]
    %v452 = vunpack.c.l.b16 %v448
    %v453 = vunpack.c.h.b16 %v448
    %v454 = vunpack.c.l.b16 %v449
    %v455 = vunpack.c.h.b16 %v449
    %v456 = vpack.c.b16 %v454, %v452
    %v457 = vpack.c.b16 %v455, %v453
    %460 = vmatprep.subr.bf16.mxu0 %v289
    %461 = vmatpush1.bf16.msra.mxu0 %v288
    %462 = vmatprep.subr.bf16.mxu0 %v287
    %463 = vmatpush1.bf16.msra.mxu0 %v286
    %464 = vmatprep.subr.bf16.mxu0 %v285
    %465 = vmatpush1.bf16.msra.mxu0 %v284
    %466 = vmatprep.subr.bf16.mxu0 %v283
    %467 = vmatpush1.bf16.msra.mxu0 %v282
    %468 = vmatprep.subr.bf16.mxu0 %v281
    %469 = vmatpush1.bf16.msra.mxu0 %v280
    %470 = vmatprep.subr.bf16.mxu0 %v279
    %471 = vmatpush1.bf16.msra.mxu0 %v278
    %472 = vmatprep.subr.bf16.mxu0 %v277
    %473 = vmatpush1.bf16.msra.mxu0 %v276
    %474 = vmatprep.subr.bf16.mxu0 %v275
    %475 = vmatpush1.bf16.msra.mxu0 %v274
    %476 = vmatprep.subr.bf16.mxu0 %v305
    %477 = vmatpush2.bf16.msra.mxu0 %v304
    %478 = vmatprep.subr.bf16.mxu0 %v303
    %479 = vmatpush2.bf16.msra.mxu0 %v302
    %480 = vmatprep.subr.bf16.mxu0 %v301
    %481 = vmatpush2.bf16.msra.mxu0 %v300
    %482 = vmatprep.subr.bf16.mxu0 %v299
    %483 = vmatpush2.bf16.msra.mxu0 %v298
    %484 = vmatprep.subr.bf16.mxu0 %v297
    %485 = vmatpush2.bf16.msra.mxu0 %v296
    %486 = vmatprep.subr.bf16.mxu0 %v295
    %487 = vmatpush2.bf16.msra.mxu0 %v294
    %488 = vmatprep.subr.bf16.mxu0 %v293
    %489 = vmatpush2.bf16.msra.mxu0 %v292
    %490 = vmatprep.subr.bf16.mxu0 %v291
    %491 = vmatpush2.bf16.msra.mxu0 %v290
    %492 = vmatprep.mubr.bf16.mxu0 %v457
    %493 = vmatmul.mubr.bf16.gmra.mxu0 %v456
    %v494 = vpop.f32.mrf.mxu0
    %v495 = vadd.f32 %v161, %v494
    %v496 = vpop.f32.mrf.mxu0
    %v497 = vadd.f32 %v165, %v496
    %v498 = vpop.f32.mrf.mxu0
    %v499 = vadd.f32 %v161, %v498
    %v500 = vpop.f32.mrf.mxu0
    %v501 = vadd.f32 %v165, %v500
    %502 = vdwg.mxu0
    %v503 = vmax.f32 %v495, 0.0
    %v504 = vmax.f32 %v497, 0.0
    %v505 = vmax.f32 %v499, 0.0
    %v506 = vmax.f32 %v501, 0.0
    %v507 = vpack.c.bf16 %v505, %v503
    %v508 = vpack.c.bf16 %v506, %v504
    %v509 = vld [vmem:[#allocation2 + $0xc] sm:$0xff]
    %v510 = vld [vmem:[#allocation2 + $0x2c] sm:$0xff]
    %v513 = vunpack.c.l.b16 %v509
    %v514 = vunpack.c.h.b16 %v509
    %v515 = vunpack.c.l.b16 %v510
    %v516 = vunpack.c.h.b16 %v510
    %v517 = vpack.c.b16 %v515, %v513
    %v518 = vpack.c.b16 %v516, %v514
    %521 = vmatprep.subr.bf16.mxu0 %v289
    %522 = vmatpush1.bf16.msra.mxu0 %v288
    %523 = vmatprep.subr.bf16.mxu0 %v287
    %524 = vmatpush1.bf16.msra.mxu0 %v286
    %525 = vmatprep.subr.bf16.mxu0 %v285
    %526 = vmatpush1.bf16.msra.mxu0 %v284
    %527 = vmatprep.subr.bf16.mxu0 %v283
    %528 = vmatpush1.bf16.msra.mxu0 %v282
    %529 = vmatprep.subr.bf16.mxu0 %v281
    %530 = vmatpush1.bf16.msra.mxu0 %v280
    %531 = vmatprep.subr.bf16.mxu0 %v279
    %532 = vmatpush1.bf16.msra.mxu0 %v278
    %533 = vmatprep.subr.bf16.mxu0 %v277
    %534 = vmatpush1.bf16.msra.mxu0 %v276
    %535 = vmatprep.subr.bf16.mxu0 %v275
    %536 = vmatpush1.bf16.msra.mxu0 %v274
    %537 = vmatprep.subr.bf16.mxu0 %v305
    %538 = vmatpush2.bf16.msra.mxu0 %v304
    %539 = vmatprep.subr.bf16.mxu0 %v303
    %540 = vmatpush2.bf16.msra.mxu0 %v302
    %541 = vmatprep.subr.bf16.mxu0 %v301
    %542 = vmatpush2.bf16.msra.mxu0 %v300
    %543 = vmatprep.subr.bf16.mxu0 %v299
    %544 = vmatpush2.bf16.msra.mxu0 %v298
    %545 = vmatprep.subr.bf16.mxu0 %v297
    %546 = vmatpush2.bf16.msra.mxu0 %v296
    %547 = vmatprep.subr.bf16.mxu0 %v295
    %548 = vmatpush2.bf16.msra.mxu0 %v294
    %549 = vmatprep.subr.bf16.mxu0 %v293
    %550 = vmatpush2.bf16.msra.mxu0 %v292
    %551 = vmatprep.subr.bf16.mxu0 %v291
    %552 = vmatpush2.bf16.msra.mxu0 %v290
    %553 = vmatprep.mubr.bf16.mxu0 %v518
    %554 = vmatmul.mubr.bf16.gmra.mxu0 %v517
    %v555 = vpop.f32.mrf.mxu0
    %v556 = vadd.f32 %v161, %v555
    %v557 = vpop.f32.mrf.mxu0
    %v558 = vadd.f32 %v165, %v557
    %v559 = vpop.f32.mrf.mxu0
    %v560 = vadd.f32 %v161, %v559
    %v561 = vpop.f32.mrf.mxu0
    %v562 = vadd.f32 %v165, %v561
    %563 = vdwg.mxu0
    %v564 = vmax.f32 %v556, 0.0
    %v565 = vmax.f32 %v558, 0.0
    %v566 = vmax.f32 %v560, 0.0
    %v567 = vmax.f32 %v562, 0.0
    %v568 = vpack.c.bf16 %v566, %v564
    %v569 = vpack.c.bf16 %v567, %v565
    %v570 = vld [vmem:[#allocation2 + $0x10] sm:$0xff]
    %v571 = vld [vmem:[#allocation2 + $0x30] sm:$0xff]
    %v574 = vunpack.c.l.b16 %v570
    %v575 = vunpack.c.h.b16 %v570
    %v576 = vunpack.c.l.b16 %v571
    %v577 = vunpack.c.h.b16 %v571
    %v578 = vpack.c.b16 %v576, %v574
    %v579 = vpack.c.b16 %v577, %v575
    %582 = vmatprep.subr.bf16.mxu0 %v289
    %583 = vmatpush1.bf16.msra.mxu0 %v288
    %584 = vmatprep.subr.bf16.mxu0 %v287
    %585 = vmatpush1.bf16.msra.mxu0 %v286
    %586 = vmatprep.subr.bf16.mxu0 %v285
    %587 = vmatpush1.bf16.msra.mxu0 %v284
    %588 = vmatprep.subr.bf16.mxu0 %v283
    %589 = vmatpush1.bf16.msra.mxu0 %v282
    %590 = vmatprep.subr.bf16.mxu0 %v281
    %591 = vmatpush1.bf16.msra.mxu0 %v280
    %592 = vmatprep.subr.bf16.mxu0 %v279
    %593 = vmatpush1.bf16.msra.mxu0 %v278
    %594 = vmatprep.subr.bf16.mxu0 %v277
    %595 = vmatpush1.bf16.msra.mxu0 %v276
    %596 = vmatprep.subr.bf16.mxu0 %v275
    %597 = vmatpush1.bf16.msra.mxu0 %v274
    %598 = vmatprep.subr.bf16.mxu0 %v305
    %599 = vmatpush2.bf16.msra.mxu0 %v304
    %600 = vmatprep.subr.bf16.mxu0 %v303
    %601 = vmatpush2.bf16.msra.mxu0 %v302
    %602 = vmatprep.subr.bf16.mxu0 %v301
    %603 = vmatpush2.bf16.msra.mxu0 %v300
    %604 = vmatprep.subr.bf16.mxu0 %v299
    %605 = vmatpush2.bf16.msra.mxu0 %v298
    %606 = vmatprep.subr.bf16.mxu0 %v297
    %607 = vmatpush2.bf16.msra.mxu0 %v296
    %608 = vmatprep.subr.bf16.mxu0 %v295
    %609 = vmatpush2.bf16.msra.mxu0 %v294
    %610 = vmatprep.subr.bf16.mxu0 %v293
    %611 = vmatpush2.bf16.msra.mxu0 %v292
    %612 = vmatprep.subr.bf16.mxu0 %v291
    %613 = vmatpush2.bf16.msra.mxu0 %v290
    %614 = vmatprep.mubr.bf16.mxu0 %v579
    %615 = vmatmul.mubr.bf16.gmra.mxu0 %v578
    %v616 = vpop.f32.mrf.mxu0
    %v617 = vadd.f32 %v161, %v616
    %v618 = vpop.f32.mrf.mxu0
    %v619 = vadd.f32 %v165, %v618
    %v620 = vpop.f32.mrf.mxu0
    %v621 = vadd.f32 %v161, %v620
    %v622 = vpop.f32.mrf.mxu0
    %v623 = vadd.f32 %v165, %v622
    %624 = vdwg.mxu0
    %v625 = vmax.f32 %v617, 0.0
    %v626 = vmax.f32 %v619, 0.0
    %v627 = vmax.f32 %v621, 0.0
    %v628 = vmax.f32 %v623, 0.0
    %v629 = vpack.c.bf16 %v627, %v625
    %v630 = vpack.c.bf16 %v628, %v626
    %v631 = vld [vmem:[#allocation2 + $0x14] sm:$0xff]
    %v632 = vld [vmem:[#allocation2 + $0x34] sm:$0xff]
    %v635 = vunpack.c.l.b16 %v631
    %v636 = vunpack.c.h.b16 %v631
    %v637 = vunpack.c.l.b16 %v632
    %v638 = vunpack.c.h.b16 %v632
    %v639 = vpack.c.b16 %v637, %v635
    %v640 = vpack.c.b16 %v638, %v636
    %643 = vmatprep.subr.bf16.mxu0 %v289
    %644 = vmatpush1.bf16.msra.mxu0 %v288
    %645 = vmatprep.subr.bf16.mxu0 %v287
    %646 = vmatpush1.bf16.msra.mxu0 %v286
    %647 = vmatprep.subr.bf16.mxu0 %v285
    %648 = vmatpush1.bf16.msra.mxu0 %v284
    %649 = vmatprep.subr.bf16.mxu0 %v283
    %650 = vmatpush1.bf16.msra.mxu0 %v282
    %651 = vmatprep.subr.bf16.mxu0 %v281
    %652 = vmatpush1.bf16.msra.mxu0 %v280
    %653 = vmatprep.subr.bf16.mxu0 %v279
    %654 = vmatpush1.bf16.msra.mxu0 %v278
    %655 = vmatprep.subr.bf16.mxu0 %v277
    %656 = vmatpush1.bf16.msra.mxu0 %v276
    %657 = vmatprep.subr.bf16.mxu0 %v275
    %658 = vmatpush1.bf16.msra.mxu0 %v274
    %659 = vmatprep.subr.bf16.mxu0 %v305
    %660 = vmatpush2.bf16.msra.mxu0 %v304
    %661 = vmatprep.subr.bf16.mxu0 %v303
    %662 = vmatpush2.bf16.msra.mxu0 %v302
    %663 = vmatprep.subr.bf16.mxu0 %v301
    %664 = vmatpush2.bf16.msra.mxu0 %v300
    %665 = vmatprep.subr.bf16.mxu0 %v299
    %666 = vmatpush2.bf16.msra.mxu0 %v298
    %667 = vmatprep.subr.bf16.mxu0 %v297
    %668 = vmatpush2.bf16.msra.mxu0 %v296
    %669 = vmatprep.subr.bf16.mxu0 %v295
    %670 = vmatpush2.bf16.msra.mxu0 %v294
    %671 = vmatprep.subr.bf16.mxu0 %v293
    %672 = vmatpush2.bf16.msra.mxu0 %v292
    %673 = vmatprep.subr.bf16.mxu0 %v291
    %674 = vmatpush2.bf16.msra.mxu0 %v290
    %675 = vmatprep.mubr.bf16.mxu0 %v640
    %676 = vmatmul.mubr.bf16.gmra.mxu0 %v639
    %v677 = vpop.f32.mrf.mxu0
    %v678 = vadd.f32 %v161, %v677
    %v679 = vpop.f32.mrf.mxu0
    %v680 = vadd.f32 %v165, %v679
    %v681 = vpop.f32.mrf.mxu0
    %v682 = vadd.f32 %v161, %v681
    %v683 = vpop.f32.mrf.mxu0
    %v684 = vadd.f32 %v165, %v683
    %685 = vdwg.mxu0
    %v686 = vmax.f32 %v678, 0.0
    %v687 = vmax.f32 %v680, 0.0
    %v688 = vmax.f32 %v682, 0.0
    %v689 = vmax.f32 %v684, 0.0
    %v690 = vpack.c.bf16 %v688, %v686
    %v691 = vpack.c.bf16 %v689, %v687
    %v692 = vld [vmem:[#allocation2 + $0x18] sm:$0xff]
    %v693 = vld [vmem:[#allocation2 + $0x38] sm:$0xff]
    %v696 = vunpack.c.l.b16 %v692
    %v697 = vunpack.c.h.b16 %v692
    %v698 = vunpack.c.l.b16 %v693
    %v699 = vunpack.c.h.b16 %v693
    %v700 = vpack.c.b16 %v698, %v696
    %v701 = vpack.c.b16 %v699, %v697
    %704 = vmatprep.subr.bf16.mxu0 %v289
    %705 = vmatpush1.bf16.msra.mxu0 %v288
    %706 = vmatprep.subr.bf16.mxu0 %v287
    %707 = vmatpush1.bf16.msra.mxu0 %v286
    %708 = vmatprep.subr.bf16.mxu0 %v285
    %709 = vmatpush1.bf16.msra.mxu0 %v284
    %710 = vmatprep.subr.bf16.mxu0 %v283
    %711 = vmatpush1.bf16.msra.mxu0 %v282
    %712 = vmatprep.subr.bf16.mxu0 %v281
    %713 = vmatpush1.bf16.msra.mxu0 %v280
    %714 = vmatprep.subr.bf16.mxu0 %v279
    %715 = vmatpush1.bf16.msra.mxu0 %v278
    %716 = vmatprep.subr.bf16.mxu0 %v277
    %717 = vmatpush1.bf16.msra.mxu0 %v276
    %718 = vmatprep.subr.bf16.mxu0 %v275
    %719 = vmatpush1.bf16.msra.mxu0 %v274
    %720 = vmatprep.subr.bf16.mxu0 %v305
    %721 = vmatpush2.bf16.msra.mxu0 %v304
    %722 = vmatprep.subr.bf16.mxu0 %v303
    %723 = vmatpush2.bf16.msra.mxu0 %v302
    %724 = vmatprep.subr.bf16.mxu0 %v301
    %725 = vmatpush2.bf16.msra.mxu0 %v300
    %726 = vmatprep.subr.bf16.mxu0 %v299
    %727 = vmatpush2.bf16.msra.mxu0 %v298
    %728 = vmatprep.subr.bf16.mxu0 %v297
    %729 = vmatpush2.bf16.msra.mxu0 %v296
    %730 = vmatprep.subr.bf16.mxu0 %v295
    %731 = vmatpush2.bf16.msra.mxu0 %v294
    %732 = vmatprep.subr.bf16.mxu0 %v293
    %733 = vmatpush2.bf16.msra.mxu0 %v292
    %734 = vmatprep.subr.bf16.mxu0 %v291
    %735 = vmatpush2.bf16.msra.mxu0 %v290
    %736 = vmatprep.mubr.bf16.mxu0 %v701
    %737 = vmatmul.mubr.bf16.gmra.mxu0 %v700
    %v738 = vpop.f32.mrf.mxu0
    %v739 = vadd.f32 %v161, %v738
    %v740 = vpop.f32.mrf.mxu0
    %v741 = vadd.f32 %v165, %v740
    %v742 = vpop.f32.mrf.mxu0
    %v743 = vadd.f32 %v161, %v742
    %v744 = vpop.f32.mrf.mxu0
    %v745 = vadd.f32 %v165, %v744
    %746 = vdwg.mxu0
    %v747 = vmax.f32 %v739, 0.0
    %v748 = vmax.f32 %v741, 0.0
    %v749 = vmax.f32 %v743, 0.0
    %v750 = vmax.f32 %v745, 0.0
    %v751 = vpack.c.bf16 %v749, %v747
    %v752 = vpack.c.bf16 %v750, %v748
    %v753 = vld [vmem:[%s4] sm:$0x1]
    %v754 = vld [vmem:[#allocation7] sm:$0xf]
    %v755 = vld [vmem:[#allocation7 + $0x4] sm:$0xf]
    %v756 = vld [vmem:[#allocation7 + $0x8] sm:$0xf]
    %v757 = vld [vmem:[#allocation7 + $0xc] sm:$0xf]
    %v758 = vld [vmem:[#allocation7 + $0x10] sm:$0xf]
    %v759 = vld [vmem:[#allocation7 + $0x14] sm:$0xf]
    %v760 = vld [vmem:[#allocation7 + $0x18] sm:$0xf]
    %v761 = vld [vmem:[#allocation7 + $0x1c] sm:$0xf]
    %v762 = vld [vmem:[#allocation7 + $0x20] sm:$0xf]
    %v763 = vld [vmem:[#allocation7 + $0x24] sm:$0xf]
    %v764 = vld [vmem:[#allocation7 + $0x28] sm:$0xf]
    %v765 = vld [vmem:[#allocation7 + $0x2c] sm:$0xf]
    %v766 = vld [vmem:[#allocation7 + $0x30] sm:$0xf]
    %v767 = vld [vmem:[#allocation7 + $0x34] sm:$0xf]
    %v768 = vld [vmem:[#allocation7 + $0x38] sm:$0xf]
    %v769 = vld [vmem:[#allocation7 + $0x3c] sm:$0xf]
    %v770 = vld [vmem:[#allocation7 + $0x40] sm:$0xf]
    %v771 = vld [vmem:[#allocation7 + $0x44] sm:$0xf]
    %v772 = vld [vmem:[#allocation7 + $0x48] sm:$0xf]
    %v773 = vld [vmem:[#allocation7 + $0x4c] sm:$0xf]
    %v774 = vld [vmem:[#allocation7 + $0x50] sm:$0xf]
    %v775 = vld [vmem:[#allocation7 + $0x54] sm:$0xf]
    %v776 = vld [vmem:[#allocation7 + $0x58] sm:$0xf]
    %v777 = vld [vmem:[#allocation7 + $0x5c] sm:$0xf]
    %v778 = vld [vmem:[#allocation7 + $0x60] sm:$0xf]
    %v779 = vld [vmem:[#allocation7 + $0x64] sm:$0xf]
    %v780 = vld [vmem:[#allocation7 + $0x68] sm:$0xf]
    %v781 = vld [vmem:[#allocation7 + $0x6c] sm:$0xf]
    %v782 = vld [vmem:[#allocation7 + $0x70] sm:$0xf]
    %v783 = vld [vmem:[#allocation7 + $0x74] sm:$0xf]
    %v784 = vld [vmem:[#allocation7 + $0x78] sm:$0xf]
    %v785 = vld [vmem:[#allocation7 + $0x7c] sm:$0xf]
    %v818 = vunpack.c.l.b16 %v754
    %v819 = vunpack.c.l.b16 %v755
    %v820 = vunpack.c.l.b16 %v756
    %v821 = vunpack.c.l.b16 %v757
    %v822 = vunpack.c.l.b16 %v758
    %v823 = vunpack.c.l.b16 %v759
    %v824 = vunpack.c.l.b16 %v760
    %v825 = vunpack.c.l.b16 %v761
    %v826 = vunpack.c.l.b16 %v762
    %v827 = vunpack.c.l.b16 %v763
    %v828 = vunpack.c.l.b16 %v764
    %v829 = vunpack.c.l.b16 %v765
    %v830 = vunpack.c.l.b16 %v766
    %v831 = vunpack.c.l.b16 %v767
    %v832 = vunpack.c.l.b16 %v768
    %v833 = vunpack.c.l.b16 %v769
    %v834 = vunpack.c.l.b16 %v770
    %v835 = vunpack.c.l.b16 %v771
    %v836 = vunpack.c.l.b16 %v772
    %v837 = vunpack.c.l.b16 %v773
    %v838 = vunpack.c.l.b16 %v774
    %v839 = vunpack.c.l.b16 %v775
    %v840 = vunpack.c.l.b16 %v776
    %v841 = vunpack.c.l.b16 %v777
    %v842 = vunpack.c.l.b16 %v778
    %v843 = vunpack.c.l.b16 %v779
    %v844 = vunpack.c.l.b16 %v780
    %v845 = vunpack.c.l.b16 %v781
    %v846 = vunpack.c.l.b16 %v782
    %v847 = vunpack.c.l.b16 %v783
    %v848 = vunpack.c.l.b16 %v784
    %v849 = vunpack.c.l.b16 %v785
    %v850 = vpack.c.b16 %v819, %v818
    %v851 = vpack.c.b16 %v821, %v820
    %v852 = vpack.c.b16 %v823, %v822
    %v853 = vpack.c.b16 %v825, %v824
    %v854 = vpack.c.b16 %v827, %v826
    %v855 = vpack.c.b16 %v829, %v828
    %v856 = vpack.c.b16 %v831, %v830
    %v857 = vpack.c.b16 %v833, %v832
    %v858 = vpack.c.b16 %v835, %v834
    %v859 = vpack.c.b16 %v837, %v836
    %v860 = vpack.c.b16 %v839, %v838
    %v861 = vpack.c.b16 %v841, %v840
    %v862 = vpack.c.b16 %v843, %v842
    %v863 = vpack.c.b16 %v845, %v844
    %v864 = vpack.c.b16 %v847, %v846
    %v865 = vpack.c.b16 %v849, %v848
    %882 = vmatprep.subr.bf16.mxu0 0
    %883 = vmatpush1.bf16.msra.mxu0 %v857
    %884 = vmatprep.subr.bf16.mxu0 0
    %885 = vmatpush1.bf16.msra.mxu0 %v856
    %886 = vmatprep.subr.bf16.mxu0 0
    %887 = vmatpush1.bf16.msra.mxu0 %v855
    %888 = vmatprep.subr.bf16.mxu0 0
    %889 = vmatpush1.bf16.msra.mxu0 %v854
    %890 = vmatprep.subr.bf16.mxu0 0
    %891 = vmatpush1.bf16.msra.mxu0 %v853
    %892 = vmatprep.subr.bf16.mxu0 0
    %893 = vmatpush1.bf16.msra.mxu0 %v852
    %894 = vmatprep.subr.bf16.mxu0 0
    %895 = vmatpush1.bf16.msra.mxu0 %v851
    %896 = vmatprep.subr.bf16.mxu0 0
    %897 = vmatpush1.bf16.msra.mxu0 %v850
    %898 = vmatprep.subr.bf16.mxu0 0
    %899 = vmatpush2.bf16.msra.mxu0 %v865
    %900 = vmatprep.subr.bf16.mxu0 0
    %901 = vmatpush2.bf16.msra.mxu0 %v864
    %902 = vmatprep.subr.bf16.mxu0 0
    %903 = vmatpush2.bf16.msra.mxu0 %v863
    %904 = vmatprep.subr.bf16.mxu0 0
    %905 = vmatpush2.bf16.msra.mxu0 %v862
    %906 = vmatprep.subr.bf16.mxu0 0
    %907 = vmatpush2.bf16.msra.mxu0 %v861
    %908 = vmatprep.subr.bf16.mxu0 0
    %909 = vmatpush2.bf16.msra.mxu0 %v860
    %910 = vmatprep.subr.bf16.mxu0 0
    %911 = vmatpush2.bf16.msra.mxu0 %v859
    %912 = vmatprep.subr.bf16.mxu0 0
    %913 = vmatpush2.bf16.msra.mxu0 %v858
    %914 = vmatprep.mubr.bf16.mxu0 %v386
    %915 = vmatmul.mubr.bf16.gmra.mxu0 %v385
    %v916 = vpop.f32.mrf.mxu0
    %v917 = vadd.f32 0.0, %v916
    %v918 = vpop.f32.mrf.mxu0
    %v919 = vpop.f32.mrf.mxu0
    %v920 = vadd.f32 0.0, %v919
    %v921 = vpop.f32.mrf.mxu0
    %922 = vdwg.mxu0
    %v924 = vlaneseq
    %v925 = vshrl.u32 %v924, 7
    %v926 = vsub.s32 0, %v925
    %v927 = vrot.slane %v753, %v926
    %v929 = vadd.f32 %v927, %v917
    %v930 = vadd.f32 %v927, %v920
    %s931 = scalar_lea.vmem [#allocation7], 128
    %v932 = vld [vmem:[%s931] sm:$0xf]
    %v933 = vld [vmem:[%s931 + $0x4] sm:$0xf]
    %v934 = vld [vmem:[%s931 + $0x8] sm:$0xf]
    %v935 = vld [vmem:[%s931 + $0xc] sm:$0xf]
    %v936 = vld [vmem:[%s931 + $0x10] sm:$0xf]
    %v937 = vld [vmem:[%s931 + $0x14] sm:$0xf]
    %v938 = vld [vmem:[%s931 + $0x18] sm:$0xf]
    %v939 = vld [vmem:[%s931 + $0x1c] sm:$0xf]
    %v940 = vld [vmem:[%s931 + $0x20] sm:$0xf]
    %v941 = vld [vmem:[%s931 + $0x24] sm:$0xf]
    %v942 = vld [vmem:[%s931 + $0x28] sm:$0xf]
    %v943 = vld [vmem:[%s931 + $0x2c] sm:$0xf]
    %v944 = vld [vmem:[%s931 + $0x30] sm:$0xf]
    %v945 = vld [vmem:[%s931 + $0x34] sm:$0xf]
    %v946 = vld [vmem:[%s931 + $0x38] sm:$0xf]
    %v947 = vld [vmem:[%s931 + $0x3c] sm:$0xf]
    %v948 = vld [vmem:[%s931 + $0x40] sm:$0xf]
    %v949 = vld [vmem:[%s931 + $0x44] sm:$0xf]
    %v950 = vld [vmem:[%s931 + $0x48] sm:$0xf]
    %v951 = vld [vmem:[%s931 + $0x4c] sm:$0xf]
    %v952 = vld [vmem:[%s931 + $0x50] sm:$0xf]
    %v953 = vld [vmem:[%s931 + $0x54] sm:$0xf]
    %v954 = vld [vmem:[%s931 + $0x58] sm:$0xf]
    %v955 = vld [vmem:[%s931 + $0x5c] sm:$0xf]
    %v956 = vld [vmem:[%s931 + $0x60] sm:$0xf]
    %v957 = vld [vmem:[%s931 + $0x64] sm:$0xf]
    %v958 = vld [vmem:[%s931 + $0x68] sm:$0xf]
    %v959 = vld [vmem:[%s931 + $0x6c] sm:$0xf]
    %v960 = vld [vmem:[%s931 + $0x70] sm:$0xf]
    %v961 = vld [vmem:[%s931 + $0x74] sm:$0xf]
    %v962 = vld [vmem:[%s931 + $0x78] sm:$0xf]
    %v963 = vld [vmem:[%s931 + $0x7c] sm:$0xf]
    %v996 = vunpack.c.l.b16 %v932
    %v997 = vunpack.c.l.b16 %v933
    %v998 = vunpack.c.l.b16 %v934
    %v999 = vunpack.c.l.b16 %v935
    %v1000 = vunpack.c.l.b16 %v936
    %v1001 = vunpack.c.l.b16 %v937
    %v1002 = vunpack.c.l.b16 %v938
    %v1003 = vunpack.c.l.b16 %v939
    %v1004 = vunpack.c.l.b16 %v940
    %v1005 = vunpack.c.l.b16 %v941
    %v1006 = vunpack.c.l.b16 %v942
    %v1007 = vunpack.c.l.b16 %v943
    %v1008 = vunpack.c.l.b16 %v944
    %v1009 = vunpack.c.l.b16 %v945
    %v1010 = vunpack.c.l.b16 %v946
    %v1011 = vunpack.c.l.b16 %v947
    %v1012 = vunpack.c.l.b16 %v948
    %v1013 = vunpack.c.l.b16 %v949
    %v1014 = vunpack.c.l.b16 %v950
    %v1015 = vunpack.c.l.b16 %v951
    %v1016 = vunpack.c.l.b16 %v952
    %v1017 = vunpack.c.l.b16 %v953
    %v1018 = vunpack.c.l.b16 %v954
    %v1019 = vunpack.c.l.b16 %v955
    %v1020 = vunpack.c.l.b16 %v956
    %v1021 = vunpack.c.l.b16 %v957
    %v1022 = vunpack.c.l.b16 %v958
    %v1023 = vunpack.c.l.b16 %v959
    %v1024 = vunpack.c.l.b16 %v960
    %v1025 = vunpack.c.l.b16 %v961
    %v1026 = vunpack.c.l.b16 %v962
    %v1027 = vunpack.c.l.b16 %v963
    %v1028 = vpack.c.b16 %v997, %v996
    %v1029 = vpack.c.b16 %v999, %v998
    %v1030 = vpack.c.b16 %v1001, %v1000
    %v1031 = vpack.c.b16 %v1003, %v1002
    %v1032 = vpack.c.b16 %v1005, %v1004
    %v1033 = vpack.c.b16 %v1007, %v1006
    %v1034 = vpack.c.b16 %v1009, %v1008
    %v1035 = vpack.c.b16 %v1011, %v1010
    %v1036 = vpack.c.b16 %v1013, %v1012
    %v1037 = vpack.c.b16 %v1015, %v1014
    %v1038 = vpack.c.b16 %v1017, %v1016
    %v1039 = vpack.c.b16 %v1019, %v1018
    %v1040 = vpack.c.b16 %v1021, %v1020
    %v1041 = vpack.c.b16 %v1023, %v1022
    %v1042 = vpack.c.b16 %v1025, %v1024
    %v1043 = vpack.c.b16 %v1027, %v1026
    %1060 = vmatprep.subr.bf16.mxu0 0
    %1061 = vmatpush1.bf16.msra.mxu0 %v1035
    %1062 = vmatprep.subr.bf16.mxu0 0
    %1063 = vmatpush1.bf16.msra.mxu0 %v1034
    %1064 = vmatprep.subr.bf16.mxu0 0
    %1065 = vmatpush1.bf16.msra.mxu0 %v1033
    %1066 = vmatprep.subr.bf16.mxu0 0
    %1067 = vmatpush1.bf16.msra.mxu0 %v1032
    %1068 = vmatprep.subr.bf16.mxu0 0
    %1069 = vmatpush1.bf16.msra.mxu0 %v1031
    %1070 = vmatprep.subr.bf16.mxu0 0
    %1071 = vmatpush1.bf16.msra.mxu0 %v1030
    %1072 = vmatprep.subr.bf16.mxu0 0
    %1073 = vmatpush1.bf16.msra.mxu0 %v1029
    %1074 = vmatprep.subr.bf16.mxu0 0
    %1075 = vmatpush1.bf16.msra.mxu0 %v1028
    %1076 = vmatprep.subr.bf16.mxu0 0
    %1077 = vmatpush2.bf16.msra.mxu0 %v1043
    %1078 = vmatprep.subr.bf16.mxu0 0
    %1079 = vmatpush2.bf16.msra.mxu0 %v1042
    %1080 = vmatprep.subr.bf16.mxu0 0
    %1081 = vmatpush2.bf16.msra.mxu0 %v1041
    %1082 = vmatprep.subr.bf16.mxu0 0
    %1083 = vmatpush2.bf16.msra.mxu0 %v1040
    %1084 = vmatprep.subr.bf16.mxu0 0
    %1085 = vmatpush2.bf16.msra.mxu0 %v1039
    %1086 = vmatprep.subr.bf16.mxu0 0
    %1087 = vmatpush2.bf16.msra.mxu0 %v1038
    %1088 = vmatprep.subr.bf16.mxu0 0
    %1089 = vmatpush2.bf16.msra.mxu0 %v1037
    %1090 = vmatprep.subr.bf16.mxu0 0
    %1091 = vmatpush2.bf16.msra.mxu0 %v1036
    %1092 = vmatprep.mubr.bf16.mxu0 %v447
    %1093 = vmatmul.mubr.bf16.gmra.mxu0 %v446
    %v1094 = vpop.f32.mrf.mxu0
    %v1095 = vadd.f32 0.0, %v1094
    %v1096 = vpop.f32.mrf.mxu0
    %v1097 = vpop.f32.mrf.mxu0
    %v1098 = vadd.f32 0.0, %v1097
    %v1099 = vpop.f32.mrf.mxu0
    %1100 = vdwg.mxu0
    %v1101 = vadd.f32 %v929, %v1095
    %v1102 = vadd.f32 %v930, %v1098
    %s1103 = scalar_lea.vmem [#allocation7], 256
    %v1104 = vld [vmem:[%s1103] sm:$0xf]
    %v1105 = vld [vmem:[%s1103 + $0x4] sm:$0xf]
    %v1106 = vld [vmem:[%s1103 + $0x8] sm:$0xf]
    %v1107 = vld [vmem:[%s1103 + $0xc] sm:$0xf]
    %v1108 = vld [vmem:[%s1103 + $0x10] sm:$0xf]
    %v1109 = vld [vmem:[%s1103 + $0x14] sm:$0xf]
    %v1110 = vld [vmem:[%s1103 + $0x18] sm:$0xf]
    %v1111 = vld [vmem:[%s1103 + $0x1c] sm:$0xf]
    %v1112 = vld [vmem:[%s1103 + $0x20] sm:$0xf]
    %v1113 = vld [vmem:[%s1103 + $0x24] sm:$0xf]
    %v1114 = vld [vmem:[%s1103 + $0x28] sm:$0xf]
    %v1115 = vld [vmem:[%s1103 + $0x2c] sm:$0xf]
    %v1116 = vld [vmem:[%s1103 + $0x30] sm:$0xf]
    %v1117 = vld [vmem:[%s1103 + $0x34] sm:$0xf]
    %v1118 = vld [vmem:[%s1103 + $0x38] sm:$0xf]
    %v1119 = vld [vmem:[%s1103 + $0x3c] sm:$0xf]
    %v1120 = vld [vmem:[%s1103 + $0x40] sm:$0xf]
    %v1121 = vld [vmem:[%s1103 + $0x44] sm:$0xf]
    %v1122 = vld [vmem:[%s1103 + $0x48] sm:$0xf]
    %v1123 = vld [vmem:[%s1103 + $0x4c] sm:$0xf]
    %v1124 = vld [vmem:[%s1103 + $0x50] sm:$0xf]
    %v1125 = vld [vmem:[%s1103 + $0x54] sm:$0xf]
    %v1126 = vld [vmem:[%s1103 + $0x58] sm:$0xf]
    %v1127 = vld [vmem:[%s1103 + $0x5c] sm:$0xf]
    %v1128 = vld [vmem:[%s1103 + $0x60] sm:$0xf]
    %v1129 = vld [vmem:[%s1103 + $0x64] sm:$0xf]
    %v1130 = vld [vmem:[%s1103 + $0x68] sm:$0xf]
    %v1131 = vld [vmem:[%s1103 + $0x6c] sm:$0xf]
    %v1132 = vld [vmem:[%s1103 + $0x70] sm:$0xf]
    %v1133 = vld [vmem:[%s1103 + $0x74] sm:$0xf]
    %v1134 = vld [vmem:[%s1103 + $0x78] sm:$0xf]
    %v1135 = vld [vmem:[%s1103 + $0x7c] sm:$0xf]
    %v1168 = vunpack.c.l.b16 %v1104
    %v1169 = vunpack.c.l.b16 %v1105
    %v1170 = vunpack.c.l.b16 %v1106
    %v1171 = vunpack.c.l.b16 %v1107
    %v1172 = vunpack.c.l.b16 %v1108
    %v1173 = vunpack.c.l.b16 %v1109
    %v1174 = vunpack.c.l.b16 %v1110
    %v1175 = vunpack.c.l.b16 %v1111
    %v1176 = vunpack.c.l.b16 %v1112
    %v1177 = vunpack.c.l.b16 %v1113
    %v1178 = vunpack.c.l.b16 %v1114
    %v1179 = vunpack.c.l.b16 %v1115
    %v1180 = vunpack.c.l.b16 %v1116
    %v1181 = vunpack.c.l.b16 %v1117
    %v1182 = vunpack.c.l.b16 %v1118
    %v1183 = vunpack.c.l.b16 %v1119
    %v1184 = vunpack.c.l.b16 %v1120
    %v1185 = vunpack.c.l.b16 %v1121
    %v1186 = vunpack.c.l.b16 %v1122
    %v1187 = vunpack.c.l.b16 %v1123
    %v1188 = vunpack.c.l.b16 %v1124
    %v1189 = vunpack.c.l.b16 %v1125
    %v1190 = vunpack.c.l.b16 %v1126
    %v1191 = vunpack.c.l.b16 %v1127
    %v1192 = vunpack.c.l.b16 %v1128
    %v1193 = vunpack.c.l.b16 %v1129
    %v1194 = vunpack.c.l.b16 %v1130
    %v1195 = vunpack.c.l.b16 %v1131
    %v1196 = vunpack.c.l.b16 %v1132
    %v1197 = vunpack.c.l.b16 %v1133
    %v1198 = vunpack.c.l.b16 %v1134
    %v1199 = vunpack.c.l.b16 %v1135
    %v1200 = vpack.c.b16 %v1169, %v1168
    %v1201 = vpack.c.b16 %v1171, %v1170
    %v1202 = vpack.c.b16 %v1173, %v1172
    %v1203 = vpack.c.b16 %v1175, %v1174
    %v1204 = vpack.c.b16 %v1177, %v1176
    %v1205 = vpack.c.b16 %v1179, %v1178
    %v1206 = vpack.c.b16 %v1181, %v1180
    %v1207 = vpack.c.b16 %v1183, %v1182
    %v1208 = vpack.c.b16 %v1185, %v1184
    %v1209 = vpack.c.b16 %v1187, %v1186
    %v1210 = vpack.c.b16 %v1189, %v1188
    %v1211 = vpack.c.b16 %v1191, %v1190
    %v1212 = vpack.c.b16 %v1193, %v1192
    %v1213 = vpack.c.b16 %v1195, %v1194
    %v1214 = vpack.c.b16 %v1197, %v1196
    %v1215 = vpack.c.b16 %v1199, %v1198
    %1232 = vmatprep.subr.bf16.mxu0 0
    %1233 = vmatpush1.bf16.msra.mxu0 %v1207
    %1234 = vmatprep.subr.bf16.mxu0 0
    %1235 = vmatpush1.bf16.msra.mxu0 %v1206
    %1236 = vmatprep.subr.bf16.mxu0 0
    %1237 = vmatpush1.bf16.msra.mxu0 %v1205
    %1238 = vmatprep.subr.bf16.mxu0 0
    %1239 = vmatpush1.bf16.msra.mxu0 %v1204
    %1240 = vmatprep.subr.bf16.mxu0 0
    %1241 = vmatpush1.bf16.msra.mxu0 %v1203
    %1242 = vmatprep.subr.bf16.mxu0 0
    %1243 = vmatpush1.bf16.msra.mxu0 %v1202
    %1244 = vmatprep.subr.bf16.mxu0 0
    %1245 = vmatpush1.bf16.msra.mxu0 %v1201
    %1246 = vmatprep.subr.bf16.mxu0 0
    %1247 = vmatpush1.bf16.msra.mxu0 %v1200
    %1248 = vmatprep.subr.bf16.mxu0 0
    %1249 = vmatpush2.bf16.msra.mxu0 %v1215
    %1250 = vmatprep.subr.bf16.mxu0 0
    %1251 = vmatpush2.bf16.msra.mxu0 %v1214
    %1252 = vmatprep.subr.bf16.mxu0 0
    %1253 = vmatpush2.bf16.msra.mxu0 %v1213
    %1254 = vmatprep.subr.bf16.mxu0 0
    %1255 = vmatpush2.bf16.msra.mxu0 %v1212
    %1256 = vmatprep.subr.bf16.mxu0 0
    %1257 = vmatpush2.bf16.msra.mxu0 %v1211
    %1258 = vmatprep.subr.bf16.mxu0 0
    %1259 = vmatpush2.bf16.msra.mxu0 %v1210
    %1260 = vmatprep.subr.bf16.mxu0 0
    %1261 = vmatpush2.bf16.msra.mxu0 %v1209
    %1262 = vmatprep.subr.bf16.mxu0 0
    %1263 = vmatpush2.bf16.msra.mxu0 %v1208
    %1264 = vmatprep.mubr.bf16.mxu0 %v508
    %1265 = vmatmul.mubr.bf16.gmra.mxu0 %v507
    %v1266 = vpop.f32.mrf.mxu0
    %v1267 = vadd.f32 0.0, %v1266
    %v1268 = vpop.f32.mrf.mxu0
    %v1269 = vpop.f32.mrf.mxu0
    %v1270 = vadd.f32 0.0, %v1269
    %v1271 = vpop.f32.mrf.mxu0
    %1272 = vdwg.mxu0
    %v1273 = vadd.f32 %v1101, %v1267
    %v1274 = vadd.f32 %v1102, %v1270
    %v1275 = vmax.f32 %v1273, 0.0
    %v1276 = vmax.f32 %v1274, 0.0
    %v1277 = vpack.c.bf16 %v1276, %v1275
    %1278 = vmatprep.subr.bf16.mxu0 0
    %1279 = vmatpush1.bf16.msra.mxu0 %v857
    %1280 = vmatprep.subr.bf16.mxu0 0
    %1281 = vmatpush1.bf16.msra.mxu0 %v856
    %1282 = vmatprep.subr.bf16.mxu0 0
    %1283 = vmatpush1.bf16.msra.mxu0 %v855
    %1284 = vmatprep.subr.bf16.mxu0 0
    %1285 = vmatpush1.bf16.msra.mxu0 %v854
    %1286 = vmatprep.subr.bf16.mxu0 0
    %1287 = vmatpush1.bf16.msra.mxu0 %v853
    %1288 = vmatprep.subr.bf16.mxu0 0
    %1289 = vmatpush1.bf16.msra.mxu0 %v852
    %1290 = vmatprep.subr.bf16.mxu0 0
    %1291 = vmatpush1.bf16.msra.mxu0 %v851
    %1292 = vmatprep.subr.bf16.mxu0 0
    %1293 = vmatpush1.bf16.msra.mxu0 %v850
    %1294 = vmatprep.subr.bf16.mxu0 0
    %1295 = vmatpush2.bf16.msra.mxu0 %v865
    %1296 = vmatprep.subr.bf16.mxu0 0
    %1297 = vmatpush2.bf16.msra.mxu0 %v864
    %1298 = vmatprep.subr.bf16.mxu0 0
    %1299 = vmatpush2.bf16.msra.mxu0 %v863
    %1300 = vmatprep.subr.bf16.mxu0 0
    %1301 = vmatpush2.bf16.msra.mxu0 %v862
    %1302 = vmatprep.subr.bf16.mxu0 0
    %1303 = vmatpush2.bf16.msra.mxu0 %v861
    %1304 = vmatprep.subr.bf16.mxu0 0
    %1305 = vmatpush2.bf16.msra.mxu0 %v860
    %1306 = vmatprep.subr.bf16.mxu0 0
    %1307 = vmatpush2.bf16.msra.mxu0 %v859
    %1308 = vmatprep.subr.bf16.mxu0 0
    %1309 = vmatpush2.bf16.msra.mxu0 %v858
    %1310 = vmatprep.mubr.bf16.mxu0 %v508
    %1311 = vmatmul.mubr.bf16.gmra.mxu0 %v507
    %v1312 = vpop.f32.mrf.mxu0
    %v1313 = vadd.f32 0.0, %v1312
    %v1314 = vpop.f32.mrf.mxu0
    %v1315 = vpop.f32.mrf.mxu0
    %v1316 = vadd.f32 0.0, %v1315
    %v1317 = vpop.f32.mrf.mxu0
    %1318 = vdwg.mxu0
    %v1319 = vadd.f32 %v927, %v1313
    %v1320 = vadd.f32 %v927, %v1316
    %1321 = vmatprep.subr.bf16.mxu0 0
    %1322 = vmatpush1.bf16.msra.mxu0 %v1035
    %1323 = vmatprep.subr.bf16.mxu0 0
    %1324 = vmatpush1.bf16.msra.mxu0 %v1034
    %1325 = vmatprep.subr.bf16.mxu0 0
    %1326 = vmatpush1.bf16.msra.mxu0 %v1033
    %1327 = vmatprep.subr.bf16.mxu0 0
    %1328 = vmatpush1.bf16.msra.mxu0 %v1032
    %1329 = vmatprep.subr.bf16.mxu0 0
    %1330 = vmatpush1.bf16.msra.mxu0 %v1031
    %1331 = vmatprep.subr.bf16.mxu0 0
    %1332 = vmatpush1.bf16.msra.mxu0 %v1030
    %1333 = vmatprep.subr.bf16.mxu0 0
    %1334 = vmatpush1.bf16.msra.mxu0 %v1029
    %1335 = vmatprep.subr.bf16.mxu0 0
    %1336 = vmatpush1.bf16.msra.mxu0 %v1028
    %1337 = vmatprep.subr.bf16.mxu0 0
    %1338 = vmatpush2.bf16.msra.mxu0 %v1043
    %1339 = vmatprep.subr.bf16.mxu0 0
    %1340 = vmatpush2.bf16.msra.mxu0 %v1042
    %1341 = vmatprep.subr.bf16.mxu0 0
    %1342 = vmatpush2.bf16.msra.mxu0 %v1041
    %1343 = vmatprep.subr.bf16.mxu0 0
    %1344 = vmatpush2.bf16.msra.mxu0 %v1040
    %1345 = vmatprep.subr.bf16.mxu0 0
    %1346 = vmatpush2.bf16.msra.mxu0 %v1039
    %1347 = vmatprep.subr.bf16.mxu0 0
    %1348 = vmatpush2.bf16.msra.mxu0 %v1038
    %1349 = vmatprep.subr.bf16.mxu0 0
    %1350 = vmatpush2.bf16.msra.mxu0 %v1037
    %1351 = vmatprep.subr.bf16.mxu0 0
    %1352 = vmatpush2.bf16.msra.mxu0 %v1036
    %1353 = vmatprep.mubr.bf16.mxu0 %v569
    %1354 = vmatmul.mubr.bf16.gmra.mxu0 %v568
    %v1355 = vpop.f32.mrf.mxu0
    %v1356 = vadd.f32 0.0, %v1355
    %v1357 = vpop.f32.mrf.mxu0
    %v1358 = vpop.f32.mrf.mxu0
    %v1359 = vadd.f32 0.0, %v1358
    %v1360 = vpop.f32.mrf.mxu0
    %1361 = vdwg.mxu0
    %v1362 = vadd.f32 %v1319, %v1356
    %v1363 = vadd.f32 %v1320, %v1359
    %1364 = vmatprep.subr.bf16.mxu0 0
    %1365 = vmatpush1.bf16.msra.mxu0 %v1207
    %1366 = vmatprep.subr.bf16.mxu0 0
    %1367 = vmatpush1.bf16.msra.mxu0 %v1206
    %1368 = vmatprep.subr.bf16.mxu0 0
    %1369 = vmatpush1.bf16.msra.mxu0 %v1205
    %1370 = vmatprep.subr.bf16.mxu0 0
    %1371 = vmatpush1.bf16.msra.mxu0 %v1204
    %1372 = vmatprep.subr.bf16.mxu0 0
    %1373 = vmatpush1.bf16.msra.mxu0 %v1203
    %1374 = vmatprep.subr.bf16.mxu0 0
    %1375 = vmatpush1.bf16.msra.mxu0 %v1202
    %1376 = vmatprep.subr.bf16.mxu0 0
    %1377 = vmatpush1.bf16.msra.mxu0 %v1201
    %1378 = vmatprep.subr.bf16.mxu0 0
    %1379 = vmatpush1.bf16.msra.mxu0 %v1200
    %1380 = vmatprep.subr.bf16.mxu0 0
    %1381 = vmatpush2.bf16.msra.mxu0 %v1215
    %1382 = vmatprep.subr.bf16.mxu0 0
    %1383 = vmatpush2.bf16.msra.mxu0 %v1214
    %1384 = vmatprep.subr.bf16.mxu0 0
    %1385 = vmatpush2.bf16.msra.mxu0 %v1213
    %1386 = vmatprep.subr.bf16.mxu0 0
    %1387 = vmatpush2.bf16.msra.mxu0 %v1212
    %1388 = vmatprep.subr.bf16.mxu0 0
    %1389 = vmatpush2.bf16.msra.mxu0 %v1211
    %1390 = vmatprep.subr.bf16.mxu0 0
    %1391 = vmatpush2.bf16.msra.mxu0 %v1210
    %1392 = vmatprep.subr.bf16.mxu0 0
    %1393 = vmatpush2.bf16.msra.mxu0 %v1209
    %1394 = vmatprep.subr.bf16.mxu0 0
    %1395 = vmatpush2.bf16.msra.mxu0 %v1208
    %1396 = vmatprep.mubr.bf16.mxu0 %v630
    %1397 = vmatmul.mubr.bf16.gmra.mxu0 %v629
    %v1398 = vpop.f32.mrf.mxu0
    %v1399 = vadd.f32 0.0, %v1398
    %v1400 = vpop.f32.mrf.mxu0
    %v1401 = vpop.f32.mrf.mxu0
    %v1402 = vadd.f32 0.0, %v1401
    %v1403 = vpop.f32.mrf.mxu0
    %1404 = vdwg.mxu0
    %v1405 = vadd.f32 %v1362, %v1399
    %v1406 = vadd.f32 %v1363, %v1402
    %v1407 = vmax.f32 %v1405, 0.0
    %v1408 = vmax.f32 %v1406, 0.0
    %v1409 = vpack.c.bf16 %v1408, %v1407
    %1410 = vmatprep.subr.bf16.mxu0 0
    %1411 = vmatpush1.bf16.msra.mxu0 %v857
    %1412 = vmatprep.subr.bf16.mxu0 0
    %1413 = vmatpush1.bf16.msra.mxu0 %v856
    %1414 = vmatprep.subr.bf16.mxu0 0
    %1415 = vmatpush1.bf16.msra.mxu0 %v855
    %1416 = vmatprep.subr.bf16.mxu0 0
    %1417 = vmatpush1.bf16.msra.mxu0 %v854
    %1418 = vmatprep.subr.bf16.mxu0 0
    %1419 = vmatpush1.bf16.msra.mxu0 %v853
    %1420 = vmatprep.subr.bf16.mxu0 0
    %1421 = vmatpush1.bf16.msra.mxu0 %v852
    %1422 = vmatprep.subr.bf16.mxu0 0
    %1423 = vmatpush1.bf16.msra.mxu0 %v851
    %1424 = vmatprep.subr.bf16.mxu0 0
    %1425 = vmatpush1.bf16.msra.mxu0 %v850
    %1426 = vmatprep.subr.bf16.mxu0 0
    %1427 = vmatpush2.bf16.msra.mxu0 %v865
    %1428 = vmatprep.subr.bf16.mxu0 0
    %1429 = vmatpush2.bf16.msra.mxu0 %v864
    %1430 = vmatprep.subr.bf16.mxu0 0
    %1431 = vmatpush2.bf16.msra.mxu0 %v863
    %1432 = vmatprep.subr.bf16.mxu0 0
    %1433 = vmatpush2.bf16.msra.mxu0 %v862
    %1434 = vmatprep.subr.bf16.mxu0 0
    %1435 = vmatpush2.bf16.msra.mxu0 %v861
    %1436 = vmatprep.subr.bf16.mxu0 0
    %1437 = vmatpush2.bf16.msra.mxu0 %v860
    %1438 = vmatprep.subr.bf16.mxu0 0
    %1439 = vmatpush2.bf16.msra.mxu0 %v859
    %1440 = vmatprep.subr.bf16.mxu0 0
    %1441 = vmatpush2.bf16.msra.mxu0 %v858
    %1442 = vmatprep.mubr.bf16.mxu0 %v630
    %1443 = vmatmul.mubr.bf16.gmra.mxu0 %v629
    %v1444 = vpop.f32.mrf.mxu0
    %v1445 = vadd.f32 0.0, %v1444
    %v1446 = vpop.f32.mrf.mxu0
    %v1447 = vpop.f32.mrf.mxu0
    %v1448 = vadd.f32 0.0, %v1447
    %v1449 = vpop.f32.mrf.mxu0
    %1450 = vdwg.mxu0
    %v1451 = vadd.f32 %v927, %v1445
    %v1452 = vadd.f32 %v927, %v1448
    %1453 = vmatprep.subr.bf16.mxu0 0
    %1454 = vmatpush1.bf16.msra.mxu0 %v1035
    %1455 = vmatprep.subr.bf16.mxu0 0
    %1456 = vmatpush1.bf16.msra.mxu0 %v1034
    %1457 = vmatprep.subr.bf16.mxu0 0
    %1458 = vmatpush1.bf16.msra.mxu0 %v1033
    %1459 = vmatprep.subr.bf16.mxu0 0
    %1460 = vmatpush1.bf16.msra.mxu0 %v1032
    %1461 = vmatprep.subr.bf16.mxu0 0
    %1462 = vmatpush1.bf16.msra.mxu0 %v1031
    %1463 = vmatprep.subr.bf16.mxu0 0
    %1464 = vmatpush1.bf16.msra.mxu0 %v1030
    %1465 = vmatprep.subr.bf16.mxu0 0
    %1466 = vmatpush1.bf16.msra.mxu0 %v1029
    %1467 = vmatprep.subr.bf16.mxu0 0
    %1468 = vmatpush1.bf16.msra.mxu0 %v1028
    %1469 = vmatprep.subr.bf16.mxu0 0
    %1470 = vmatpush2.bf16.msra.mxu0 %v1043
    %1471 = vmatprep.subr.bf16.mxu0 0
    %1472 = vmatpush2.bf16.msra.mxu0 %v1042
    %1473 = vmatprep.subr.bf16.mxu0 0
    %1474 = vmatpush2.bf16.msra.mxu0 %v1041
    %1475 = vmatprep.subr.bf16.mxu0 0
    %1476 = vmatpush2.bf16.msra.mxu0 %v1040
    %1477 = vmatprep.subr.bf16.mxu0 0
    %1478 = vmatpush2.bf16.msra.mxu0 %v1039
    %1479 = vmatprep.subr.bf16.mxu0 0
    %1480 = vmatpush2.bf16.msra.mxu0 %v1038
    %1481 = vmatprep.subr.bf16.mxu0 0
    %1482 = vmatpush2.bf16.msra.mxu0 %v1037
    %1483 = vmatprep.subr.bf16.mxu0 0
    %1484 = vmatpush2.bf16.msra.mxu0 %v1036
    %1485 = vmatprep.mubr.bf16.mxu0 %v691
    %1486 = vmatmul.mubr.bf16.gmra.mxu0 %v690
    %v1487 = vpop.f32.mrf.mxu0
    %v1488 = vadd.f32 0.0, %v1487
    %v1489 = vpop.f32.mrf.mxu0
    %v1490 = vpop.f32.mrf.mxu0
    %v1491 = vadd.f32 0.0, %v1490
    %v1492 = vpop.f32.mrf.mxu0
    %1493 = vdwg.mxu0
    %v1494 = vadd.f32 %v1451, %v1488
    %v1495 = vadd.f32 %v1452, %v1491
    %1496 = vmatprep.subr.bf16.mxu0 0
    %1497 = vmatpush1.bf16.msra.mxu0 %v1207
    %1498 = vmatprep.subr.bf16.mxu0 0
    %1499 = vmatpush1.bf16.msra.mxu0 %v1206
    %1500 = vmatprep.subr.bf16.mxu0 0
    %1501 = vmatpush1.bf16.msra.mxu0 %v1205
    %1502 = vmatprep.subr.bf16.mxu0 0
    %1503 = vmatpush1.bf16.msra.mxu0 %v1204
    %1504 = vmatprep.subr.bf16.mxu0 0
    %1505 = vmatpush1.bf16.msra.mxu0 %v1203
    %1506 = vmatprep.subr.bf16.mxu0 0
    %1507 = vmatpush1.bf16.msra.mxu0 %v1202
    %1508 = vmatprep.subr.bf16.mxu0 0
    %1509 = vmatpush1.bf16.msra.mxu0 %v1201
    %1510 = vmatprep.subr.bf16.mxu0 0
    %1511 = vmatpush1.bf16.msra.mxu0 %v1200
    %1512 = vmatprep.subr.bf16.mxu0 0
    %1513 = vmatpush2.bf16.msra.mxu0 %v1215
    %1514 = vmatprep.subr.bf16.mxu0 0
    %1515 = vmatpush2.bf16.msra.mxu0 %v1214
    %1516 = vmatprep.subr.bf16.mxu0 0
    %1517 = vmatpush2.bf16.msra.mxu0 %v1213
    %1518 = vmatprep.subr.bf16.mxu0 0
    %1519 = vmatpush2.bf16.msra.mxu0 %v1212
    %1520 = vmatprep.subr.bf16.mxu0 0
    %1521 = vmatpush2.bf16.msra.mxu0 %v1211
    %1522 = vmatprep.subr.bf16.mxu0 0
    %1523 = vmatpush2.bf16.msra.mxu0 %v1210
    %1524 = vmatprep.subr.bf16.mxu0 0
    %1525 = vmatpush2.bf16.msra.mxu0 %v1209
    %1526 = vmatprep.subr.bf16.mxu0 0
    %1527 = vmatpush2.bf16.msra.mxu0 %v1208
    %1528 = vmatprep.mubr.bf16.mxu0 %v752
    %1529 = vmatmul.mubr.bf16.gmra.mxu0 %v751
    %v1530 = vpop.f32.mrf.mxu0
    %v1531 = vadd.f32 0.0, %v1530
    %v1532 = vpop.f32.mrf.mxu0
    %v1533 = vpop.f32.mrf.mxu0
    %v1534 = vadd.f32 0.0, %v1533
    %v1535 = vpop.f32.mrf.mxu0
    %1536 = vdwg.mxu0
    %v1537 = vadd.f32 %v1494, %v1531
    %v1538 = vadd.f32 %v1495, %v1534
    %v1539 = vmax.f32 %v1537, 0.0
    %v1540 = vmax.f32 %v1538, 0.0
    %v1541 = vpack.c.bf16 %v1540, %v1539
    %v1542 = vld [vmem:[%s6] sm:$0x1]
    %v1543 = vld [vmem:[#allocation8] sm:$0xf]
    %v1544 = vld [vmem:[#allocation8 + $0x4] sm:$0xf]
    %v1545 = vld [vmem:[#allocation8 + $0x8] sm:$0xf]
    %v1546 = vld [vmem:[#allocation8 + $0xc] sm:$0xf]
    %v1547 = vld [vmem:[#allocation8 + $0x10] sm:$0xf]
    %v1548 = vld [vmem:[#allocation8 + $0x14] sm:$0xf]
    %v1549 = vld [vmem:[#allocation8 + $0x18] sm:$0xf]
    %v1550 = vld [vmem:[#allocation8 + $0x1c] sm:$0xf]
    %v1551 = vld [vmem:[#allocation8 + $0x20] sm:$0xf]
    %v1552 = vld [vmem:[#allocation8 + $0x24] sm:$0xf]
    %v1553 = vld [vmem:[#allocation8 + $0x28] sm:$0xf]
    %v1554 = vld [vmem:[#allocation8 + $0x2c] sm:$0xf]
    %v1555 = vld [vmem:[#allocation8 + $0x30] sm:$0xf]
    %v1556 = vld [vmem:[#allocation8 + $0x34] sm:$0xf]
    %v1557 = vld [vmem:[#allocation8 + $0x38] sm:$0xf]
    %v1558 = vld [vmem:[#allocation8 + $0x3c] sm:$0xf]
    %v1575 = vunpack.c.l.b16 %v1543
    %v1576 = vunpack.c.l.b16 %v1544
    %v1577 = vunpack.c.l.b16 %v1545
    %v1578 = vunpack.c.l.b16 %v1546
    %v1579 = vunpack.c.l.b16 %v1547
    %v1580 = vunpack.c.l.b16 %v1548
    %v1581 = vunpack.c.l.b16 %v1549
    %v1582 = vunpack.c.l.b16 %v1550
    %v1583 = vunpack.c.l.b16 %v1551
    %v1584 = vunpack.c.l.b16 %v1552
    %v1585 = vunpack.c.l.b16 %v1553
    %v1586 = vunpack.c.l.b16 %v1554
    %v1587 = vunpack.c.l.b16 %v1555
    %v1588 = vunpack.c.l.b16 %v1556
    %v1589 = vunpack.c.l.b16 %v1557
    %v1590 = vunpack.c.l.b16 %v1558
    %v1591 = vpack.c.b16 %v1576, %v1575
    %v1592 = vpack.c.b16 %v1578, %v1577
    %v1593 = vpack.c.b16 %v1580, %v1579
    %v1594 = vpack.c.b16 %v1582, %v1581
    %v1595 = vpack.c.b16 %v1584, %v1583
    %v1596 = vpack.c.b16 %v1586, %v1585
    %v1597 = vpack.c.b16 %v1588, %v1587
    %v1598 = vpack.c.b16 %v1590, %v1589
    %1607 = vmatprep.subr.bf16.mxu0 0
    %1608 = vmatpush1.bf16.msra.mxu0 %v1598
    %1609 = vmatprep.subr.bf16.mxu0 0
    %1610 = vmatpush1.bf16.msra.mxu0 %v1597
    %1611 = vmatprep.subr.bf16.mxu0 0
    %1612 = vmatpush1.bf16.msra.mxu0 %v1596
    %1613 = vmatprep.subr.bf16.mxu0 0
    %1614 = vmatpush1.bf16.msra.mxu0 %v1595
    %1615 = vmatprep.subr.bf16.mxu0 0
    %1616 = vmatpush1.bf16.msra.mxu0 %v1594
    %1617 = vmatprep.subr.bf16.mxu0 0
    %1618 = vmatpush1.bf16.msra.mxu0 %v1593
    %1619 = vmatprep.subr.bf16.mxu0 0
    %1620 = vmatpush1.bf16.msra.mxu0 %v1592
    %1621 = vmatprep.subr.bf16.mxu0 0
    %1622 = vmatpush1.bf16.msra.mxu0 %v1591
    %1623 = vmatprep.subr.bf16.mxu0 0
    %1624 = vmatpush2.bf16.msra.mxu0 0
    %1625 = vmatprep.subr.bf16.mxu0 0
    %1626 = vmatpush2.bf16.msra.mxu0 0
    %1627 = vmatprep.subr.bf16.mxu0 0
    %1628 = vmatpush2.bf16.msra.mxu0 0
    %1629 = vmatprep.subr.bf16.mxu0 0
    %1630 = vmatpush2.bf16.msra.mxu0 0
    %1631 = vmatprep.subr.bf16.mxu0 0
    %1632 = vmatpush2.bf16.msra.mxu0 0
    %1633 = vmatprep.subr.bf16.mxu0 0
    %1634 = vmatpush2.bf16.msra.mxu0 0
    %1635 = vmatprep.subr.bf16.mxu0 0
    %1636 = vmatpush2.bf16.msra.mxu0 0
    %1637 = vmatprep.subr.bf16.mxu0 0
    %1638 = vmatpush2.bf16.msra.mxu0 0
    %1639 = vmatprep.mubr.bf16.mxu0 0
    %1640 = vmatmul.mubr.bf16.gmra.mxu0 %v1277
    %v1641 = vpop.f32.mrf.mxu0
    %v1642 = vadd.f32 0.0, %v1641
    %v1643 = vpop.f32.mrf.mxu0
    %v1644 = vpop.f32.mrf.mxu0
    %v1645 = vadd.f32 0.0, %v1644
    %v1646 = vpop.f32.mrf.mxu0
    %1647 = vdwg.mxu0
    %v1649 = vlaneseq
    %v1650 = vshrl.u32 %v1649, 7
    %v1651 = vsub.s32 0, %v1650
    %v1652 = vrot.slane %v1542, %v1651
    %v1654 = vadd.f32 %v1652, %v1642
    %v1655 = vadd.f32 %v1652, %v1645
    %s1656 = scalar_lea.vmem [#allocation8], 64
    %v1657 = vld [vmem:[%s1656] sm:$0xf]
    %v1658 = vld [vmem:[%s1656 + $0x4] sm:$0xf]
    %v1659 = vld [vmem:[%s1656 + $0x8] sm:$0xf]
    %v1660 = vld [vmem:[%s1656 + $0xc] sm:$0xf]
    %v1661 = vld [vmem:[%s1656 + $0x10] sm:$0xf]
    %v1662 = vld [vmem:[%s1656 + $0x14] sm:$0xf]
    %v1663 = vld [vmem:[%s1656 + $0x18] sm:$0xf]
    %v1664 = vld [vmem:[%s1656 + $0x1c] sm:$0xf]
    %v1665 = vld [vmem:[%s1656 + $0x20] sm:$0xf]
    %v1666 = vld [vmem:[%s1656 + $0x24] sm:$0xf]
    %v1667 = vld [vmem:[%s1656 + $0x28] sm:$0xf]
    %v1668 = vld [vmem:[%s1656 + $0x2c] sm:$0xf]
    %v1669 = vld [vmem:[%s1656 + $0x30] sm:$0xf]
    %v1670 = vld [vmem:[%s1656 + $0x34] sm:$0xf]
    %v1671 = vld [vmem:[%s1656 + $0x38] sm:$0xf]
    %v1672 = vld [vmem:[%s1656 + $0x3c] sm:$0xf]
    %v1689 = vunpack.c.l.b16 %v1657
    %v1690 = vunpack.c.l.b16 %v1658
    %v1691 = vunpack.c.l.b16 %v1659
    %v1692 = vunpack.c.l.b16 %v1660
    %v1693 = vunpack.c.l.b16 %v1661
    %v1694 = vunpack.c.l.b16 %v1662
    %v1695 = vunpack.c.l.b16 %v1663
    %v1696 = vunpack.c.l.b16 %v1664
    %v1697 = vunpack.c.l.b16 %v1665
    %v1698 = vunpack.c.l.b16 %v1666
    %v1699 = vunpack.c.l.b16 %v1667
    %v1700 = vunpack.c.l.b16 %v1668
    %v1701 = vunpack.c.l.b16 %v1669
    %v1702 = vunpack.c.l.b16 %v1670
    %v1703 = vunpack.c.l.b16 %v1671
    %v1704 = vunpack.c.l.b16 %v1672
    %v1705 = vpack.c.b16 %v1690, %v1689
    %v1706 = vpack.c.b16 %v1692, %v1691
    %v1707 = vpack.c.b16 %v1694, %v1693
    %v1708 = vpack.c.b16 %v1696, %v1695
    %v1709 = vpack.c.b16 %v1698, %v1697
    %v1710 = vpack.c.b16 %v1700, %v1699
    %v1711 = vpack.c.b16 %v1702, %v1701
    %v1712 = vpack.c.b16 %v1704, %v1703
    %1721 = vmatprep.subr.bf16.mxu0 0
    %1722 = vmatpush1.bf16.msra.mxu0 %v1712
    %1723 = vmatprep.subr.bf16.mxu0 0
    %1724 = vmatpush1.bf16.msra.mxu0 %v1711
    %1725 = vmatprep.subr.bf16.mxu0 0
    %1726 = vmatpush1.bf16.msra.mxu0 %v1710
    %1727 = vmatprep.subr.bf16.mxu0 0
    %1728 = vmatpush1.bf16.msra.mxu0 %v1709
    %1729 = vmatprep.subr.bf16.mxu0 0
    %1730 = vmatpush1.bf16.msra.mxu0 %v1708
    %1731 = vmatprep.subr.bf16.mxu0 0
    %1732 = vmatpush1.bf16.msra.mxu0 %v1707
    %1733 = vmatprep.subr.bf16.mxu0 0
    %1734 = vmatpush1.bf16.msra.mxu0 %v1706
    %1735 = vmatprep.subr.bf16.mxu0 0
    %1736 = vmatpush1.bf16.msra.mxu0 %v1705
    %1737 = vmatprep.subr.bf16.mxu0 0
    %1738 = vmatpush2.bf16.msra.mxu0 0
    %1739 = vmatprep.subr.bf16.mxu0 0
    %1740 = vmatpush2.bf16.msra.mxu0 0
    %1741 = vmatprep.subr.bf16.mxu0 0
    %1742 = vmatpush2.bf16.msra.mxu0 0
    %1743 = vmatprep.subr.bf16.mxu0 0
    %1744 = vmatpush2.bf16.msra.mxu0 0
    %1745 = vmatprep.subr.bf16.mxu0 0
    %1746 = vmatpush2.bf16.msra.mxu0 0
    %1747 = vmatprep.subr.bf16.mxu0 0
    %1748 = vmatpush2.bf16.msra.mxu0 0
    %1749 = vmatprep.subr.bf16.mxu0 0
    %1750 = vmatpush2.bf16.msra.mxu0 0
    %1751 = vmatprep.subr.bf16.mxu0 0
    %1752 = vmatpush2.bf16.msra.mxu0 0
    %1753 = vmatprep.mubr.bf16.mxu0 0
    %1754 = vmatmul.mubr.bf16.gmra.mxu0 %v1409
    %v1755 = vpop.f32.mrf.mxu0
    %v1756 = vadd.f32 0.0, %v1755
    %v1757 = vpop.f32.mrf.mxu0
    %v1758 = vpop.f32.mrf.mxu0
    %v1759 = vadd.f32 0.0, %v1758
    %v1760 = vpop.f32.mrf.mxu0
    %1761 = vdwg.mxu0
    %v1762 = vadd.f32 %v1654, %v1756
    %v1763 = vadd.f32 %v1655, %v1759
    %s1764 = scalar_lea.vmem [#allocation8], 128
    %v1765 = vld [vmem:[%s1764] sm:$0xf]
    %v1766 = vld [vmem:[%s1764 + $0x4] sm:$0xf]
    %v1767 = vld [vmem:[%s1764 + $0x8] sm:$0xf]
    %v1768 = vld [vmem:[%s1764 + $0xc] sm:$0xf]
    %v1769 = vld [vmem:[%s1764 + $0x10] sm:$0xf]
    %v1770 = vld [vmem:[%s1764 + $0x14] sm:$0xf]
    %v1771 = vld [vmem:[%s1764 + $0x18] sm:$0xf]
    %v1772 = vld [vmem:[%s1764 + $0x1c] sm:$0xf]
    %v1773 = vld [vmem:[%s1764 + $0x20] sm:$0xf]
    %v1774 = vld [vmem:[%s1764 + $0x24] sm:$0xf]
    %v1775 = vld [vmem:[%s1764 + $0x28] sm:$0xf]
    %v1776 = vld [vmem:[%s1764 + $0x2c] sm:$0xf]
    %v1777 = vld [vmem:[%s1764 + $0x30] sm:$0xf]
    %v1778 = vld [vmem:[%s1764 + $0x34] sm:$0xf]
    %v1779 = vld [vmem:[%s1764 + $0x38] sm:$0xf]
    %v1780 = vld [vmem:[%s1764 + $0x3c] sm:$0xf]
    %v1797 = vunpack.c.l.b16 %v1765
    %v1798 = vunpack.c.l.b16 %v1766
    %v1799 = vunpack.c.l.b16 %v1767
    %v1800 = vunpack.c.l.b16 %v1768
    %v1801 = vunpack.c.l.b16 %v1769
    %v1802 = vunpack.c.l.b16 %v1770
    %v1803 = vunpack.c.l.b16 %v1771
    %v1804 = vunpack.c.l.b16 %v1772
    %v1805 = vunpack.c.l.b16 %v1773
    %v1806 = vunpack.c.l.b16 %v1774
    %v1807 = vunpack.c.l.b16 %v1775
    %v1808 = vunpack.c.l.b16 %v1776
    %v1809 = vunpack.c.l.b16 %v1777
    %v1810 = vunpack.c.l.b16 %v1778
    %v1811 = vunpack.c.l.b16 %v1779
    %v1812 = vunpack.c.l.b16 %v1780
    %v1813 = vpack.c.b16 %v1798, %v1797
    %v1814 = vpack.c.b16 %v1800, %v1799
    %v1815 = vpack.c.b16 %v1802, %v1801
    %v1816 = vpack.c.b16 %v1804, %v1803
    %v1817 = vpack.c.b16 %v1806, %v1805
    %v1818 = vpack.c.b16 %v1808, %v1807
    %v1819 = vpack.c.b16 %v1810, %v1809
    %v1820 = vpack.c.b16 %v1812, %v1811
    %1829 = vmatprep.subr.bf16.mxu0 0
    %1830 = vmatpush1.bf16.msra.mxu0 %v1820
    %1831 = vmatprep.subr.bf16.mxu0 0
    %1832 = vmatpush1.bf16.msra.mxu0 %v1819
    %1833 = vmatprep.subr.bf16.mxu0 0
    %1834 = vmatpush1.bf16.msra.mxu0 %v1818
    %1835 = vmatprep.subr.bf16.mxu0 0
    %1836 = vmatpush1.bf16.msra.mxu0 %v1817
    %1837 = vmatprep.subr.bf16.mxu0 0
    %1838 = vmatpush1.bf16.msra.mxu0 %v1816
    %1839 = vmatprep.subr.bf16.mxu0 0
    %1840 = vmatpush1.bf16.msra.mxu0 %v1815
    %1841 = vmatprep.subr.bf16.mxu0 0
    %1842 = vmatpush1.bf16.msra.mxu0 %v1814
    %1843 = vmatprep.subr.bf16.mxu0 0
    %1844 = vmatpush1.bf16.msra.mxu0 %v1813
    %1845 = vmatprep.subr.bf16.mxu0 0
    %1846 = vmatpush2.bf16.msra.mxu0 0
    %1847 = vmatprep.subr.bf16.mxu0 0
    %1848 = vmatpush2.bf16.msra.mxu0 0
    %1849 = vmatprep.subr.bf16.mxu0 0
    %1850 = vmatpush2.bf16.msra.mxu0 0
    %1851 = vmatprep.subr.bf16.mxu0 0
    %1852 = vmatpush2.bf16.msra.mxu0 0
    %1853 = vmatprep.subr.bf16.mxu0 0
    %1854 = vmatpush2.bf16.msra.mxu0 0
    %1855 = vmatprep.subr.bf16.mxu0 0
    %1856 = vmatpush2.bf16.msra.mxu0 0
    %1857 = vmatprep.subr.bf16.mxu0 0
    %1858 = vmatpush2.bf16.msra.mxu0 0
    %1859 = vmatprep.subr.bf16.mxu0 0
    %1860 = vmatpush2.bf16.msra.mxu0 0
    %1861 = vmatprep.mubr.bf16.mxu0 0
    %1862 = vmatmul.mubr.bf16.gmra.mxu0 %v1541
    %v1863 = vpop.f32.mrf.mxu0
    %v1864 = vadd.f32 0.0, %v1863
    %v1865 = vpop.f32.mrf.mxu0
    %v1866 = vpop.f32.mrf.mxu0
    %v1867 = vadd.f32 0.0, %v1866
    %v1868 = vpop.f32.mrf.mxu0
    %1869 = vdwg.mxu0
    %v1870 = vadd.f32 %v1762, %v1864
    %v1871 = vadd.f32 %v1763, %v1867
    %v1872 = vmax.f32 %v1870, 0.0
    %v1873 = vmax.f32 %v1871, 0.0
    %v1874 = vpack.c.bf16 %v1873, %v1872
    %v1875 = vld [vmem:[%s8] sm:$0x1]
    %v1876 = vld [vmem:[#allocation10] sm:$0xf]
    %v1877 = vld [vmem:[#allocation10 + $0x4] sm:$0xf]
    %v1878 = vld [vmem:[#allocation10 + $0x8] sm:$0xf]
    %v1879 = vld [vmem:[#allocation10 + $0xc] sm:$0xf]
    %v1880 = vld [vmem:[#allocation10 + $0x10] sm:$0xf]
    %v1881 = vld [vmem:[#allocation10 + $0x14] sm:$0xf]
    %v1882 = vld [vmem:[#allocation10 + $0x18] sm:$0xf]
    %v1883 = vld [vmem:[#allocation10 + $0x1c] sm:$0xf]
    %v1884 = vld [vmem:[#allocation10 + $0x20] sm:$0xf]
    %v1885 = vld [vmem:[#allocation10 + $0x24] sm:$0xf]
    %v1886 = vld [vmem:[#allocation10 + $0x28] sm:$0xf]
    %v1887 = vld [vmem:[#allocation10 + $0x2c] sm:$0xf]
    %v1888 = vld [vmem:[#allocation10 + $0x30] sm:$0xf]
    %v1889 = vld [vmem:[#allocation10 + $0x34] sm:$0xf]
    %v1890 = vld [vmem:[#allocation10 + $0x38] sm:$0xf]
    %v1891 = vld [vmem:[#allocation10 + $0x3c] sm:$0xf]
    %v1908 = vunpack.c.l.b16 %v1876
    %v1909 = vunpack.c.l.b16 %v1877
    %v1910 = vunpack.c.l.b16 %v1878
    %v1911 = vunpack.c.l.b16 %v1879
    %v1912 = vunpack.c.l.b16 %v1880
    %v1913 = vunpack.c.l.b16 %v1881
    %v1914 = vunpack.c.l.b16 %v1882
    %v1915 = vunpack.c.l.b16 %v1883
    %v1916 = vunpack.c.l.b16 %v1884
    %v1917 = vunpack.c.l.b16 %v1885
    %v1918 = vunpack.c.l.b16 %v1886
    %v1919 = vunpack.c.l.b16 %v1887
    %v1920 = vunpack.c.l.b16 %v1888
    %v1921 = vunpack.c.l.b16 %v1889
    %v1922 = vunpack.c.l.b16 %v1890
    %v1923 = vunpack.c.l.b16 %v1891
    %v1924 = vpack.c.b16 %v1909, %v1908
    %v1925 = vpack.c.b16 %v1911, %v1910
    %v1926 = vpack.c.b16 %v1913, %v1912
    %v1927 = vpack.c.b16 %v1915, %v1914
    %v1928 = vpack.c.b16 %v1917, %v1916
    %v1929 = vpack.c.b16 %v1919, %v1918
    %v1930 = vpack.c.b16 %v1921, %v1920
    %v1931 = vpack.c.b16 %v1923, %v1922
    %1940 = vmatprep.subr.bf16.mxu0 0
    %1941 = vmatpush1.bf16.msra.mxu0 %v1931
    %1942 = vmatprep.subr.bf16.mxu0 0
    %1943 = vmatpush1.bf16.msra.mxu0 %v1930
    %1944 = vmatprep.subr.bf16.mxu0 0
    %1945 = vmatpush1.bf16.msra.mxu0 %v1929
    %1946 = vmatprep.subr.bf16.mxu0 0
    %1947 = vmatpush1.bf16.msra.mxu0 %v1928
    %1948 = vmatprep.subr.bf16.mxu0 0
    %1949 = vmatpush1.bf16.msra.mxu0 %v1927
    %1950 = vmatprep.subr.bf16.mxu0 0
    %1951 = vmatpush1.bf16.msra.mxu0 %v1926
    %1952 = vmatprep.subr.bf16.mxu0 0
    %1953 = vmatpush1.bf16.msra.mxu0 %v1925
    %1954 = vmatprep.subr.bf16.mxu0 0
    %1955 = vmatpush1.bf16.msra.mxu0 %v1924
    %1956 = vmatprep.subr.bf16.mxu0 0
    %1957 = vmatpush2.bf16.msra.mxu0 0
    %1958 = vmatprep.subr.bf16.mxu0 0
    %1959 = vmatpush2.bf16.msra.mxu0 0
    %1960 = vmatprep.subr.bf16.mxu0 0
    %1961 = vmatpush2.bf16.msra.mxu0 0
    %1962 = vmatprep.subr.bf16.mxu0 0
    %1963 = vmatpush2.bf16.msra.mxu0 0
    %1964 = vmatprep.subr.bf16.mxu0 0
    %1965 = vmatpush2.bf16.msra.mxu0 0
    %1966 = vmatprep.subr.bf16.mxu0 0
    %1967 = vmatpush2.bf16.msra.mxu0 0
    %1968 = vmatprep.subr.bf16.mxu0 0
    %1969 = vmatpush2.bf16.msra.mxu0 0
    %1970 = vmatprep.subr.bf16.mxu0 0
    %1971 = vmatpush2.bf16.msra.mxu0 0
    %1972 = vmatprep.mubr.bf16.mxu0 0
    %1973 = vmatmul.mubr.bf16.gmra.mxu0 %v1874
    %v1974 = vpop.f32.mrf.mxu0
    %v1975 = vadd.f32 0.0, %v1974
    %v1976 = vpop.f32.mrf.mxu0
    %v1977 = vpop.f32.mrf.mxu0
    %v1978 = vadd.f32 0.0, %v1977
    %v1979 = vpop.f32.mrf.mxu0
    %1980 = vdwg.mxu0
    %v1982 = vlaneseq
    %v1983 = vshrl.u32 %v1982, 7
    %v1984 = vsub.s32 0, %v1983
    %v1985 = vrot.slane %v1875, %v1984
    %v1987 = vadd.f32 %v1985, %v1975
    %v1988 = vadd.f32 %v1985, %v1978
    %v1989 = vtanh.pop %v1987
    %v1990 = vtanh.pop %v1988
    %v1991 = vpack.c.bf16 %v1990, %v1989
    %v1992 = vld [vmem:[#allocation11] sm:$0xf]
    %v1993 = vld [vmem:[#allocation11 + $0x4] sm:$0xf]
    %v1994 = vld [vmem:[#allocation11 + $0x8] sm:$0xf]
    %v1995 = vld [vmem:[#allocation11 + $0xc] sm:$0xf]
    %v1996 = vld [vmem:[#allocation11 + $0x10] sm:$0xf]
    %v1997 = vld [vmem:[#allocation11 + $0x14] sm:$0xf]
    %v1998 = vld [vmem:[#allocation11 + $0x18] sm:$0xf]
    %v1999 = vld [vmem:[#allocation11 + $0x1c] sm:$0xf]
    %v2000 = vld [vmem:[#allocation11 + $0x20] sm:$0xf]
    %v2001 = vld [vmem:[#allocation11 + $0x24] sm:$0xf]
    %v2002 = vld [vmem:[#allocation11 + $0x28] sm:$0xf]
    %v2003 = vld [vmem:[#allocation11 + $0x2c] sm:$0xf]
    %v2004 = vld [vmem:[#allocation11 + $0x30] sm:$0xf]
    %v2005 = vld [vmem:[#allocation11 + $0x34] sm:$0xf]
    %v2006 = vld [vmem:[#allocation11 + $0x38] sm:$0xf]
    %v2007 = vld [vmem:[#allocation11 + $0x3c] sm:$0xf]
    %v2008 = vld [vmem:[%s10] sm:$0x1]
    %v2010 = vlaneseq
    %v2011 = vshrl.u32 %v2010, 7
    %v2012 = vsub.s32 0, %v2011
    %v2013 = vrot.slane %v2008, %v2012
    %v2031 = vunpack.c.l.b16 %v1992
    %v2032 = vunpack.c.l.b16 %v1993
    %v2033 = vunpack.c.l.b16 %v1994
    %v2034 = vunpack.c.l.b16 %v1995
    %v2035 = vunpack.c.l.b16 %v1996
    %v2036 = vunpack.c.l.b16 %v1997
    %v2037 = vunpack.c.l.b16 %v1998
    %v2038 = vunpack.c.l.b16 %v1999
    %v2039 = vunpack.c.l.b16 %v2000
    %v2040 = vunpack.c.l.b16 %v2001
    %v2041 = vunpack.c.l.b16 %v2002
    %v2042 = vunpack.c.l.b16 %v2003
    %v2043 = vunpack.c.l.b16 %v2004
    %v2044 = vunpack.c.l.b16 %v2005
    %v2045 = vunpack.c.l.b16 %v2006
    %v2046 = vunpack.c.l.b16 %v2007
    %v2047 = vpack.c.b16 %v2032, %v2031
    %v2048 = vpack.c.b16 %v2034, %v2033
    %v2049 = vpack.c.b16 %v2036, %v2035
    %v2050 = vpack.c.b16 %v2038, %v2037
    %v2051 = vpack.c.b16 %v2040, %v2039
    %v2052 = vpack.c.b16 %v2042, %v2041
    %v2053 = vpack.c.b16 %v2044, %v2043
    %v2054 = vpack.c.b16 %v2046, %v2045
    %2063 = vmatprep.subr.bf16.mxu0 0
    %2064 = vmatpush1.bf16.msra.mxu0 %v2054
    %2065 = vmatprep.subr.bf16.mxu0 0
    %2066 = vmatpush1.bf16.msra.mxu0 %v2053
    %2067 = vmatprep.subr.bf16.mxu0 0
    %2068 = vmatpush1.bf16.msra.mxu0 %v2052
    %2069 = vmatprep.subr.bf16.mxu0 0
    %2070 = vmatpush1.bf16.msra.mxu0 %v2051
    %2071 = vmatprep.subr.bf16.mxu0 0
    %2072 = vmatpush1.bf16.msra.mxu0 %v2050
    %2073 = vmatprep.subr.bf16.mxu0 0
    %2074 = vmatpush1.bf16.msra.mxu0 %v2049
    %2075 = vmatprep.subr.bf16.mxu0 0
    %2076 = vmatpush1.bf16.msra.mxu0 %v2048
    %2077 = vmatprep.subr.bf16.mxu0 0
    %2078 = vmatpush1.bf16.msra.mxu0 %v2047
    %2079 = vmatprep.subr.bf16.mxu0 0
    %2080 = vmatpush2.bf16.msra.mxu0 0
    %2081 = vmatprep.subr.bf16.mxu0 0
    %2082 = vmatpush2.bf16.msra.mxu0 0
    %2083 = vmatprep.subr.bf16.mxu0 0
    %2084 = vmatpush2.bf16.msra.mxu0 0
    %2085 = vmatprep.subr.bf16.mxu0 0
    %2086 = vmatpush2.bf16.msra.mxu0 0
    %2087 = vmatprep.subr.bf16.mxu0 0
    %2088 = vmatpush2.bf16.msra.mxu0 0
    %2089 = vmatprep.subr.bf16.mxu0 0
    %2090 = vmatpush2.bf16.msra.mxu0 0
    %2091 = vmatprep.subr.bf16.mxu0 0
    %2092 = vmatpush2.bf16.msra.mxu0 0
    %2093 = vmatprep.subr.bf16.mxu0 0
    %2094 = vmatpush2.bf16.msra.mxu0 0
    %2095 = vmatprep.mubr.bf16.mxu0 0
    %2096 = vmatmul.mubr.bf16.gmra.mxu0 %v1991
    %v2097 = vpop.f32.mrf.mxu0
    %v2098 = vadd.f32 %v2013, %v2097
    %v2099 = vpop.f32.mrf.mxu0
    %v2100 = vpop.f32.mrf.mxu0
    %v2101 = vadd.f32 %v2013, %v2100
    %v2102 = vpop.f32.mrf.mxu0
    %2103 = vdwg.mxu0
    %v2104 = vlaneseq
    %v2105 = vand.u32 %v2104, 127
    %vm2106 = vcmp.lt.s32.totalorder %v2105, 5
    %v2107 = vsel %vm2106, %v2098, -1e+30
    %v2108 = vsel %vm2106, %v2101, -1e+30
    %2109 = vmax.xlane.f32.xlu0 %v2107
    %v2110 = vpop.xlane.xlu0 %2109
    %2111 = vmax.xlane.f32.xlu0 %v2108
    %v2112 = vpop.xlane.xlu0 %2111
    %v2113 = vsub.f32 %v2107, %v2110
    %v2114 = vsub.f32 %v2108, %v2112
    %v2115 = vmul.f32 %v2113, 1.442695
    %v2116 = vpow.pop %v2115
    %v2117 = vmul.f32 %v2114, 1.442695
    %v2118 = vpow.pop %v2117
    %2119 = vadd.xlane.f32.xlu0 %v2116
    %v2120 = vpop.xlane.xlu0 %2119
    %2121 = vadd.xlane.f32.xlu0 %v2118
    %v2122 = vpop.xlane.xlu0 %2121
    %v2123 = vrcp.pop %v2120
    %v2124 = vmul.f32 1.0, %v2123
    %v2125 = vrcp.pop %v2122
    %v2126 = vmul.f32 1.0, %v2125
    %v2127 = vmul.f32 %v2116, %v2124
    %v2128 = vmul.f32 %v2118, %v2126
    %vm2129 = vcmp.eq.s32.totalorder %v2105, 5
    %v2130 = vsel %vm2129, %v2098, 0.0
    %v2131 = vsel %vm2129, %v2101, 0.0
    %v2132 = vsel %vm2106, %v2127, %v2130
    %v2133 = vsel %vm2106, %v2128, %v2131
    %2134 = vst [vmem:[#allocation13] sm:$0xff] %v2132
    %2135 = vst [vmem:[#allocation13 + $0x8] sm:$0xff] %v2133
    // Predicated region
    $region70: #{tpu_custom_call.1} parent=1 // pred_check
      _
    $region71: #{tpu_custom_call.1} parent=1 // pred_check_branch
      %2137 = sbr.rel (0) target = $region73
    $region72: #{tpu_custom_call.1} parent=1 // pred_region
      %s2139 = ssub.s32 256, 256
      %2140 = vsyncadd [#allocation4], %s2139
      %s2141 = sshll.u32 [#allocation13], 4
      %s2142 = int_to_ptr.vmem [resolvable:$true] %s2141
      %2147 = dma.vmem_to_hbm [thread:$0]  %s2142, 256, %s11, [#allocation4], 128, 128, 8
    $region73: #{tpu_custom_call.1} parent=1 // pred_fallthru
      _
    // Predicated region
    $region74: #{tpu_custom_call.1} parent=1 // pred_check
      _
    $region75: #{tpu_custom_call.1} parent=1 // pred_check_branch
      %2149 = sbr.rel (0) target = $region77
    $region76: #{tpu_custom_call.1} parent=1 // pred_region
      %2150 = dma.done [#allocation4], 256
    $region77: #{tpu_custom_call.1} parent=1 // pred_fallthru
      _
    %2151 = vsyncpa [#allocation3], 1
    %2152 = vsyncpa [#allocation6], 1
    %2153 = vsyncpa [#allocation9], 1
    %2154 = vsyncpa [#allocation12], 1
    %2155 = vsyncpa [#allocation4], 1

// kernel: tpu_custom_call.1
$region0: #{tpu_custom_call.1}
  #allocation0 [shape = 'u32[]', space=smem, size = 0x4, offset = 0x4, fixed_abs, tag = 'smem constant byte address 0x4 - core index']
  #allocation1 [shape = 'u32[144,128]{1,0:T(1,128)}', space=vmem, size = 0x12000, scoped, tag = 'internal scratch']
  %s0 = inlined_call_operand.hbm [shape: bf16[16,1024], index: 0, kind: input, shape index: {}]
  %s1 = inlined_call_operand.hbm [shape: bf16[256,256], index: 1, kind: input, shape index: {}]
  %s2 = inlined_call_operand.vmem [shape: f32[1,256], index: 2, kind: input, shape index: {}]
  %s3 = inlined_call_operand.hbm [shape: bf16[3,256,128], index: 3, kind: input, shape index: {}]
  %s4 = inlined_call_operand.vmem [shape: f32[1,128], index: 4, kind: input, shape index: {}]
  %s5 = inlined_call_operand.hbm [shape: bf16[3,128,128], index: 5, kind: input, shape index: {}]
  %s6 = inlined_call_operand.vmem [shape: f32[1,128], index: 6, kind: input, shape index: {}]
  %s7 = inlined_call_operand.hbm [shape: bf16[1,128,128], index: 7, kind: input, shape index: {}]
  %s8 = inlined_call_operand.vmem [shape: f32[1,128], index: 8, kind: input, shape index: {}]
  %s9 = inlined_call_operand.hbm [shape: bf16[128,128], index: 9, kind: input, shape index: {}]
  %s10 = inlined_call_operand.vmem [shape: f32[1,128], index: 10, kind: input, shape index: {}]
  %s11 = inlined_call_operand.hbm [shape: f32[16,128], index: 11, kind: output, shape index: {}]
  %s12 = sld [smem:[#allocation0]]
  $region78: #{tpu_custom_call.1} parent=0
    _
  %s14 = ssub.s32 1, %s12
  %s15 = scalar_select 0, %s14, %s12
  $region1: #{tpu_custom_call.1} parent=0
    #allocation2 [shape = 'u8[32768]{0}', space=vmem, size = 0x8000, scoped, tag = 'input window, operand 0, single buffered']
    #allocation3 [shape = 's32[1]{0}', space=sflag, size = 0x4, scoped, tag = 'scoped memory for tpu_custom_call.1']
    #allocation4 [shape = 's32[1]{0}', space=sflag, size = 0x4, scoped, tag = 'scoped memory for tpu_custom_call.1']
    #allocation5 [shape = 'u8[131072]{0}', space=vmem, size = 0x20000, scoped, tag = 'input window, operand 1, single buffered']
    #allocation6 [shape = 's32[1]{0}', space=sflag, size = 0x4, scoped, tag = 'scoped memory for tpu_custom_call.1']
    #allocation7 [shape = 'u8[196608]{0}', space=vmem, size = 0x30000, scoped, tag = 'input window, operand 3, single buffered']
    #allocation8 [shape = 'u8[98304]{0}', space=vmem, size = 0x18000, scoped, tag = 'input window, operand 5, single buffered']
    #allocation9 [shape = 's32[1]{0}', space=sflag, size = 0x4, scoped, tag = 'scoped memory for tpu_custom_call.1']
    #allocation10 [shape = 'u8[32768]{0}', space=vmem, size = 0x8000, scoped, tag = 'input window, operand 7, single buffered']
    #allocation11 [shape = 'u8[32768]{0}', space=vmem, size = 0x8000, scoped, tag = 'input window, operand 9, single buffered']
    #allocation12 [shape = 's32[1]{0}', space=sflag, size = 0x4, scoped, tag = 'scoped memory for tpu_custom_call.1']
    #allocation13 [shape = 'u8[8192]{0}', space=vmem, size = 0x2000, scoped, tag = 'output window, operand 0, single buffered']
    %16 = vsyncpa [#allocation3], 0
    %17 = vsyncpa [#allocation6], 0
    %18 = vsyncpa [#allocation9], 0
    %19 = vsyncpa [#allocation12], 0
    %20 = vsyncpa [#allocation4], 0
    // Predicated region
    $region2: #{tpu_custom_call.1} parent=1 // pred_check
      _
    $region3: #{tpu_custom_call.1} parent=1 // pred_check_branch
      %22 = sbr.rel (0) target = $region5
    $region4: #{tpu_custom_call.1} parent=1 // pred_region
      %s24 = ssub.s32 1024, 1024
      %25 = vsyncadd [#allocation3], %s24
      %s26 = sshll.u32 [#allocation2], 4
      %s27 = int_to_ptr.vmem [resolvable:$true] %s26
      %32 = dma.hbm_to_vmem [thread:$0]  %s0, 1024, %s27, [#allocation3], 512, 512, 32
    $region5: #{tpu_custom_call.1} parent=1 // pred_fallthru
      _
    // Predicated region
    $region6: #{tpu_custom_call.1} parent=1 // pred_check
      _
    $region7: #{tpu_custom_call.1} parent=1 // pred_check_branch
      %34 = sbr.rel (0) target = $region9
    $region8: #{tpu_custom_call.1} parent=1 // pred_region
      %s36 = ssub.s32 4096, 4096
      %37 = vsyncadd [#allocation6], %s36
      %s38 = sshll.u32 [#allocation5], 4
      %s39 = int_to_ptr.vmem [resolvable:$true] %s38
      %44 = dma.hbm_to_vmem [thread:$0]  %s1, 4096, %s39, [#allocation6], 128, 128, 8
    $region9: #{tpu_custom_call.1} parent=1 // pred_fallthru
      _
    // Predicated region
    $region10: #{tpu_custom_call.1} parent=1 // pred_check
      _
    $region11: #{tpu_custom_call.1} parent=1 // pred_check_branch
      %46 = sbr.rel (0) target = $region13
    $region12: #{tpu_custom_call.1} parent=1 // pred_region
      _
    $region13: #{tpu_custom_call.1} parent=1 // pred_fallthru
      _
    // Predicated region
    $region14: #{tpu_custom_call.1} parent=1 // pred_check
      _
    $region15: #{tpu_custom_call.1} parent=1 // pred_check_branch
      %48 = sbr.rel (0) target = $region17
    $region16: #{tpu_custom_call.1} parent=1 // pred_region
      %s50 = ssub.s32 6144, 6144
      %51 = vsyncadd [#allocation6], %s50
      %s52 = sshll.u32 [#allocation7], 4
      %s53 = int_to_ptr.vmem [resolvable:$true] %s52
      %58 = dma.hbm_to_vmem [thread:$0]  %s3, 6144, %s53, [#allocation6], 64, 64, 4
    $region17: #{tpu_custom_call.1} parent=1 // pred_fallthru
      _
    // Predicated region
    $region18: #{tpu_custom_call.1} parent=1 // pred_check
      _
    $region19: #{tpu_custom_call.1} parent=1 // pred_check_branch
      %60 = sbr.rel (0) target = $region21
    $region20: #{tpu_custom_call.1} parent=1 // pred_region
      _
    $region21: #{tpu_custom_call.1} parent=1 // pred_fallthru
      _
    // Predicated region
    $region22: #{tpu_custom_call.1} parent=1 // pred_check
      _
    $region23: #{tpu_custom_call.1} parent=1 // pred_check_branch
      %62 = sbr.rel (0) target = $region25
    $region24: #{tpu_custom_call.1} parent=1 // pred_region
      %s64 = ssub.s32 3072, 3072
      %65 = vsyncadd [#allocation9], %s64
      %s66 = sshll.u32 [#allocation8], 4
      %s67 = int_to_ptr.vmem [resolvable:$true] %s66
      %72 = dma.hbm_to_vmem [thread:$0]  %s5, 3072, %s67, [#allocation9], 64, 64, 4
    $region25: #{tpu_custom_call.1} parent=1 // pred_fallthru
      _
    // Predicated region
    $region26: #{tpu_custom_call.1} parent=1 // pred_check
      _
    $region27: #{tpu_custom_call.1} parent=1 // pred_check_branch
      %74 = sbr.rel (0) target = $region29
    $region28: #{tpu_custom_call.1} parent=1 // pred_region
      _
    $region29: #{tpu_custom_call.1} parent=1 // pred_fallthru
      _
    // Predicated region
    $region30: #{tpu_custom_call.1} parent=1 // pred_check
      _
    $region31: #{tpu_custom_call.1} parent=1 // pred_check_branch
      %76 = sbr.rel (0) target = $region33
    $region32: #{tpu_custom_call.1} parent=1 // pred_region
      %s78 = ssub.s32 1024, 1024
      %79 = vsyncadd [#allocation9], %s78
      %s80 = sshll.u32 [#allocation10], 4
      %s81 = int_to_ptr.vmem [resolvable:$true] %s80
      %86 = dma.hbm_to_vmem [thread:$0]  %s7, 1024, %s81, [#allocation9], 64, 64, 4
    $region33: #{tpu_custom_call.1} parent=1 // pred_fallthru
      _
    // Predicated region
    $region34: #{tpu_custom_call.1} parent=1 // pred_check
      _
    $region35: #{tpu_custom_call.1} parent=1 // pred_check_branch
      %88 = sbr.rel (0) target = $region37
    $region36: #{tpu_custom_call.1} parent=1 // pred_region
      _
    $region37: #{tpu_custom_call.1} parent=1 // pred_fallthru
      _
    // Predicated region
    $region38: #{tpu_custom_call.1} parent=1 // pred_check
      _
    $region39: #{tpu_custom_call.1} parent=1 // pred_check_branch
      %90 = sbr.rel (0) target = $region41
    $region40: #{tpu_custom_call.1} parent=1 // pred_region
      %s92 = ssub.s32 1024, 1024
      %93 = vsyncadd [#allocation12], %s92
      %s94 = sshll.u32 [#allocation11], 4
      %s95 = int_to_ptr.vmem [resolvable:$true] %s94
      %100 = dma.hbm_to_vmem [thread:$0]  %s9, 1024, %s95, [#allocation12], 64, 64, 4
    $region41: #{tpu_custom_call.1} parent=1 // pred_fallthru
      _
    // Predicated region
    $region42: #{tpu_custom_call.1} parent=1 // pred_check
      _
    $region43: #{tpu_custom_call.1} parent=1 // pred_check_branch
      %102 = sbr.rel (0) target = $region45
    $region44: #{tpu_custom_call.1} parent=1 // pred_region
      _
    $region45: #{tpu_custom_call.1} parent=1 // pred_fallthru
      _
    // Predicated region
    $region46: #{tpu_custom_call.1} parent=1 // pred_check
      _
    $region47: #{tpu_custom_call.1} parent=1 // pred_check_branch
      %104 = sbr.rel (0) target = $region49
    $region48: #{tpu_custom_call.1} parent=1 // pred_region
      %105 = dma.done [#allocation3], 1024
    $region49: #{tpu_custom_call.1} parent=1 // pred_fallthru
      _
    // Predicated region
    $region50: #{tpu_custom_call.1} parent=1 // pred_check
      _
    $region51: #{tpu_custom_call.1} parent=1 // pred_check_branch
      %107 = sbr.rel (0) target = $region53
    $region52: #{tpu_custom_call.1} parent=1 // pred_region
      %108 = dma.done [#allocation6], 4096
    $region53: #{tpu_custom_call.1} parent=1 // pred_fallthru
      _
    // Predicated region
    $region54: #{tpu_custom_call.1} parent=1 // pred_check
      _
    $region55: #{tpu_custom_call.1} parent=1 // pred_check_branch
      %110 = sbr.rel (0) target = $region57
    $region56: #{tpu_custom_call.1} parent=1 // pred_region
      %111 = dma.done [#allocation6], 6144
    $region57: #{tpu_custom_call.1} parent=1 // pred_fallthru
      _
    // Predicated region
    $region58: #{tpu_custom_call.1} parent=1 // pred_check
      _
    $region59: #{tpu_custom_call.1} parent=1 // pred_check_branch
      %113 = sbr.rel (0) target = $region61
    $region60: #{tpu_custom_call.1} parent=1 // pred_region
      %114 = dma.done [#allocation9], 3072
    $region61: #{tpu_custom_call.1} parent=1 // pred_fallthru
      _
    // Predicated region
    $region62: #{tpu_custom_call.1} parent=1 // pred_check
      _
    $region63: #{tpu_custom_call.1} parent=1 // pred_check_branch
      %116 = sbr.rel (0) target = $region65
    $region64: #{tpu_custom_call.1} parent=1 // pred_region
      %117 = dma.done [#allocation9], 1024
    $region65: #{tpu_custom_call.1} parent=1 // pred_fallthru
      _
    // Predicated region
    $region66: #{tpu_custom_call.1} parent=1 // pred_check
      _
    $region67: #{tpu_custom_call.1} parent=1 // pred_check_branch
      %119 = sbr.rel (0) target = $region69
    $region68: #{tpu_custom_call.1} parent=1 // pred_region
      %120 = dma.done [#allocation12], 1024
    $region69: #{tpu_custom_call.1} parent=1 // pred_fallthru
      _
    %v122 = vld [vmem:[%s2] sm:$0x3]
    %v123 = vld [vmem:[#allocation2] sm:$0xff]
    %v124 = vld [vmem:[#allocation2 + $0x20] sm:$0xff]
    %v125 = vld [vmem:[#allocation5] sm:$0xff]
    %v126 = vld [vmem:[#allocation5 + $0x8] sm:$0xff]
    %v127 = vld [vmem:[#allocation5 + $0x10] sm:$0xff]
    %v128 = vld [vmem:[#allocation5 + $0x18] sm:$0xff]
    %v129 = vld [vmem:[#allocation5 + $0x20] sm:$0xff]
    %v130 = vld [vmem:[#allocation5 + $0x28] sm:$0xff]
    %v131 = vld [vmem:[#allocation5 + $0x30] sm:$0xff]
    %v132 = vld [vmem:[#allocation5 + $0x38] sm:$0xff]
    %v133 = vld [vmem:[#allocation5 + $0x40] sm:$0xff]
    %v134 = vld [vmem:[#allocation5 + $0x48] sm:$0xff]
    %v135 = vld [vmem:[#allocation5 + $0x50] sm:$0xff]
    %v136 = vld [vmem:[#allocation5 + $0x58] sm:$0xff]
    %v137 = vld [vmem:[#allocation5 + $0x60] sm:$0xff]
    %v138 = vld [vmem:[#allocation5 + $0x68] sm:$0xff]
    %v139 = vld [vmem:[#allocation5 + $0x70] sm:$0xff]
    %v140 = vld [vmem:[#allocation5 + $0x78] sm:$0xff]
    %v141 = vld [vmem:[#allocation5 + $0x80] sm:$0xff]
    %v142 = vld [vmem:[#allocation5 + $0x88] sm:$0xff]
    %v143 = vld [vmem:[#allocation5 + $0x90] sm:$0xff]
    %v144 = vld [vmem:[#allocation5 + $0x98] sm:$0xff]
    %v145 = vld [vmem:[#allocation5 + $0xa0] sm:$0xff]
    %v146 = vld [vmem:[#allocation5 + $0xa8] sm:$0xff]
    %v147 = vld [vmem:[#allocation5 + $0xb0] sm:$0xff]
    %v148 = vld [vmem:[#allocation5 + $0xb8] sm:$0xff]
    %v149 = vld [vmem:[#allocation5 + $0xc0] sm:$0xff]
    %v150 = vld [vmem:[#allocation5 + $0xc8] sm:$0xff]
    %v151 = vld [vmem:[#allocation5 + $0xd0] sm:$0xff]
    %v152 = vld [vmem:[#allocation5 + $0xd8] sm:$0xff]
    %v153 = vld [vmem:[#allocation5 + $0xe0] sm:$0xff]
    %v154 = vld [vmem:[#allocation5 + $0xe8] sm:$0xff]
    %v155 = vld [vmem:[#allocation5 + $0xf0] sm:$0xff]
    %v156 = vld [vmem:[#allocation5 + $0xf8] sm:$0xff]
    %v158 = vlaneseq
    %v159 = vshrl.u32 %v158, 7
    %v160 = vsub.s32 0, %v159
    %v161 = vrot.slane %v122, %v160
    %v162 = vlaneseq
    %v163 = vshrl.u32 %v162, 7
    %v164 = vsub.s32 1, %v163
    %v165 = vrot.slane %v122, %v164
    %v170 = vunpack.c.l.b16 %v123
    %v171 = vunpack.c.h.b16 %v123
    %v172 = vunpack.c.l.b16 %v124
    %v173 = vunpack.c.h.b16 %v124
    %v174 = vpack.c.b16 %v172, %v170
    %v175 = vpack.c.b16 %v173, %v171
    %v210 = vunpack.c.l.b16 %v125
    %v211 = vunpack.c.h.b16 %v125
    %v212 = vunpack.c.l.b16 %v126
    %v213 = vunpack.c.h.b16 %v126
    %v214 = vunpack.c.l.b16 %v127
    %v215 = vunpack.c.h.b16 %v127
    %v216 = vunpack.c.l.b16 %v128
    %v217 = vunpack.c.h.b16 %v128
    %v218 = vunpack.c.l.b16 %v129
    %v219 = vunpack.c.h.b16 %v129
    %v220 = vunpack.c.l.b16 %v130
    %v221 = vunpack.c.h.b16 %v130
    %v222 = vunpack.c.l.b16 %v131
    %v223 = vunpack.c.h.b16 %v131
    %v224 = vunpack.c.l.b16 %v132
    %v225 = vunpack.c.h.b16 %v132
    %v226 = vunpack.c.l.b16 %v133
    %v227 = vunpack.c.h.b16 %v133
    %v228 = vunpack.c.l.b16 %v134
    %v229 = vunpack.c.h.b16 %v134
    %v230 = vunpack.c.l.b16 %v135
    %v231 = vunpack.c.h.b16 %v135
    %v232 = vunpack.c.l.b16 %v136
    %v233 = vunpack.c.h.b16 %v136
    %v234 = vunpack.c.l.b16 %v137
    %v235 = vunpack.c.h.b16 %v137
    %v236 = vunpack.c.l.b16 %v138
    %v237 = vunpack.c.h.b16 %v138
    %v238 = vunpack.c.l.b16 %v139
    %v239 = vunpack.c.h.b16 %v139
    %v240 = vunpack.c.l.b16 %v140
    %v241 = vunpack.c.h.b16 %v140
    %v242 = vunpack.c.l.b16 %v141
    %v243 = vunpack.c.h.b16 %v141
    %v244 = vunpack.c.l.b16 %v142
    %v245 = vunpack.c.h.b16 %v142
    %v246 = vunpack.c.l.b16 %v143
    %v247 = vunpack.c.h.b16 %v143
    %v248 = vunpack.c.l.b16 %v144
    %v249 = vunpack.c.h.b16 %v144
    %v250 = vunpack.c.l.b16 %v145
    %v251 = vunpack.c.h.b16 %v145
    %v252 = vunpack.c.l.b16 %v146
    %v253 = vunpack.c.h.b16 %v146
    %v254 = vunpack.c.l.b16 %v147
    %v255 = vunpack.c.h.b16 %v147
    %v256 = vunpack.c.l.b16 %v148
    %v257 = vunpack.c.h.b16 %v148
    %v258 = vunpack.c.l.b16 %v149
    %v259 = vunpack.c.h.b16 %v149
    %v260 = vunpack.c.l.b16 %v150
    %v261 = vunpack.c.h.b16 %v150
    %v262 = vunpack.c.l.b16 %v151
    %v263 = vunpack.c.h.b16 %v151
    %v264 = vunpack.c.l.b16 %v152
    %v265 = vunpack.c.h.b16 %v152
    %v266 = vunpack.c.l.b16 %v153
    %v267 = vunpack.c.h.b16 %v153
    %v268 = vunpack.c.l.b16 %v154
    %v269 = vunpack.c.h.b16 %v154
    %v270 = vunpack.c.l.b16 %v155
    %v271 = vunpack.c.h.b16 %v155
    %v272 = vunpack.c.l.b16 %v156
    %v273 = vunpack.c.h.b16 %v156
    %v274 = vpack.c.b16 %v212, %v210
    %v275 = vpack.c.b16 %v213, %v211
    %v276 = vpack.c.b16 %v216, %v214
    %v277 = vpack.c.b16 %v217, %v215
    %v278 = vpack.c.b16 %v220, %v218
    %v279 = vpack.c.b16 %v221, %v219
    %v280 = vpack.c.b16 %v224, %v222
    %v281 = vpack.c.b16 %v225, %v223
    %v282 = vpack.c.b16 %v228, %v226
    %v283 = vpack.c.b16 %v229, %v227
    %v284 = vpack.c.b16 %v232, %v230
    %v285 = vpack.c.b16 %v233, %v231
    %v286 = vpack.c.b16 %v236, %v234
    %v287 = vpack.c.b16 %v237, %v235
    %v288 = vpack.c.b16 %v240, %v238
    %v289 = vpack.c.b16 %v241, %v239
    %v290 = vpack.c.b16 %v244, %v242
    %v291 = vpack.c.b16 %v245, %v243
    %v292 = vpack.c.b16 %v248, %v246
    %v293 = vpack.c.b16 %v249, %v247
    %v294 = vpack.c.b16 %v252, %v250
    %v295 = vpack.c.b16 %v253, %v251
    %v296 = vpack.c.b16 %v256, %v254
    %v297 = vpack.c.b16 %v257, %v255
    %v298 = vpack.c.b16 %v260, %v258
    %v299 = vpack.c.b16 %v261, %v259
    %v300 = vpack.c.b16 %v264, %v262
    %v301 = vpack.c.b16 %v265, %v263
    %v302 = vpack.c.b16 %v268, %v266
    %v303 = vpack.c.b16 %v269, %v267
    %v304 = vpack.c.b16 %v272, %v270
    %v305 = vpack.c.b16 %v273, %v271
    %338 = vmatprep.subr.bf16.mxu0 %v289
    %339 = vmatpush1.bf16.msra.mxu0 %v288
    %340 = vmatprep.subr.bf16.mxu0 %v287
    %341 = vmatpush1.bf16.msra.mxu0 %v286
    %342 = vmatprep.subr.bf16.mxu0 %v285
    %343 = vmatpush1.bf16.msra.mxu0 %v284
    %344 = vmatprep.subr.bf16.mxu0 %v283
    %345 = vmatpush1.bf16.msra.mxu0 %v282
    %346 = vmatprep.subr.bf16.mxu0 %v281
    %347 = vmatpush1.bf16.msra.mxu0 %v280
    %348 = vmatprep.subr.bf16.mxu0 %v279
    %349 = vmatpush1.bf16.msra.mxu0 %v278
    %350 = vmatprep.subr.bf16.mxu0 %v277
    %351 = vmatpush1.bf16.msra.mxu0 %v276
    %352 = vmatprep.subr.bf16.mxu0 %v275
    %353 = vmatpush1.bf16.msra.mxu0 %v274
    %354 = vmatprep.subr.bf16.mxu0 %v305
    %355 = vmatpush2.bf16.msra.mxu0 %v304
    %356 = vmatprep.subr.bf16.mxu0 %v303
    %357 = vmatpush2.bf16.msra.mxu0 %v302
    %358 = vmatprep.subr.bf16.mxu0 %v301
    %359 = vmatpush2.bf16.msra.mxu0 %v300
    %360 = vmatprep.subr.bf16.mxu0 %v299
    %361 = vmatpush2.bf16.msra.mxu0 %v298
    %362 = vmatprep.subr.bf16.mxu0 %v297
    %363 = vmatpush2.bf16.msra.mxu0 %v296
    %364 = vmatprep.subr.bf16.mxu0 %v295
    %365 = vmatpush2.bf16.msra.mxu0 %v294
    %366 = vmatprep.subr.bf16.mxu0 %v293
    %367 = vmatpush2.bf16.msra.mxu0 %v292
    %368 = vmatprep.subr.bf16.mxu0 %v291
    %369 = vmatpush2.bf16.msra.mxu0 %v290
    %370 = vmatprep.mubr.bf16.mxu0 %v175
    %371 = vmatmul.mubr.bf16.gmra.mxu0 %v174
    %v372 = vpop.f32.mrf.mxu0
    %v373 = vadd.f32 %v161, %v372
    %v374 = vpop.f32.mrf.mxu0
    %v375 = vadd.f32 %v165, %v374
    %v376 = vpop.f32.mrf.mxu0
    %v377 = vadd.f32 %v161, %v376
    %v378 = vpop.f32.mrf.mxu0
    %v379 = vadd.f32 %v165, %v378
    %380 = vdwg.mxu0
    %v381 = vmax.f32 %v373, 0.0
    %v382 = vmax.f32 %v375, 0.0
    %v383 = vmax.f32 %v377, 0.0
    %v384 = vmax.f32 %v379, 0.0
    %v385 = vpack.c.bf16 %v383, %v381
    %v386 = vpack.c.bf16 %v384, %v382
    %v387 = vld [vmem:[#allocation2 + $0x4] sm:$0xff]
    %v388 = vld [vmem:[#allocation2 + $0x24] sm:$0xff]
    %v391 = vunpack.c.l.b16 %v387
    %v392 = vunpack.c.h.b16 %v387
    %v393 = vunpack.c.l.b16 %v388
    %v394 = vunpack.c.h.b16 %v388
    %v395 = vpack.c.b16 %v393, %v391
    %v396 = vpack.c.b16 %v394, %v392
    %399 = vmatprep.subr.bf16.mxu0 %v289
    %400 = vmatpush1.bf16.msra.mxu0 %v288
    %401 = vmatprep.subr.bf16.mxu0 %v287
    %402 = vmatpush1.bf16.msra.mxu0 %v286
    %403 = vmatprep.subr.bf16.mxu0 %v285
    %404 = vmatpush1.bf16.msra.mxu0 %v284
    %405 = vmatprep.subr.bf16.mxu0 %v283
    %406 = vmatpush1.bf16.msra.mxu0 %v282
    %407 = vmatprep.subr.bf16.mxu0 %v281
    %408 = vmatpush1.bf16.msra.mxu0 %v280
    %409 = vmatprep.subr.bf16.mxu0 %v279
    %410 = vmatpush1.bf16.msra.mxu0 %v278
    %411 = vmatprep.subr.bf16.mxu0 %v277
    %412 = vmatpush1.bf16.msra.mxu0 %v276
    %413 = vmatprep.subr.bf16.mxu0 %v275
    %414 = vmatpush1.bf16.msra.mxu0 %v274
    %415 = vmatprep.subr.bf16.mxu0 %v305
    %416 = vmatpush2.bf16.msra.mxu0 %v304
    %417 = vmatprep.subr.bf16.mxu0 %v303
    %418 = vmatpush2.bf16.msra.mxu0 %v302
    %419 = vmatprep.subr.bf16.mxu0 %v301
    %420 = vmatpush2.bf16.msra.mxu0 %v300
    %421 = vmatprep.subr.bf16.mxu0 %v299
    %422 = vmatpush2.bf16.msra.mxu0 %v298
    %423 = vmatprep.subr.bf16.mxu0 %v297
    %424 = vmatpush2.bf16.msra.mxu0 %v296
    %425 = vmatprep.subr.bf16.mxu0 %v295
    %426 = vmatpush2.bf16.msra.mxu0 %v294
    %427 = vmatprep.subr.bf16.mxu0 %v293
    %428 = vmatpush2.bf16.msra.mxu0 %v292
    %429 = vmatprep.subr.bf16.mxu0 %v291
    %430 = vmatpush2.bf16.msra.mxu0 %v290
    %431 = vmatprep.mubr.bf16.mxu0 %v396
    %432 = vmatmul.mubr.bf16.gmra.mxu0 %v395
    %v433 = vpop.f32.mrf.mxu0
    %v434 = vadd.f32 %v161, %v433
    %v435 = vpop.f32.mrf.mxu0
    %v436 = vadd.f32 %v165, %v435
    %v437 = vpop.f32.mrf.mxu0
    %v438 = vadd.f32 %v161, %v437
    %v439 = vpop.f32.mrf.mxu0
    %v440 = vadd.f32 %v165, %v439
    %441 = vdwg.mxu0
    %v442 = vmax.f32 %v434, 0.0
    %v443 = vmax.f32 %v436, 0.0
    %v444 = vmax.f32 %v438, 0.0
    %v445 = vmax.f32 %v440, 0.0
    %v446 = vpack.c.bf16 %v444, %v442
    %v447 = vpack.c.bf16 %v445, %v443
    %v448 = vld [vmem:[#allocation2 + $0x8] sm:$0xff]
    %v449 = vld [vmem:[#allocation2 + $0x28] sm:$0xff]
    %v452 = vunpack.c.l.b16 %v448
    %v453 = vunpack.c.h.b16 %v448
    %v454 = vunpack.c.l.b16 %v449
    %v455 = vunpack.c.h.b16 %v449
    %v456 = vpack.c.b16 %v454, %v452
    %v457 = vpack.c.b16 %v455, %v453
    %460 = vmatprep.subr.bf16.mxu0 %v289
    %461 = vmatpush1.bf16.msra.mxu0 %v288
    %462 = vmatprep.subr.bf16.mxu0 %v287
    %463 = vmatpush1.bf16.msra.mxu0 %v286
    %464 = vmatprep.subr.bf16.mxu0 %v285
    %465 = vmatpush1.bf16.msra.mxu0 %v284
    %466 = vmatprep.subr.bf16.mxu0 %v283
    %467 = vmatpush1.bf16.msra.mxu0 %v282
    %468 = vmatprep.subr.bf16.mxu0 %v281
    %469 = vmatpush1.bf16.msra.mxu0 %v280
    %470 = vmatprep.subr.bf16.mxu0 %v279
    %471 = vmatpush1.bf16.msra.mxu0 %v278
    %472 = vmatprep.subr.bf16.mxu0 %v277
    %473 = vmatpush1.bf16.msra.mxu0 %v276
    %474 = vmatprep.subr.bf16.mxu0 %v275
    %475 = vmatpush1.bf16.msra.mxu0 %v274
    %476 = vmatprep.subr.bf16.mxu0 %v305
    %477 = vmatpush2.bf16.msra.mxu0 %v304
    %478 = vmatprep.subr.bf16.mxu0 %v303
    %479 = vmatpush2.bf16.msra.mxu0 %v302
    %480 = vmatprep.subr.bf16.mxu0 %v301
    %481 = vmatpush2.bf16.msra.mxu0 %v300
    %482 = vmatprep.subr.bf16.mxu0 %v299
    %483 = vmatpush2.bf16.msra.mxu0 %v298
    %484 = vmatprep.subr.bf16.mxu0 %v297
    %485 = vmatpush2.bf16.msra.mxu0 %v296
    %486 = vmatprep.subr.bf16.mxu0 %v295
    %487 = vmatpush2.bf16.msra.mxu0 %v294
    %488 = vmatprep.subr.bf16.mxu0 %v293
    %489 = vmatpush2.bf16.msra.mxu0 %v292
    %490 = vmatprep.subr.bf16.mxu0 %v291
    %491 = vmatpush2.bf16.msra.mxu0 %v290
    %492 = vmatprep.mubr.bf16.mxu0 %v457
    %493 = vmatmul.mubr.bf16.gmra.mxu0 %v456
    %v494 = vpop.f32.mrf.mxu0
    %v495 = vadd.f32 %v161, %v494
    %v496 = vpop.f32.mrf.mxu0
    %v497 = vadd.f32 %v165, %v496
    %v498 = vpop.f32.mrf.mxu0
    %v499 = vadd.f32 %v161, %v498
    %v500 = vpop.f32.mrf.mxu0
    %v501 = vadd.f32 %v165, %v500
    %502 = vdwg.mxu0
    %v503 = vmax.f32 %v495, 0.0
    %v504 = vmax.f32 %v497, 0.0
    %v505 = vmax.f32 %v499, 0.0
    %v506 = vmax.f32 %v501, 0.0
    %v507 = vpack.c.bf16 %v505, %v503
    %v508 = vpack.c.bf16 %v506, %v504
    %v509 = vld [vmem:[#allocation2 + $0xc] sm:$0xff]
    %v510 = vld [vmem:[#allocation2 + $0x2c] sm:$0xff]
    %v513 = vunpack.c.l.b16 %v509
    %v514 = vunpack.c.h.b16 %v509
    %v515 = vunpack.c.l.b16 %v510
    %v516 = vunpack.c.h.b16 %v510
    %v517 = vpack.c.b16 %v515, %v513
    %v518 = vpack.c.b16 %v516, %v514
    %521 = vmatprep.subr.bf16.mxu0 %v289
    %522 = vmatpush1.bf16.msra.mxu0 %v288
    %523 = vmatprep.subr.bf16.mxu0 %v287
    %524 = vmatpush1.bf16.msra.mxu0 %v286
    %525 = vmatprep.subr.bf16.mxu0 %v285
    %526 = vmatpush1.bf16.msra.mxu0 %v284
    %527 = vmatprep.subr.bf16.mxu0 %v283
    %528 = vmatpush1.bf16.msra.mxu0 %v282
    %529 = vmatprep.subr.bf16.mxu0 %v281
    %530 = vmatpush1.bf16.msra.mxu0 %v280
    %531 = vmatprep.subr.bf16.mxu0 %v279
    %532 = vmatpush1.bf16.msra.mxu0 %v278
    %533 = vmatprep.subr.bf16.mxu0 %v277
    %534 = vmatpush1.bf16.msra.mxu0 %v276
    %535 = vmatprep.subr.bf16.mxu0 %v275
    %536 = vmatpush1.bf16.msra.mxu0 %v274
    %537 = vmatprep.subr.bf16.mxu0 %v305
    %538 = vmatpush2.bf16.msra.mxu0 %v304
    %539 = vmatprep.subr.bf16.mxu0 %v303
    %540 = vmatpush2.bf16.msra.mxu0 %v302
    %541 = vmatprep.subr.bf16.mxu0 %v301
    %542 = vmatpush2.bf16.msra.mxu0 %v300
    %543 = vmatprep.subr.bf16.mxu0 %v299
    %544 = vmatpush2.bf16.msra.mxu0 %v298
    %545 = vmatprep.subr.bf16.mxu0 %v297
    %546 = vmatpush2.bf16.msra.mxu0 %v296
    %547 = vmatprep.subr.bf16.mxu0 %v295
    %548 = vmatpush2.bf16.msra.mxu0 %v294
    %549 = vmatprep.subr.bf16.mxu0 %v293
    %550 = vmatpush2.bf16.msra.mxu0 %v292
    %551 = vmatprep.subr.bf16.mxu0 %v291
    %552 = vmatpush2.bf16.msra.mxu0 %v290
    %553 = vmatprep.mubr.bf16.mxu0 %v518
    %554 = vmatmul.mubr.bf16.gmra.mxu0 %v517
    %v555 = vpop.f32.mrf.mxu0
    %v556 = vadd.f32 %v161, %v555
    %v557 = vpop.f32.mrf.mxu0
    %v558 = vadd.f32 %v165, %v557
    %v559 = vpop.f32.mrf.mxu0
    %v560 = vadd.f32 %v161, %v559
    %v561 = vpop.f32.mrf.mxu0
    %v562 = vadd.f32 %v165, %v561
    %563 = vdwg.mxu0
    %v564 = vmax.f32 %v556, 0.0
    %v565 = vmax.f32 %v558, 0.0
    %v566 = vmax.f32 %v560, 0.0
    %v567 = vmax.f32 %v562, 0.0
    %v568 = vpack.c.bf16 %v566, %v564
    %v569 = vpack.c.bf16 %v567, %v565
    %v570 = vld [vmem:[#allocation2 + $0x10] sm:$0xff]
    %v571 = vld [vmem:[#allocation2 + $0x30] sm:$0xff]
    %v574 = vunpack.c.l.b16 %v570
    %v575 = vunpack.c.h.b16 %v570
    %v576 = vunpack.c.l.b16 %v571
    %v577 = vunpack.c.h.b16 %v571
    %v578 = vpack.c.b16 %v576, %v574
    %v579 = vpack.c.b16 %v577, %v575
    %582 = vmatprep.subr.bf16.mxu0 %v289
    %583 = vmatpush1.bf16.msra.mxu0 %v288
    %584 = vmatprep.subr.bf16.mxu0 %v287
    %585 = vmatpush1.bf16.msra.mxu0 %v286
    %586 = vmatprep.subr.bf16.mxu0 %v285
    %587 = vmatpush1.bf16.msra.mxu0 %v284
    %588 = vmatprep.subr.bf16.mxu0 %v283
    %589 = vmatpush1.bf16.msra.mxu0 %v282
    %590 = vmatprep.subr.bf16.mxu0 %v281
    %591 = vmatpush1.bf16.msra.mxu0 %v280
    %592 = vmatprep.subr.bf16.mxu0 %v279
    %593 = vmatpush1.bf16.msra.mxu0 %v278
    %594 = vmatprep.subr.bf16.mxu0 %v277
    %595 = vmatpush1.bf16.msra.mxu0 %v276
    %596 = vmatprep.subr.bf16.mxu0 %v275
    %597 = vmatpush1.bf16.msra.mxu0 %v274
    %598 = vmatprep.subr.bf16.mxu0 %v305
    %599 = vmatpush2.bf16.msra.mxu0 %v304
    %600 = vmatprep.subr.bf16.mxu0 %v303
    %601 = vmatpush2.bf16.msra.mxu0 %v302
    %602 = vmatprep.subr.bf16.mxu0 %v301
    %603 = vmatpush2.bf16.msra.mxu0 %v300
    %604 = vmatprep.subr.bf16.mxu0 %v299
    %605 = vmatpush2.bf16.msra.mxu0 %v298
    %606 = vmatprep.subr.bf16.mxu0 %v297
    %607 = vmatpush2.bf16.msra.mxu0 %v296
    %608 = vmatprep.subr.bf16.mxu0 %v295
    %609 = vmatpush2.bf16.msra.mxu0 %v294
    %610 = vmatprep.subr.bf16.mxu0 %v293
    %611 = vmatpush2.bf16.msra.mxu0 %v292
    %612 = vmatprep.subr.bf16.mxu0 %v291
    %613 = vmatpush2.bf16.msra.mxu0 %v290
    %614 = vmatprep.mubr.bf16.mxu0 %v579
    %615 = vmatmul.mubr.bf16.gmra.mxu0 %v578
    %v616 = vpop.f32.mrf.mxu0
    %v617 = vadd.f32 %v161, %v616
    %v618 = vpop.f32.mrf.mxu0
    %v619 = vadd.f32 %v165, %v618
    %v620 = vpop.f32.mrf.mxu0
    %v621 = vadd.f32 %v161, %v620
    %v622 = vpop.f32.mrf.mxu0
    %v623 = vadd.f32 %v165, %v622
    %624 = vdwg.mxu0
    %v625 = vmax.f32 %v617, 0.0
    %v626 = vmax.f32 %v619, 0.0
    %v627 = vmax.f32 %v621, 0.0
    %v628 = vmax.f32 %v623, 0.0
    %v629 = vpack.c.bf16 %v627, %v625
    %v630 = vpack.c.bf16 %v628, %v626
    %v631 = vld [vmem:[#allocation2 + $0x14] sm:$0xff]
    %v632 = vld [vmem:[#allocation2 + $0x34] sm:$0xff]
    %v635 = vunpack.c.l.b16 %v631
    %v636 = vunpack.c.h.b16 %v631
    %v637 = vunpack.c.l.b16 %v632
    %v638 = vunpack.c.h.b16 %v632
    %v639 = vpack.c.b16 %v637, %v635
    %v640 = vpack.c.b16 %v638, %v636
    %643 = vmatprep.subr.bf16.mxu0 %v289
    %644 = vmatpush1.bf16.msra.mxu0 %v288
    %645 = vmatprep.subr.bf16.mxu0 %v287
    %646 = vmatpush1.bf16.msra.mxu0 %v286
    %647 = vmatprep.subr.bf16.mxu0 %v285
    %648 = vmatpush1.bf16.msra.mxu0 %v284
    %649 = vmatprep.subr.bf16.mxu0 %v283
    %650 = vmatpush1.bf16.msra.mxu0 %v282
    %651 = vmatprep.subr.bf16.mxu0 %v281
    %652 = vmatpush1.bf16.msra.mxu0 %v280
    %653 = vmatprep.subr.bf16.mxu0 %v279
    %654 = vmatpush1.bf16.msra.mxu0 %v278
    %655 = vmatprep.subr.bf16.mxu0 %v277
    %656 = vmatpush1.bf16.msra.mxu0 %v276
    %657 = vmatprep.subr.bf16.mxu0 %v275
    %658 = vmatpush1.bf16.msra.mxu0 %v274
    %659 = vmatprep.subr.bf16.mxu0 %v305
    %660 = vmatpush2.bf16.msra.mxu0 %v304
    %661 = vmatprep.subr.bf16.mxu0 %v303
    %662 = vmatpush2.bf16.msra.mxu0 %v302
    %663 = vmatprep.subr.bf16.mxu0 %v301
    %664 = vmatpush2.bf16.msra.mxu0 %v300
    %665 = vmatprep.subr.bf16.mxu0 %v299
    %666 = vmatpush2.bf16.msra.mxu0 %v298
    %667 = vmatprep.subr.bf16.mxu0 %v297
    %668 = vmatpush2.bf16.msra.mxu0 %v296
    %669 = vmatprep.subr.bf16.mxu0 %v295
    %670 = vmatpush2.bf16.msra.mxu0 %v294
    %671 = vmatprep.subr.bf16.mxu0 %v293
    %672 = vmatpush2.bf16.msra.mxu0 %v292
    %673 = vmatprep.subr.bf16.mxu0 %v291
    %674 = vmatpush2.bf16.msra.mxu0 %v290
    %675 = vmatprep.mubr.bf16.mxu0 %v640
    %676 = vmatmul.mubr.bf16.gmra.mxu0 %v639
    %v677 = vpop.f32.mrf.mxu0
    %v678 = vadd.f32 %v161, %v677
    %v679 = vpop.f32.mrf.mxu0
    %v680 = vadd.f32 %v165, %v679
    %v681 = vpop.f32.mrf.mxu0
    %v682 = vadd.f32 %v161, %v681
    %v683 = vpop.f32.mrf.mxu0
    %v684 = vadd.f32 %v165, %v683
    %685 = vdwg.mxu0
    %v686 = vmax.f32 %v678, 0.0
    %v687 = vmax.f32 %v680, 0.0
    %v688 = vmax.f32 %v682, 0.0
    %v689 = vmax.f32 %v684, 0.0
    %v690 = vpack.c.bf16 %v688, %v686
    %v691 = vpack.c.bf16 %v689, %v687
    %v692 = vld [vmem:[#allocation2 + $0x18] sm:$0xff]
    %v693 = vld [vmem:[#allocation2 + $0x38] sm:$0xff]
    %v696 = vunpack.c.l.b16 %v692
    %v697 = vunpack.c.h.b16 %v692
    %v698 = vunpack.c.l.b16 %v693
    %v699 = vunpack.c.h.b16 %v693
    %v700 = vpack.c.b16 %v698, %v696
    %v701 = vpack.c.b16 %v699, %v697
    %704 = vmatprep.subr.bf16.mxu0 %v289
    %705 = vmatpush1.bf16.msra.mxu0 %v288
    %706 = vmatprep.subr.bf16.mxu0 %v287
    %707 = vmatpush1.bf16.msra.mxu0 %v286
    %708 = vmatprep.subr.bf16.mxu0 %v285
    %709 = vmatpush1.bf16.msra.mxu0 %v284
    %710 = vmatprep.subr.bf16.mxu0 %v283
    %711 = vmatpush1.bf16.msra.mxu0 %v282
    %712 = vmatprep.subr.bf16.mxu0 %v281
    %713 = vmatpush1.bf16.msra.mxu0 %v280
    %714 = vmatprep.subr.bf16.mxu0 %v279
    %715 = vmatpush1.bf16.msra.mxu0 %v278
    %716 = vmatprep.subr.bf16.mxu0 %v277
    %717 = vmatpush1.bf16.msra.mxu0 %v276
    %718 = vmatprep.subr.bf16.mxu0 %v275
    %719 = vmatpush1.bf16.msra.mxu0 %v274
    %720 = vmatprep.subr.bf16.mxu0 %v305
    %721 = vmatpush2.bf16.msra.mxu0 %v304
    %722 = vmatprep.subr.bf16.mxu0 %v303
    %723 = vmatpush2.bf16.msra.mxu0 %v302
    %724 = vmatprep.subr.bf16.mxu0 %v301
    %725 = vmatpush2.bf16.msra.mxu0 %v300
    %726 = vmatprep.subr.bf16.mxu0 %v299
    %727 = vmatpush2.bf16.msra.mxu0 %v298
    %728 = vmatprep.subr.bf16.mxu0 %v297
    %729 = vmatpush2.bf16.msra.mxu0 %v296
    %730 = vmatprep.subr.bf16.mxu0 %v295
    %731 = vmatpush2.bf16.msra.mxu0 %v294
    %732 = vmatprep.subr.bf16.mxu0 %v293
    %733 = vmatpush2.bf16.msra.mxu0 %v292
    %734 = vmatprep.subr.bf16.mxu0 %v291
    %735 = vmatpush2.bf16.msra.mxu0 %v290
    %736 = vmatprep.mubr.bf16.mxu0 %v701
    %737 = vmatmul.mubr.bf16.gmra.mxu0 %v700
    %v738 = vpop.f32.mrf.mxu0
    %v739 = vadd.f32 %v161, %v738
    %v740 = vpop.f32.mrf.mxu0
    %v741 = vadd.f32 %v165, %v740
    %v742 = vpop.f32.mrf.mxu0
    %v743 = vadd.f32 %v161, %v742
    %v744 = vpop.f32.mrf.mxu0
    %v745 = vadd.f32 %v165, %v744
    %746 = vdwg.mxu0
    %v747 = vmax.f32 %v739, 0.0
    %v748 = vmax.f32 %v741, 0.0
    %v749 = vmax.f32 %v743, 0.0
    %v750 = vmax.f32 %v745, 0.0
    %v751 = vpack.c.bf16 %v749, %v747
    %v752 = vpack.c.bf16 %v750, %v748
    %v753 = vld [vmem:[%s4] sm:$0x1]
    %v754 = vld [vmem:[#allocation7] sm:$0xf]
    %v755 = vld [vmem:[#allocation7 + $0x4] sm:$0xf]
    %v756 = vld [vmem:[#allocation7 + $0x8] sm:$0xf]
    %v757 = vld [vmem:[#allocation7 + $0xc] sm:$0xf]
    %v758 = vld [vmem:[#allocation7 + $0x10] sm:$0xf]
    %v759 = vld [vmem:[#allocation7 + $0x14] sm:$0xf]
    %v760 = vld [vmem:[#allocation7 + $0x18] sm:$0xf]
    %v761 = vld [vmem:[#allocation7 + $0x1c] sm:$0xf]
    %v762 = vld [vmem:[#allocation7 + $0x20] sm:$0xf]
    %v763 = vld [vmem:[#allocation7 + $0x24] sm:$0xf]
    %v764 = vld [vmem:[#allocation7 + $0x28] sm:$0xf]
    %v765 = vld [vmem:[#allocation7 + $0x2c] sm:$0xf]
    %v766 = vld [vmem:[#allocation7 + $0x30] sm:$0xf]
    %v767 = vld [vmem:[#allocation7 + $0x34] sm:$0xf]
    %v768 = vld [vmem:[#allocation7 + $0x38] sm:$0xf]
    %v769 = vld [vmem:[#allocation7 + $0x3c] sm:$0xf]
    %v770 = vld [vmem:[#allocation7 + $0x40] sm:$0xf]
    %v771 = vld [vmem:[#allocation7 + $0x44] sm:$0xf]
    %v772 = vld [vmem:[#allocation7 + $0x48] sm:$0xf]
    %v773 = vld [vmem:[#allocation7 + $0x4c] sm:$0xf]
    %v774 = vld [vmem:[#allocation7 + $0x50] sm:$0xf]
    %v775 = vld [vmem:[#allocation7 + $0x54] sm:$0xf]
    %v776 = vld [vmem:[#allocation7 + $0x58] sm:$0xf]
    %v777 = vld [vmem:[#allocation7 + $0x5c] sm:$0xf]
    %v778 = vld [vmem:[#allocation7 + $0x60] sm:$0xf]
    %v779 = vld [vmem:[#allocation7 + $0x64] sm:$0xf]
    %v780 = vld [vmem:[#allocation7 + $0x68] sm:$0xf]
    %v781 = vld [vmem:[#allocation7 + $0x6c] sm:$0xf]
    %v782 = vld [vmem:[#allocation7 + $0x70] sm:$0xf]
    %v783 = vld [vmem:[#allocation7 + $0x74] sm:$0xf]
    %v784 = vld [vmem:[#allocation7 + $0x78] sm:$0xf]
    %v785 = vld [vmem:[#allocation7 + $0x7c] sm:$0xf]
    %v818 = vunpack.c.l.b16 %v754
    %v819 = vunpack.c.l.b16 %v755
    %v820 = vunpack.c.l.b16 %v756
    %v821 = vunpack.c.l.b16 %v757
    %v822 = vunpack.c.l.b16 %v758
    %v823 = vunpack.c.l.b16 %v759
    %v824 = vunpack.c.l.b16 %v760
    %v825 = vunpack.c.l.b16 %v761
    %v826 = vunpack.c.l.b16 %v762
    %v827 = vunpack.c.l.b16 %v763
    %v828 = vunpack.c.l.b16 %v764
    %v829 = vunpack.c.l.b16 %v765
    %v830 = vunpack.c.l.b16 %v766
    %v831 = vunpack.c.l.b16 %v767
    %v832 = vunpack.c.l.b16 %v768
    %v833 = vunpack.c.l.b16 %v769
    %v834 = vunpack.c.l.b16 %v770
    %v835 = vunpack.c.l.b16 %v771
    %v836 = vunpack.c.l.b16 %v772
    %v837 = vunpack.c.l.b16 %v773
    %v838 = vunpack.c.l.b16 %v774
    %v839 = vunpack.c.l.b16 %v775
    %v840 = vunpack.c.l.b16 %v776
    %v841 = vunpack.c.l.b16 %v777
    %v842 = vunpack.c.l.b16 %v778
    %v843 = vunpack.c.l.b16 %v779
    %v844 = vunpack.c.l.b16 %v780
    %v845 = vunpack.c.l.b16 %v781
    %v846 = vunpack.c.l.b16 %v782
    %v847 = vunpack.c.l.b16 %v783
    %v848 = vunpack.c.l.b16 %v784
    %v849 = vunpack.c.l.b16 %v785
    %v850 = vpack.c.b16 %v819, %v818
    %v851 = vpack.c.b16 %v821, %v820
    %v852 = vpack.c.b16 %v823, %v822
    %v853 = vpack.c.b16 %v825, %v824
    %v854 = vpack.c.b16 %v827, %v826
    %v855 = vpack.c.b16 %v829, %v828
    %v856 = vpack.c.b16 %v831, %v830
    %v857 = vpack.c.b16 %v833, %v832
    %v858 = vpack.c.b16 %v835, %v834
    %v859 = vpack.c.b16 %v837, %v836
    %v860 = vpack.c.b16 %v839, %v838
    %v861 = vpack.c.b16 %v841, %v840
    %v862 = vpack.c.b16 %v843, %v842
    %v863 = vpack.c.b16 %v845, %v844
    %v864 = vpack.c.b16 %v847, %v846
    %v865 = vpack.c.b16 %v849, %v848
    %882 = vmatprep.subr.bf16.mxu0 0
    %883 = vmatpush1.bf16.msra.mxu0 %v857
    %884 = vmatprep.subr.bf16.mxu0 0
    %885 = vmatpush1.bf16.msra.mxu0 %v856
    %886 = vmatprep.subr.bf16.mxu0 0
    %887 = vmatpush1.bf16.msra.mxu0 %v855
    %888 = vmatprep.subr.bf16.mxu0 0
    %889 = vmatpush1.bf16.msra.mxu0 %v854
    %890 = vmatprep.subr.bf16.mxu0 0
    %891 = vmatpush1.bf16.msra.mxu0 %v853
    %892 = vmatprep.subr.bf16.mxu0 0
    %893 = vmatpush1.bf16.msra.mxu0 %v852
    %894 = vmatprep.subr.bf16.mxu0 0
    %895 = vmatpush1.bf16.msra.mxu0 %v851
    %896 = vmatprep.subr.bf16.mxu0 0
    %897 = vmatpush1.bf16.msra.mxu0 %v850
    %898 = vmatprep.subr.bf16.mxu0 0
    %899 = vmatpush2.bf16.msra.mxu0 %v865
    %900 = vmatprep.subr.bf16.mxu0 0
    %901 = vmatpush2.bf16.msra.mxu0 %v864
    %902 = vmatprep.subr.bf16.mxu0 0
    %903 = vmatpush2.bf16.msra.mxu0 %v863
    %904 = vmatprep.subr.bf16.mxu0 0
    %905 = vmatpush2.bf16.msra.mxu0 %v862
    %906 = vmatprep.subr.bf16.mxu0 0
    %907 = vmatpush2.bf16.msra.mxu0 %v861
    %908 = vmatprep.subr.bf16.mxu0 0
    %909 = vmatpush2.bf16.msra.mxu0 %v860
    %910 = vmatprep.subr.bf16.mxu0 0
    %911 = vmatpush2.bf16.msra.mxu0 %v859
    %912 = vmatprep.subr.bf16.mxu0 0
    %913 = vmatpush2.bf16.msra.mxu0 %v858
    %914 = vmatprep.mubr.bf16.mxu0 %v386
    %915 = vmatmul.mubr.bf16.gmra.mxu0 %v385
    %v916 = vpop.f32.mrf.mxu0
    %v917 = vadd.f32 0.0, %v916
    %v918 = vpop.f32.mrf.mxu0
    %v919 = vpop.f32.mrf.mxu0
    %v920 = vadd.f32 0.0, %v919
    %v921 = vpop.f32.mrf.mxu0
    %922 = vdwg.mxu0
    %v924 = vlaneseq
    %v925 = vshrl.u32 %v924, 7
    %v926 = vsub.s32 0, %v925
    %v927 = vrot.slane %v753, %v926
    %v929 = vadd.f32 %v927, %v917
    %v930 = vadd.f32 %v927, %v920
    %s931 = scalar_lea.vmem [#allocation7], 128
    %v932 = vld [vmem:[%s931] sm:$0xf]
    %v933 = vld [vmem:[%s931 + $0x4] sm:$0xf]
    %v934 = vld [vmem:[%s931 + $0x8] sm:$0xf]
    %v935 = vld [vmem:[%s931 + $0xc] sm:$0xf]
    %v936 = vld [vmem:[%s931 + $0x10] sm:$0xf]
    %v937 = vld [vmem:[%s931 + $0x14] sm:$0xf]
    %v938 = vld [vmem:[%s931 + $0x18] sm:$0xf]
    %v939 = vld [vmem:[%s931 + $0x1c] sm:$0xf]
    %v940 = vld [vmem:[%s931 + $0x20] sm:$0xf]
    %v941 = vld [vmem:[%s931 + $0x24] sm:$0xf]
    %v942 = vld [vmem:[%s931 + $0x28] sm:$0xf]
    %v943 = vld [vmem:[%s931 + $0x2c] sm:$0xf]
    %v944 = vld [vmem:[%s931 + $0x30] sm:$0xf]
    %v945 = vld [vmem:[%s931 + $0x34] sm:$0xf]
    %v946 = vld [vmem:[%s931 + $0x38] sm:$0xf]
    %v947 = vld [vmem:[%s931 + $0x3c] sm:$0xf]
    %v948 = vld [vmem:[%s931 + $0x40] sm:$0xf]
    %v949 = vld [vmem:[%s931 + $0x44] sm:$0xf]
    %v950 = vld [vmem:[%s931 + $0x48] sm:$0xf]
    %v951 = vld [vmem:[%s931 + $0x4c] sm:$0xf]
    %v952 = vld [vmem:[%s931 + $0x50] sm:$0xf]
    %v953 = vld [vmem:[%s931 + $0x54] sm:$0xf]
    %v954 = vld [vmem:[%s931 + $0x58] sm:$0xf]
    %v955 = vld [vmem:[%s931 + $0x5c] sm:$0xf]
    %v956 = vld [vmem:[%s931 + $0x60] sm:$0xf]
    %v957 = vld [vmem:[%s931 + $0x64] sm:$0xf]
    %v958 = vld [vmem:[%s931 + $0x68] sm:$0xf]
    %v959 = vld [vmem:[%s931 + $0x6c] sm:$0xf]
    %v960 = vld [vmem:[%s931 + $0x70] sm:$0xf]
    %v961 = vld [vmem:[%s931 + $0x74] sm:$0xf]
    %v962 = vld [vmem:[%s931 + $0x78] sm:$0xf]
    %v963 = vld [vmem:[%s931 + $0x7c] sm:$0xf]
    %v996 = vunpack.c.l.b16 %v932
    %v997 = vunpack.c.l.b16 %v933
    %v998 = vunpack.c.l.b16 %v934
    %v999 = vunpack.c.l.b16 %v935
    %v1000 = vunpack.c.l.b16 %v936
    %v1001 = vunpack.c.l.b16 %v937
    %v1002 = vunpack.c.l.b16 %v938
    %v1003 = vunpack.c.l.b16 %v939
    %v1004 = vunpack.c.l.b16 %v940
    %v1005 = vunpack.c.l.b16 %v941
    %v1006 = vunpack.c.l.b16 %v942
    %v1007 = vunpack.c.l.b16 %v943
    %v1008 = vunpack.c.l.b16 %v944
    %v1009 = vunpack.c.l.b16 %v945
    %v1010 = vunpack.c.l.b16 %v946
    %v1011 = vunpack.c.l.b16 %v947
    %v1012 = vunpack.c.l.b16 %v948
    %v1013 = vunpack.c.l.b16 %v949
    %v1014 = vunpack.c.l.b16 %v950
    %v1015 = vunpack.c.l.b16 %v951
    %v1016 = vunpack.c.l.b16 %v952
    %v1017 = vunpack.c.l.b16 %v953
    %v1018 = vunpack.c.l.b16 %v954
    %v1019 = vunpack.c.l.b16 %v955
    %v1020 = vunpack.c.l.b16 %v956
    %v1021 = vunpack.c.l.b16 %v957
    %v1022 = vunpack.c.l.b16 %v958
    %v1023 = vunpack.c.l.b16 %v959
    %v1024 = vunpack.c.l.b16 %v960
    %v1025 = vunpack.c.l.b16 %v961
    %v1026 = vunpack.c.l.b16 %v962
    %v1027 = vunpack.c.l.b16 %v963
    %v1028 = vpack.c.b16 %v997, %v996
    %v1029 = vpack.c.b16 %v999, %v998
    %v1030 = vpack.c.b16 %v1001, %v1000
    %v1031 = vpack.c.b16 %v1003, %v1002
    %v1032 = vpack.c.b16 %v1005, %v1004
    %v1033 = vpack.c.b16 %v1007, %v1006
    %v1034 = vpack.c.b16 %v1009, %v1008
    %v1035 = vpack.c.b16 %v1011, %v1010
    %v1036 = vpack.c.b16 %v1013, %v1012
    %v1037 = vpack.c.b16 %v1015, %v1014
    %v1038 = vpack.c.b16 %v1017, %v1016
    %v1039 = vpack.c.b16 %v1019, %v1018
    %v1040 = vpack.c.b16 %v1021, %v1020
    %v1041 = vpack.c.b16 %v1023, %v1022
    %v1042 = vpack.c.b16 %v1025, %v1024
    %v1043 = vpack.c.b16 %v1027, %v1026
    %1060 = vmatprep.subr.bf16.mxu0 0
    %1061 = vmatpush1.bf16.msra.mxu0 %v1035
    %1062 = vmatprep.subr.bf16.mxu0 0
    %1063 = vmatpush1.bf16.msra.mxu0 %v1034
    %1064 = vmatprep.subr.bf16.mxu0 0
    %1065 = vmatpush1.bf16.msra.mxu0 %v1033
    %1066 = vmatprep.subr.bf16.mxu0 0
    %1067 = vmatpush1.bf16.msra.mxu0 %v1032
    %1068 = vmatprep.subr.bf16.mxu0 0
    %1069 = vmatpush1.bf16.msra.mxu0 %v1031
    %1070 = vmatprep.subr.bf16.mxu0 0
    %1071 = vmatpush1.bf16.msra.mxu0 %v1030
    %1072 = vmatprep.subr.bf16.mxu0 0
    %1073 = vmatpush1.bf16.msra.mxu0 %v1029
    %1074 = vmatprep.subr.bf16.mxu0 0
    %1075 = vmatpush1.bf16.msra.mxu0 %v1028
    %1076 = vmatprep.subr.bf16.mxu0 0
    %1077 = vmatpush2.bf16.msra.mxu0 %v1043
    %1078 = vmatprep.subr.bf16.mxu0 0
    %1079 = vmatpush2.bf16.msra.mxu0 %v1042
    %1080 = vmatprep.subr.bf16.mxu0 0
    %1081 = vmatpush2.bf16.msra.mxu0 %v1041
    %1082 = vmatprep.subr.bf16.mxu0 0
    %1083 = vmatpush2.bf16.msra.mxu0 %v1040
    %1084 = vmatprep.subr.bf16.mxu0 0
    %1085 = vmatpush2.bf16.msra.mxu0 %v1039
    %1086 = vmatprep.subr.bf16.mxu0 0
    %1087 = vmatpush2.bf16.msra.mxu0 %v1038
    %1088 = vmatprep.subr.bf16.mxu0 0
    %1089 = vmatpush2.bf16.msra.mxu0 %v1037
    %1090 = vmatprep.subr.bf16.mxu0 0
    %1091 = vmatpush2.bf16.msra.mxu0 %v1036
    %1092 = vmatprep.mubr.bf16.mxu0 %v447
    %1093 = vmatmul.mubr.bf16.gmra.mxu0 %v446
    %v1094 = vpop.f32.mrf.mxu0
    %v1095 = vadd.f32 0.0, %v1094
    %v1096 = vpop.f32.mrf.mxu0
    %v1097 = vpop.f32.mrf.mxu0
    %v1098 = vadd.f32 0.0, %v1097
    %v1099 = vpop.f32.mrf.mxu0
    %1100 = vdwg.mxu0
    %v1101 = vadd.f32 %v929, %v1095
    %v1102 = vadd.f32 %v930, %v1098
    %s1103 = scalar_lea.vmem [#allocation7], 256
    %v1104 = vld [vmem:[%s1103] sm:$0xf]
    %v1105 = vld [vmem:[%s1103 + $0x4] sm:$0xf]
    %v1106 = vld [vmem:[%s1103 + $0x8] sm:$0xf]
    %v1107 = vld [vmem:[%s1103 + $0xc] sm:$0xf]
    %v1108 = vld [vmem:[%s1103 + $0x10] sm:$0xf]
    %v1109 = vld [vmem:[%s1103 + $0x14] sm:$0xf]
    %v1110 = vld [vmem:[%s1103 + $0x18] sm:$0xf]
    %v1111 = vld [vmem:[%s1103 + $0x1c] sm:$0xf]
    %v1112 = vld [vmem:[%s1103 + $0x20] sm:$0xf]
    %v1113 = vld [vmem:[%s1103 + $0x24] sm:$0xf]
    %v1114 = vld [vmem:[%s1103 + $0x28] sm:$0xf]
    %v1115 = vld [vmem:[%s1103 + $0x2c] sm:$0xf]
    %v1116 = vld [vmem:[%s1103 + $0x30] sm:$0xf]
    %v1117 = vld [vmem:[%s1103 + $0x34] sm:$0xf]
    %v1118 = vld [vmem:[%s1103 + $0x38] sm:$0xf]
    %v1119 = vld [vmem:[%s1103 + $0x3c] sm:$0xf]
    %v1120 = vld [vmem:[%s1103 + $0x40] sm:$0xf]
    %v1121 = vld [vmem:[%s1103 + $0x44] sm:$0xf]
    %v1122 = vld [vmem:[%s1103 + $0x48] sm:$0xf]
    %v1123 = vld [vmem:[%s1103 + $0x4c] sm:$0xf]
    %v1124 = vld [vmem:[%s1103 + $0x50] sm:$0xf]
    %v1125 = vld [vmem:[%s1103 + $0x54] sm:$0xf]
    %v1126 = vld [vmem:[%s1103 + $0x58] sm:$0xf]
    %v1127 = vld [vmem:[%s1103 + $0x5c] sm:$0xf]
    %v1128 = vld [vmem:[%s1103 + $0x60] sm:$0xf]
    %v1129 = vld [vmem:[%s1103 + $0x64] sm:$0xf]
    %v1130 = vld [vmem:[%s1103 + $0x68] sm:$0xf]
    %v1131 = vld [vmem:[%s1103 + $0x6c] sm:$0xf]
    %v1132 = vld [vmem:[%s1103 + $0x70] sm:$0xf]
    %v1133 = vld [vmem:[%s1103 + $0x74] sm:$0xf]
    %v1134 = vld [vmem:[%s1103 + $0x78] sm:$0xf]
    %v1135 = vld [vmem:[%s1103 + $0x7c] sm:$0xf]
    %v1168 = vunpack.c.l.b16 %v1104
    %v1169 = vunpack.c.l.b16 %v1105
    %v1170 = vunpack.c.l.b16 %v1106
    %v1171 = vunpack.c.l.b16 %v1107
    %v1172 = vunpack.c.l.b16 %v1108
    %v1173 = vunpack.c.l.b16 %v1109
    %v1174 = vunpack.c.l.b16 %v1110
    %v1175 = vunpack.c.l.b16 %v1111
    %v1176 = vunpack.c.l.b16 %v1112
    %v1177 = vunpack.c.l.b16 %v1113
    %v1178 = vunpack.c.l.b16 %v1114
    %v1179 = vunpack.c.l.b16 %v1115
    %v1180 = vunpack.c.l.b16 %v1116
    %v1181 = vunpack.c.l.b16 %v1117
    %v1182 = vunpack.c.l.b16 %v1118
    %v1183 = vunpack.c.l.b16 %v1119
    %v1184 = vunpack.c.l.b16 %v1120
    %v1185 = vunpack.c.l.b16 %v1121
    %v1186 = vunpack.c.l.b16 %v1122
    %v1187 = vunpack.c.l.b16 %v1123
    %v1188 = vunpack.c.l.b16 %v1124
    %v1189 = vunpack.c.l.b16 %v1125
    %v1190 = vunpack.c.l.b16 %v1126
    %v1191 = vunpack.c.l.b16 %v1127
    %v1192 = vunpack.c.l.b16 %v1128
    %v1193 = vunpack.c.l.b16 %v1129
    %v1194 = vunpack.c.l.b16 %v1130
    %v1195 = vunpack.c.l.b16 %v1131
    %v1196 = vunpack.c.l.b16 %v1132
    %v1197 = vunpack.c.l.b16 %v1133
    %v1198 = vunpack.c.l.b16 %v1134
    %v1199 = vunpack.c.l.b16 %v1135
    %v1200 = vpack.c.b16 %v1169, %v1168
    %v1201 = vpack.c.b16 %v1171, %v1170
    %v1202 = vpack.c.b16 %v1173, %v1172
    %v1203 = vpack.c.b16 %v1175, %v1174
    %v1204 = vpack.c.b16 %v1177, %v1176
    %v1205 = vpack.c.b16 %v1179, %v1178
    %v1206 = vpack.c.b16 %v1181, %v1180
    %v1207 = vpack.c.b16 %v1183, %v1182
    %v1208 = vpack.c.b16 %v1185, %v1184
    %v1209 = vpack.c.b16 %v1187, %v1186
    %v1210 = vpack.c.b16 %v1189, %v1188
    %v1211 = vpack.c.b16 %v1191, %v1190
    %v1212 = vpack.c.b16 %v1193, %v1192
    %v1213 = vpack.c.b16 %v1195, %v1194
    %v1214 = vpack.c.b16 %v1197, %v1196
    %v1215 = vpack.c.b16 %v1199, %v1198
    %1232 = vmatprep.subr.bf16.mxu0 0
    %1233 = vmatpush1.bf16.msra.mxu0 %v1207
    %1234 = vmatprep.subr.bf16.mxu0 0
    %1235 = vmatpush1.bf16.msra.mxu0 %v1206
    %1236 = vmatprep.subr.bf16.mxu0 0
    %1237 = vmatpush1.bf16.msra.mxu0 %v1205
    %1238 = vmatprep.subr.bf16.mxu0 0
    %1239 = vmatpush1.bf16.msra.mxu0 %v1204
    %1240 = vmatprep.subr.bf16.mxu0 0
    %1241 = vmatpush1.bf16.msra.mxu0 %v1203
    %1242 = vmatprep.subr.bf16.mxu0 0
    %1243 = vmatpush1.bf16.msra.mxu0 %v1202
    %1244 = vmatprep.subr.bf16.mxu0 0
    %1245 = vmatpush1.bf16.msra.mxu0 %v1201
    %1246 = vmatprep.subr.bf16.mxu0 0
    %1247 = vmatpush1.bf16.msra.mxu0 %v1200
    %1248 = vmatprep.subr.bf16.mxu0 0
    %1249 = vmatpush2.bf16.msra.mxu0 %v1215
    %1250 = vmatprep.subr.bf16.mxu0 0
    %1251 = vmatpush2.bf16.msra.mxu0 %v1214
    %1252 = vmatprep.subr.bf16.mxu0 0
    %1253 = vmatpush2.bf16.msra.mxu0 %v1213
    %1254 = vmatprep.subr.bf16.mxu0 0
    %1255 = vmatpush2.bf16.msra.mxu0 %v1212
    %1256 = vmatprep.subr.bf16.mxu0 0
    %1257 = vmatpush2.bf16.msra.mxu0 %v1211
    %1258 = vmatprep.subr.bf16.mxu0 0
    %1259 = vmatpush2.bf16.msra.mxu0 %v1210
    %1260 = vmatprep.subr.bf16.mxu0 0
    %1261 = vmatpush2.bf16.msra.mxu0 %v1209
    %1262 = vmatprep.subr.bf16.mxu0 0
    %1263 = vmatpush2.bf16.msra.mxu0 %v1208
    %1264 = vmatprep.mubr.bf16.mxu0 %v508
    %1265 = vmatmul.mubr.bf16.gmra.mxu0 %v507
    %v1266 = vpop.f32.mrf.mxu0
    %v1267 = vadd.f32 0.0, %v1266
    %v1268 = vpop.f32.mrf.mxu0
    %v1269 = vpop.f32.mrf.mxu0
    %v1270 = vadd.f32 0.0, %v1269
    %v1271 = vpop.f32.mrf.mxu0
    %1272 = vdwg.mxu0
    %v1273 = vadd.f32 %v1101, %v1267
    %v1274 = vadd.f32 %v1102, %v1270
    %v1275 = vmax.f32 %v1273, 0.0
    %v1276 = vmax.f32 %v1274, 0.0
    %v1277 = vpack.c.bf16 %v1276, %v1275
    %1278 = vmatprep.subr.bf16.mxu0 0
    %1279 = vmatpush1.bf16.msra.mxu0 %v857
    %1280 = vmatprep.subr.bf16.mxu0 0
    %1281 = vmatpush1.bf16.msra.mxu0 %v856
    %1282 = vmatprep.subr.bf16.mxu0 0
    %1283 = vmatpush1.bf16.msra.mxu0 %v855
    %1284 = vmatprep.subr.bf16.mxu0 0
    %1285 = vmatpush1.bf16.msra.mxu0 %v854
    %1286 = vmatprep.subr.bf16.mxu0 0
    %1287 = vmatpush1.bf16.msra.mxu0 %v853
    %1288 = vmatprep.subr.bf16.mxu0 0
    %1289 = vmatpush1.bf16.msra.mxu0 %v852
    %1290 = vmatprep.subr.bf16.mxu0 0
    %1291 = vmatpush1.bf16.msra.mxu0 %v851
    %1292 = vmatprep.subr.bf16.mxu0 0
    %1293 = vmatpush1.bf16.msra.mxu0 %v850
    %1294 = vmatprep.subr.bf16.mxu0 0
    %1295 = vmatpush2.bf16.msra.mxu0 %v865
    %1296 = vmatprep.subr.bf16.mxu0 0
    %1297 = vmatpush2.bf16.msra.mxu0 %v864
    %1298 = vmatprep.subr.bf16.mxu0 0
    %1299 = vmatpush2.bf16.msra.mxu0 %v863
    %1300 = vmatprep.subr.bf16.mxu0 0
    %1301 = vmatpush2.bf16.msra.mxu0 %v862
    %1302 = vmatprep.subr.bf16.mxu0 0
    %1303 = vmatpush2.bf16.msra.mxu0 %v861
    %1304 = vmatprep.subr.bf16.mxu0 0
    %1305 = vmatpush2.bf16.msra.mxu0 %v860
    %1306 = vmatprep.subr.bf16.mxu0 0
    %1307 = vmatpush2.bf16.msra.mxu0 %v859
    %1308 = vmatprep.subr.bf16.mxu0 0
    %1309 = vmatpush2.bf16.msra.mxu0 %v858
    %1310 = vmatprep.mubr.bf16.mxu0 %v508
    %1311 = vmatmul.mubr.bf16.gmra.mxu0 %v507
    %v1312 = vpop.f32.mrf.mxu0
    %v1313 = vadd.f32 0.0, %v1312
    %v1314 = vpop.f32.mrf.mxu0
    %v1315 = vpop.f32.mrf.mxu0
    %v1316 = vadd.f32 0.0, %v1315
    %v1317 = vpop.f32.mrf.mxu0
    %1318 = vdwg.mxu0
    %v1319 = vadd.f32 %v927, %v1313
    %v1320 = vadd.f32 %v927, %v1316
    %1321 = vmatprep.subr.bf16.mxu0 0
    %1322 = vmatpush1.bf16.msra.mxu0 %v1035
    %1323 = vmatprep.subr.bf16.mxu0 0
    %1324 = vmatpush1.bf16.msra.mxu0 %v1034
    %1325 = vmatprep.subr.bf16.mxu0 0
    %1326 = vmatpush1.bf16.msra.mxu0 %v1033
    %1327 = vmatprep.subr.bf16.mxu0 0
    %1328 = vmatpush1.bf16.msra.mxu0 %v1032
    %1329 = vmatprep.subr.bf16.mxu0 0
    %1330 = vmatpush1.bf16.msra.mxu0 %v1031
    %1331 = vmatprep.subr.bf16.mxu0 0
    %1332 = vmatpush1.bf16.msra.mxu0 %v1030
    %1333 = vmatprep.subr.bf16.mxu0 0
    %1334 = vmatpush1.bf16.msra.mxu0 %v1029
    %1335 = vmatprep.subr.bf16.mxu0 0
    %1336 = vmatpush1.bf16.msra.mxu0 %v1028
    %1337 = vmatprep.subr.bf16.mxu0 0
    %1338 = vmatpush2.bf16.msra.mxu0 %v1043
    %1339 = vmatprep.subr.bf16.mxu0 0
    %1340 = vmatpush2.bf16.msra.mxu0 %v1042
    %1341 = vmatprep.subr.bf16.mxu0 0
    %1342 = vmatpush2.bf16.msra.mxu0 %v1041
    %1343 = vmatprep.subr.bf16.mxu0 0
    %1344 = vmatpush2.bf16.msra.mxu0 %v1040
    %1345 = vmatprep.subr.bf16.mxu0 0
    %1346 = vmatpush2.bf16.msra.mxu0 %v1039
    %1347 = vmatprep.subr.bf16.mxu0 0
    %1348 = vmatpush2.bf16.msra.mxu0 %v1038
    %1349 = vmatprep.subr.bf16.mxu0 0
    %1350 = vmatpush2.bf16.msra.mxu0 %v1037
    %1351 = vmatprep.subr.bf16.mxu0 0
    %1352 = vmatpush2.bf16.msra.mxu0 %v1036
    %1353 = vmatprep.mubr.bf16.mxu0 %v569
    %1354 = vmatmul.mubr.bf16.gmra.mxu0 %v568
    %v1355 = vpop.f32.mrf.mxu0
    %v1356 = vadd.f32 0.0, %v1355
    %v1357 = vpop.f32.mrf.mxu0
    %v1358 = vpop.f32.mrf.mxu0
    %v1359 = vadd.f32 0.0, %v1358
    %v1360 = vpop.f32.mrf.mxu0
    %1361 = vdwg.mxu0
    %v1362 = vadd.f32 %v1319, %v1356
    %v1363 = vadd.f32 %v1320, %v1359
    %1364 = vmatprep.subr.bf16.mxu0 0
    %1365 = vmatpush1.bf16.msra.mxu0 %v1207
    %1366 = vmatprep.subr.bf16.mxu0 0
    %1367 = vmatpush1.bf16.msra.mxu0 %v1206
    %1368 = vmatprep.subr.bf16.mxu0 0
    %1369 = vmatpush1.bf16.msra.mxu0 %v1205
    %1370 = vmatprep.subr.bf16.mxu0 0
    %1371 = vmatpush1.bf16.msra.mxu0 %v1204
    %1372 = vmatprep.subr.bf16.mxu0 0
    %1373 = vmatpush1.bf16.msra.mxu0 %v1203
    %1374 = vmatprep.subr.bf16.mxu0 0
    %1375 = vmatpush1.bf16.msra.mxu0 %v1202
    %1376 = vmatprep.subr.bf16.mxu0 0
    %1377 = vmatpush1.bf16.msra.mxu0 %v1201
    %1378 = vmatprep.subr.bf16.mxu0 0
    %1379 = vmatpush1.bf16.msra.mxu0 %v1200
    %1380 = vmatprep.subr.bf16.mxu0 0
    %1381 = vmatpush2.bf16.msra.mxu0 %v1215
    %1382 = vmatprep.subr.bf16.mxu0 0
    %1383 = vmatpush2.bf16.msra.mxu0 %v1214
    %1384 = vmatprep.subr.bf16.mxu0 0
    %1385 = vmatpush2.bf16.msra.mxu0 %v1213
    %1386 = vmatprep.subr.bf16.mxu0 0
    %1387 = vmatpush2.bf16.msra.mxu0 %v1212
    %1388 = vmatprep.subr.bf16.mxu0 0
    %1389 = vmatpush2.bf16.msra.mxu0 %v1211
    %1390 = vmatprep.subr.bf16.mxu0 0
    %1391 = vmatpush2.bf16.msra.mxu0 %v1210
    %1392 = vmatprep.subr.bf16.mxu0 0
    %1393 = vmatpush2.bf16.msra.mxu0 %v1209
    %1394 = vmatprep.subr.bf16.mxu0 0
    %1395 = vmatpush2.bf16.msra.mxu0 %v1208
    %1396 = vmatprep.mubr.bf16.mxu0 %v630
    %1397 = vmatmul.mubr.bf16.gmra.mxu0 %v629
    %v1398 = vpop.f32.mrf.mxu0
    %v1399 = vadd.f32 0.0, %v1398
    %v1400 = vpop.f32.mrf.mxu0
    %v1401 = vpop.f32.mrf.mxu0
    %v1402 = vadd.f32 0.0, %v1401
    %v1403 = vpop.f32.mrf.mxu0
    %1404 = vdwg.mxu0
    %v1405 = vadd.f32 %v1362, %v1399
    %v1406 = vadd.f32 %v1363, %v1402
    %v1407 = vmax.f32 %v1405, 0.0
    %v1408 = vmax.f32 %v1406, 0.0
    %v1409 = vpack.c.bf16 %v1408, %v1407
    %1410 = vmatprep.subr.bf16.mxu0 0
    %1411 = vmatpush1.bf16.msra.mxu0 %v857
    %1412 = vmatprep.subr.bf16.mxu0 0
    %1413 = vmatpush1.bf16.msra.mxu0 %v856
    %1414 = vmatprep.subr.bf16.mxu0 0
    %1415 = vmatpush1.bf16.msra.mxu0 %v855
    %1416 = vmatprep.subr.bf16.mxu0 0
    %1417 = vmatpush1.bf16.msra.mxu0 %v854
    %1418 = vmatprep.subr.bf16.mxu0 0
    %1419 = vmatpush1.bf16.msra.mxu0 %v853
    %1420 = vmatprep.subr.bf16.mxu0 0
    %1421 = vmatpush1.bf16.msra.mxu0 %v852
    %1422 = vmatprep.subr.bf16.mxu0 0
    %1423 = vmatpush1.bf16.msra.mxu0 %v851
    %1424 = vmatprep.subr.bf16.mxu0 0
    %1425 = vmatpush1.bf16.msra.mxu0 %v850
    %1426 = vmatprep.subr.bf16.mxu0 0
    %1427 = vmatpush2.bf16.msra.mxu0 %v865
    %1428 = vmatprep.subr.bf16.mxu0 0
    %1429 = vmatpush2.bf16.msra.mxu0 %v864
    %1430 = vmatprep.subr.bf16.mxu0 0
    %1431 = vmatpush2.bf16.msra.mxu0 %v863
    %1432 = vmatprep.subr.bf16.mxu0 0
    %1433 = vmatpush2.bf16.msra.mxu0 %v862
    %1434 = vmatprep.subr.bf16.mxu0 0
    %1435 = vmatpush2.bf16.msra.mxu0 %v861
    %1436 = vmatprep.subr.bf16.mxu0 0
    %1437 = vmatpush2.bf16.msra.mxu0 %v860
    %1438 = vmatprep.subr.bf16.mxu0 0
    %1439 = vmatpush2.bf16.msra.mxu0 %v859
    %1440 = vmatprep.subr.bf16.mxu0 0
    %1441 = vmatpush2.bf16.msra.mxu0 %v858
    %1442 = vmatprep.mubr.bf16.mxu0 %v630
    %1443 = vmatmul.mubr.bf16.gmra.mxu0 %v629
    %v1444 = vpop.f32.mrf.mxu0
    %v1445 = vadd.f32 0.0, %v1444
    %v1446 = vpop.f32.mrf.mxu0
    %v1447 = vpop.f32.mrf.mxu0
    %v1448 = vadd.f32 0.0, %v1447
    %v1449 = vpop.f32.mrf.mxu0
    %1450 = vdwg.mxu0
    %v1451 = vadd.f32 %v927, %v1445
    %v1452 = vadd.f32 %v927, %v1448
    %1453 = vmatprep.subr.bf16.mxu0 0
    %1454 = vmatpush1.bf16.msra.mxu0 %v1035
    %1455 = vmatprep.subr.bf16.mxu0 0
    %1456 = vmatpush1.bf16.msra.mxu0 %v1034
    %1457 = vmatprep.subr.bf16.mxu0 0
    %1458 = vmatpush1.bf16.msra.mxu0 %v1033
    %1459 = vmatprep.subr.bf16.mxu0 0
    %1460 = vmatpush1.bf16.msra.mxu0 %v1032
    %1461 = vmatprep.subr.bf16.mxu0 0
    %1462 = vmatpush1.bf16.msra.mxu0 %v1031
    %1463 = vmatprep.subr.bf16.mxu0 0
    %1464 = vmatpush1.bf16.msra.mxu0 %v1030
    %1465 = vmatprep.subr.bf16.mxu0 0
    %1466 = vmatpush1.bf16.msra.mxu0 %v1029
    %1467 = vmatprep.subr.bf16.mxu0 0
    %1468 = vmatpush1.bf16.msra.mxu0 %v1028
    %1469 = vmatprep.subr.bf16.mxu0 0
    %1470 = vmatpush2.bf16.msra.mxu0 %v1043
    %1471 = vmatprep.subr.bf16.mxu0 0
    %1472 = vmatpush2.bf16.msra.mxu0 %v1042
    %1473 = vmatprep.subr.bf16.mxu0 0
    %1474 = vmatpush2.bf16.msra.mxu0 %v1041
    %1475 = vmatprep.subr.bf16.mxu0 0
    %1476 = vmatpush2.bf16.msra.mxu0 %v1040
    %1477 = vmatprep.subr.bf16.mxu0 0
    %1478 = vmatpush2.bf16.msra.mxu0 %v1039
    %1479 = vmatprep.subr.bf16.mxu0 0
    %1480 = vmatpush2.bf16.msra.mxu0 %v1038
    %1481 = vmatprep.subr.bf16.mxu0 0
    %1482 = vmatpush2.bf16.msra.mxu0 %v1037
    %1483 = vmatprep.subr.bf16.mxu0 0
    %1484 = vmatpush2.bf16.msra.mxu0 %v1036
    %1485 = vmatprep.mubr.bf16.mxu0 %v691
    %1486 = vmatmul.mubr.bf16.gmra.mxu0 %v690
    %v1487 = vpop.f32.mrf.mxu0
    %v1488 = vadd.f32 0.0, %v1487
    %v1489 = vpop.f32.mrf.mxu0
    %v1490 = vpop.f32.mrf.mxu0
    %v1491 = vadd.f32 0.0, %v1490
    %v1492 = vpop.f32.mrf.mxu0
    %1493 = vdwg.mxu0
    %v1494 = vadd.f32 %v1451, %v1488
    %v1495 = vadd.f32 %v1452, %v1491
    %1496 = vmatprep.subr.bf16.mxu0 0
    %1497 = vmatpush1.bf16.msra.mxu0 %v1207
    %1498 = vmatprep.subr.bf16.mxu0 0
    %1499 = vmatpush1.bf16.msra.mxu0 %v1206
    %1500 = vmatprep.subr.bf16.mxu0 0
    %1501 = vmatpush1.bf16.msra.mxu0 %v1205
    %1502 = vmatprep.subr.bf16.mxu0 0
    %1503 = vmatpush1.bf16.msra.mxu0 %v1204
    %1504 = vmatprep.subr.bf16.mxu0 0
    %1505 = vmatpush1.bf16.msra.mxu0 %v1203
    %1506 = vmatprep.subr.bf16.mxu0 0
    %1507 = vmatpush1.bf16.msra.mxu0 %v1202
    %1508 = vmatprep.subr.bf16.mxu0 0
    %1509 = vmatpush1.bf16.msra.mxu0 %v1201
    %1510 = vmatprep.subr.bf16.mxu0 0
    %1511 = vmatpush1.bf16.msra.mxu0 %v1200
    %1512 = vmatprep.subr.bf16.mxu0 0
    %1513 = vmatpush2.bf16.msra.mxu0 %v1215
    %1514 = vmatprep.subr.bf16.mxu0 0
    %1515 = vmatpush2.bf16.msra.mxu0 %v1214
    %1516 = vmatprep.subr.bf16.mxu0 0
    %1517 = vmatpush2.bf16.msra.mxu0 %v1213
    %1518 = vmatprep.subr.bf16.mxu0 0
    %1519 = vmatpush2.bf16.msra.mxu0 %v1212
    %1520 = vmatprep.subr.bf16.mxu0 0
    %1521 = vmatpush2.bf16.msra.mxu0 %v1211
    %1522 = vmatprep.subr.bf16.mxu0 0
    %1523 = vmatpush2.bf16.msra.mxu0 %v1210
    %1524 = vmatprep.subr.bf16.mxu0 0
    %1525 = vmatpush2.bf16.msra.mxu0 %v1209
    %1526 = vmatprep.subr.bf16.mxu0 0
    %1527 = vmatpush2.bf16.msra.mxu0 %v1208
    %1528 = vmatprep.mubr.bf16.mxu0 %v752
    %1529 = vmatmul.mubr.bf16.gmra.mxu0 %v751
    %v1530 = vpop.f32.mrf.mxu0
    %v1531 = vadd.f32 0.0, %v1530
    %v1532 = vpop.f32.mrf.mxu0
    %v1533 = vpop.f32.mrf.mxu0
    %v1534 = vadd.f32 0.0, %v1533
    %v1535 = vpop.f32.mrf.mxu0
    %1536 = vdwg.mxu0
    %v1537 = vadd.f32 %v1494, %v1531
    %v1538 = vadd.f32 %v1495, %v1534
    %v1539 = vmax.f32 %v1537, 0.0
    %v1540 = vmax.f32 %v1538, 0.0
    %v1541 = vpack.c.bf16 %v1540, %v1539
    %v1542 = vld [vmem:[%s6] sm:$0x1]
    %v1543 = vld [vmem:[#allocation8] sm:$0xf]
    %v1544 = vld [vmem:[#allocation8 + $0x4] sm:$0xf]
    %v1545 = vld [vmem:[#allocation8 + $0x8] sm:$0xf]
    %v1546 = vld [vmem:[#allocation8 + $0xc] sm:$0xf]
    %v1547 = vld [vmem:[#allocation8 + $0x10] sm:$0xf]
    %v1548 = vld [vmem:[#allocation8 + $0x14] sm:$0xf]
    %v1549 = vld [vmem:[#allocation8 + $0x18] sm:$0xf]
    %v1550 = vld [vmem:[#allocation8 + $0x1c] sm:$0xf]
    %v1551 = vld [vmem:[#allocation8 + $0x20] sm:$0xf]
    %v1552 = vld [vmem:[#allocation8 + $0x24] sm:$0xf]
    %v1553 = vld [vmem:[#allocation8 + $0x28] sm:$0xf]
    %v1554 = vld [vmem:[#allocation8 + $0x2c] sm:$0xf]
    %v1555 = vld [vmem:[#allocation8 + $0x30] sm:$0xf]
    %v1556 = vld [vmem:[#allocation8 + $0x34] sm:$0xf]
    %v1557 = vld [vmem:[#allocation8 + $0x38] sm:$0xf]
    %v1558 = vld [vmem:[#allocation8 + $0x3c] sm:$0xf]
    %v1575 = vunpack.c.l.b16 %v1543
    %v1576 = vunpack.c.l.b16 %v1544
    %v1577 = vunpack.c.l.b16 %v1545
    %v1578 = vunpack.c.l.b16 %v1546
    %v1579 = vunpack.c.l.b16 %v1547
    %v1580 = vunpack.c.l.b16 %v1548
    %v1581 = vunpack.c.l.b16 %v1549
    %v1582 = vunpack.c.l.b16 %v1550
    %v1583 = vunpack.c.l.b16 %v1551
    %v1584 = vunpack.c.l.b16 %v1552
    %v1585 = vunpack.c.l.b16 %v1553
    %v1586 = vunpack.c.l.b16 %v1554
    %v1587 = vunpack.c.l.b16 %v1555
    %v1588 = vunpack.c.l.b16 %v1556
    %v1589 = vunpack.c.l.b16 %v1557
    %v1590 = vunpack.c.l.b16 %v1558
    %v1591 = vpack.c.b16 %v1576, %v1575
    %v1592 = vpack.c.b16 %v1578, %v1577
    %v1593 = vpack.c.b16 %v1580, %v1579
    %v1594 = vpack.c.b16 %v1582, %v1581
    %v1595 = vpack.c.b16 %v1584, %v1583
    %v1596 = vpack.c.b16 %v1586, %v1585
    %v1597 = vpack.c.b16 %v1588, %v1587
    %v1598 = vpack.c.b16 %v1590, %v1589
    %1607 = vmatprep.subr.bf16.mxu0 0
    %1608 = vmatpush1.bf16.msra.mxu0 %v1598
    %1609 = vmatprep.subr.bf16.mxu0 0
    %1610 = vmatpush1.bf16.msra.mxu0 %v1597
    %1611 = vmatprep.subr.bf16.mxu0 0
    %1612 = vmatpush1.bf16.msra.mxu0 %v1596
    %1613 = vmatprep.subr.bf16.mxu0 0
    %1614 = vmatpush1.bf16.msra.mxu0 %v1595
    %1615 = vmatprep.subr.bf16.mxu0 0
    %1616 = vmatpush1.bf16.msra.mxu0 %v1594
    %1617 = vmatprep.subr.bf16.mxu0 0
    %1618 = vmatpush1.bf16.msra.mxu0 %v1593
    %1619 = vmatprep.subr.bf16.mxu0 0
    %1620 = vmatpush1.bf16.msra.mxu0 %v1592
    %1621 = vmatprep.subr.bf16.mxu0 0
    %1622 = vmatpush1.bf16.msra.mxu0 %v1591
    %1623 = vmatprep.subr.bf16.mxu0 0
    %1624 = vmatpush2.bf16.msra.mxu0 0
    %1625 = vmatprep.subr.bf16.mxu0 0
    %1626 = vmatpush2.bf16.msra.mxu0 0
    %1627 = vmatprep.subr.bf16.mxu0 0
    %1628 = vmatpush2.bf16.msra.mxu0 0
    %1629 = vmatprep.subr.bf16.mxu0 0
    %1630 = vmatpush2.bf16.msra.mxu0 0
    %1631 = vmatprep.subr.bf16.mxu0 0
    %1632 = vmatpush2.bf16.msra.mxu0 0
    %1633 = vmatprep.subr.bf16.mxu0 0
    %1634 = vmatpush2.bf16.msra.mxu0 0
    %1635 = vmatprep.subr.bf16.mxu0 0
    %1636 = vmatpush2.bf16.msra.mxu0 0
    %1637 = vmatprep.subr.bf16.mxu0 0
    %1638 = vmatpush2.bf16.msra.mxu0 0
    %1639 = vmatprep.mubr.bf16.mxu0 0
    %1640 = vmatmul.mubr.bf16.gmra.mxu0 %v1277
    %v1641 = vpop.f32.mrf.mxu0
    %v1642 = vadd.f32 0.0, %v1641
    %v1643 = vpop.f32.mrf.mxu0
    %v1644 = vpop.f32.mrf.mxu0
    %v1645 = vadd.f32 0.0, %v1644
    %v1646 = vpop.f32.mrf.mxu0
    %1647 = vdwg.mxu0
    %v1649 = vlaneseq
    %v1650 = vshrl.u32 %v1649, 7
    %v1651 = vsub.s32 0, %v1650
    %v1652 = vrot.slane %v1542, %v1651
    %v1654 = vadd.f32 %v1652, %v1642
    %v1655 = vadd.f32 %v1652, %v1645
    %s1656 = scalar_lea.vmem [#allocation8], 64
    %v1657 = vld [vmem:[%s1656] sm:$0xf]
    %v1658 = vld [vmem:[%s1656 + $0x4] sm:$0xf]
    %v1659 = vld [vmem:[%s1656 + $0x8] sm:$0xf]
    %v1660 = vld [vmem:[%s1656 + $0xc] sm:$0xf]
    %v1661 = vld [vmem:[%s1656 + $0x10] sm:$0xf]
    %v1662 = vld [vmem:[%s1656 + $0x14] sm:$0xf]
    %v1663 = vld [vmem:[%s1656 + $0x18] sm:$0xf]
    %v1664 = vld [vmem:[%s1656 + $0x1c] sm:$0xf]
    %v1665 = vld [vmem:[%s1656 + $0x20] sm:$0xf]
    %v1666 = vld [vmem:[%s1656 + $0x24] sm:$0xf]
    %v1667 = vld [vmem:[%s1656 + $0x28] sm:$0xf]
    %v1668 = vld [vmem:[%s1656 + $0x2c] sm:$0xf]
    %v1669 = vld [vmem:[%s1656 + $0x30] sm:$0xf]
    %v1670 = vld [vmem:[%s1656 + $0x34] sm:$0xf]
    %v1671 = vld [vmem:[%s1656 + $0x38] sm:$0xf]
    %v1672 = vld [vmem:[%s1656 + $0x3c] sm:$0xf]
    %v1689 = vunpack.c.l.b16 %v1657
    %v1690 = vunpack.c.l.b16 %v1658
    %v1691 = vunpack.c.l.b16 %v1659
    %v1692 = vunpack.c.l.b16 %v1660
    %v1693 = vunpack.c.l.b16 %v1661
    %v1694 = vunpack.c.l.b16 %v1662
    %v1695 = vunpack.c.l.b16 %v1663
    %v1696 = vunpack.c.l.b16 %v1664
    %v1697 = vunpack.c.l.b16 %v1665
    %v1698 = vunpack.c.l.b16 %v1666
    %v1699 = vunpack.c.l.b16 %v1667
    %v1700 = vunpack.c.l.b16 %v1668
    %v1701 = vunpack.c.l.b16 %v1669
    %v1702 = vunpack.c.l.b16 %v1670
    %v1703 = vunpack.c.l.b16 %v1671
    %v1704 = vunpack.c.l.b16 %v1672
    %v1705 = vpack.c.b16 %v1690, %v1689
    %v1706 = vpack.c.b16 %v1692, %v1691
    %v1707 = vpack.c.b16 %v1694, %v1693
    %v1708 = vpack.c.b16 %v1696, %v1695
    %v1709 = vpack.c.b16 %v1698, %v1697
    %v1710 = vpack.c.b16 %v1700, %v1699
    %v1711 = vpack.c.b16 %v1702, %v1701
    %v1712 = vpack.c.b16 %v1704, %v1703
    %1721 = vmatprep.subr.bf16.mxu0 0
    %1722 = vmatpush1.bf16.msra.mxu0 %v1712
    %1723 = vmatprep.subr.bf16.mxu0 0
    %1724 = vmatpush1.bf16.msra.mxu0 %v1711
    %1725 = vmatprep.subr.bf16.mxu0 0
    %1726 = vmatpush1.bf16.msra.mxu0 %v1710
    %1727 = vmatprep.subr.bf16.mxu0 0
    %1728 = vmatpush1.bf16.msra.mxu0 %v1709
    %1729 = vmatprep.subr.bf16.mxu0 0
    %1730 = vmatpush1.bf16.msra.mxu0 %v1708
    %1731 = vmatprep.subr.bf16.mxu0 0
    %1732 = vmatpush1.bf16.msra.mxu0 %v1707
    %1733 = vmatprep.subr.bf16.mxu0 0
    %1734 = vmatpush1.bf16.msra.mxu0 %v1706
    %1735 = vmatprep.subr.bf16.mxu0 0
    %1736 = vmatpush1.bf16.msra.mxu0 %v1705
    %1737 = vmatprep.subr.bf16.mxu0 0
    %1738 = vmatpush2.bf16.msra.mxu0 0
    %1739 = vmatprep.subr.bf16.mxu0 0
    %1740 = vmatpush2.bf16.msra.mxu0 0
    %1741 = vmatprep.subr.bf16.mxu0 0
    %1742 = vmatpush2.bf16.msra.mxu0 0
    %1743 = vmatprep.subr.bf16.mxu0 0
    %1744 = vmatpush2.bf16.msra.mxu0 0
    %1745 = vmatprep.subr.bf16.mxu0 0
    %1746 = vmatpush2.bf16.msra.mxu0 0
    %1747 = vmatprep.subr.bf16.mxu0 0
    %1748 = vmatpush2.bf16.msra.mxu0 0
    %1749 = vmatprep.subr.bf16.mxu0 0
    %1750 = vmatpush2.bf16.msra.mxu0 0
    %1751 = vmatprep.subr.bf16.mxu0 0
    %1752 = vmatpush2.bf16.msra.mxu0 0
    %1753 = vmatprep.mubr.bf16.mxu0 0
    %1754 = vmatmul.mubr.bf16.gmra.mxu0 %v1409
    %v1755 = vpop.f32.mrf.mxu0
    %v1756 = vadd.f32 0.0, %v1755
    %v1757 = vpop.f32.mrf.mxu0
    %v1758 = vpop.f32.mrf.mxu0
    %v1759 = vadd.f32 0.0, %v1758
    %v1760 = vpop.f32.mrf.mxu0
    %1761 = vdwg.mxu0
    %v1762 = vadd.f32 %v1654, %v1756
    %v1763 = vadd.f32 %v1655, %v1759
    %s1764 = scalar_lea.vmem [#allocation8], 128
    %v1765 = vld [vmem:[%s1764] sm:$0xf]
    %v1766 = vld [vmem:[%s1764 + $0x4] sm:$0xf]
    %v1767 = vld [vmem:[%s1764 + $0x8] sm:$0xf]
    %v1768 = vld [vmem:[%s1764 + $0xc] sm:$0xf]
    %v1769 = vld [vmem:[%s1764 + $0x10] sm:$0xf]
    %v1770 = vld [vmem:[%s1764 + $0x14] sm:$0xf]
    %v1771 = vld [vmem:[%s1764 + $0x18] sm:$0xf]
    %v1772 = vld [vmem:[%s1764 + $0x1c] sm:$0xf]
    %v1773 = vld [vmem:[%s1764 + $0x20] sm:$0xf]
    %v1774 = vld [vmem:[%s1764 + $0x24] sm:$0xf]
    %v1775 = vld [vmem:[%s1764 + $0x28] sm:$0xf]
    %v1776 = vld [vmem:[%s1764 + $0x2c] sm:$0xf]
    %v1777 = vld [vmem:[%s1764 + $0x30] sm:$0xf]
    %v1778 = vld [vmem:[%s1764 + $0x34] sm:$0xf]
    %v1779 = vld [vmem:[%s1764 + $0x38] sm:$0xf]
    %v1780 = vld [vmem:[%s1764 + $0x3c] sm:$0xf]
    %v1797 = vunpack.c.l.b16 %v1765
    %v1798 = vunpack.c.l.b16 %v1766
    %v1799 = vunpack.c.l.b16 %v1767
    %v1800 = vunpack.c.l.b16 %v1768
    %v1801 = vunpack.c.l.b16 %v1769
    %v1802 = vunpack.c.l.b16 %v1770
    %v1803 = vunpack.c.l.b16 %v1771
    %v1804 = vunpack.c.l.b16 %v1772
    %v1805 = vunpack.c.l.b16 %v1773
    %v1806 = vunpack.c.l.b16 %v1774
    %v1807 = vunpack.c.l.b16 %v1775
    %v1808 = vunpack.c.l.b16 %v1776
    %v1809 = vunpack.c.l.b16 %v1777
    %v1810 = vunpack.c.l.b16 %v1778
    %v1811 = vunpack.c.l.b16 %v1779
    %v1812 = vunpack.c.l.b16 %v1780
    %v1813 = vpack.c.b16 %v1798, %v1797
    %v1814 = vpack.c.b16 %v1800, %v1799
    %v1815 = vpack.c.b16 %v1802, %v1801
    %v1816 = vpack.c.b16 %v1804, %v1803
    %v1817 = vpack.c.b16 %v1806, %v1805
    %v1818 = vpack.c.b16 %v1808, %v1807
    %v1819 = vpack.c.b16 %v1810, %v1809
    %v1820 = vpack.c.b16 %v1812, %v1811
    %1829 = vmatprep.subr.bf16.mxu0 0
    %1830 = vmatpush1.bf16.msra.mxu0 %v1820
    %1831 = vmatprep.subr.bf16.mxu0 0
    %1832 = vmatpush1.bf16.msra.mxu0 %v1819
    %1833 = vmatprep.subr.bf16.mxu0 0
    %1834 = vmatpush1.bf16.msra.mxu0 %v1818
    %1835 = vmatprep.subr.bf16.mxu0 0
    %1836 = vmatpush1.bf16.msra.mxu0 %v1817
    %1837 = vmatprep.subr.bf16.mxu0 0
    %1838 = vmatpush1.bf16.msra.mxu0 %v1816
    %1839 = vmatprep.subr.bf16.mxu0 0
    %1840 = vmatpush1.bf16.msra.mxu0 %v1815
    %1841 = vmatprep.subr.bf16.mxu0 0
    %1842 = vmatpush1.bf16.msra.mxu0 %v1814
    %1843 = vmatprep.subr.bf16.mxu0 0
    %1844 = vmatpush1.bf16.msra.mxu0 %v1813
    %1845 = vmatprep.subr.bf16.mxu0 0
    %1846 = vmatpush2.bf16.msra.mxu0 0
    %1847 = vmatprep.subr.bf16.mxu0 0
    %1848 = vmatpush2.bf16.msra.mxu0 0
    %1849 = vmatprep.subr.bf16.mxu0 0
    %1850 = vmatpush2.bf16.msra.mxu0 0
    %1851 = vmatprep.subr.bf16.mxu0 0
    %1852 = vmatpush2.bf16.msra.mxu0 0
    %1853 = vmatprep.subr.bf16.mxu0 0
    %1854 = vmatpush2.bf16.msra.mxu0 0
    %1855 = vmatprep.subr.bf16.mxu0 0
    %1856 = vmatpush2.bf16.msra.mxu0 0
    %1857 = vmatprep.subr.bf16.mxu0 0
    %1858 = vmatpush2.bf16.msra.mxu0 0
    %1859 = vmatprep.subr.bf16.mxu0 0
    %1860 = vmatpush2.bf16.msra.mxu0 0
    %1861 = vmatprep.mubr.bf16.mxu0 0
    %1862 = vmatmul.mubr.bf16.gmra.mxu0 %v1541
    %v1863 = vpop.f32.mrf.mxu0
    %v1864 = vadd.f32 0.0, %v1863
    %v1865 = vpop.f32.mrf.mxu0
    %v1866 = vpop.f32.mrf.mxu0
    %v1867 = vadd.f32 0.0, %v1866
    %v1868 = vpop.f32.mrf.mxu0
    %1869 = vdwg.mxu0
    %v1870 = vadd.f32 %v1762, %v1864
    %v1871 = vadd.f32 %v1763, %v1867
    %v1872 = vmax.f32 %v1870, 0.0
    %v1873 = vmax.f32 %v1871, 0.0
    %v1874 = vpack.c.bf16 %v1873, %v1872
    %v1875 = vld [vmem:[%s8] sm:$0x1]
    %v1876 = vld [vmem:[#allocation10] sm:$0xf]
    %v1877 = vld [vmem:[#allocation10 + $0x4] sm:$0xf]
    %v1878 = vld [vmem:[#allocation10 + $0x8] sm:$0xf]
    %v1879 = vld [vmem:[#allocation10 + $0xc] sm:$0xf]
    %v1880 = vld [vmem:[#allocation10 + $0x10] sm:$0xf]
    %v1881 = vld [vmem:[#allocation10 + $0x14] sm:$0xf]
    %v1882 = vld [vmem:[#allocation10 + $0x18] sm:$0xf]
    %v1883 = vld [vmem:[#allocation10 + $0x1c] sm:$0xf]
    %v1884 = vld [vmem:[#allocation10 + $0x20] sm:$0xf]
    %v1885 = vld [vmem:[#allocation10 + $0x24] sm:$0xf]
    %v1886 = vld [vmem:[#allocation10 + $0x28] sm:$0xf]
    %v1887 = vld [vmem:[#allocation10 + $0x2c] sm:$0xf]
    %v1888 = vld [vmem:[#allocation10 + $0x30] sm:$0xf]
    %v1889 = vld [vmem:[#allocation10 + $0x34] sm:$0xf]
    %v1890 = vld [vmem:[#allocation10 + $0x38] sm:$0xf]
    %v1891 = vld [vmem:[#allocation10 + $0x3c] sm:$0xf]
    %v1908 = vunpack.c.l.b16 %v1876
    %v1909 = vunpack.c.l.b16 %v1877
    %v1910 = vunpack.c.l.b16 %v1878
    %v1911 = vunpack.c.l.b16 %v1879
    %v1912 = vunpack.c.l.b16 %v1880
    %v1913 = vunpack.c.l.b16 %v1881
    %v1914 = vunpack.c.l.b16 %v1882
    %v1915 = vunpack.c.l.b16 %v1883
    %v1916 = vunpack.c.l.b16 %v1884
    %v1917 = vunpack.c.l.b16 %v1885
    %v1918 = vunpack.c.l.b16 %v1886
    %v1919 = vunpack.c.l.b16 %v1887
    %v1920 = vunpack.c.l.b16 %v1888
    %v1921 = vunpack.c.l.b16 %v1889
    %v1922 = vunpack.c.l.b16 %v1890
    %v1923 = vunpack.c.l.b16 %v1891
    %v1924 = vpack.c.b16 %v1909, %v1908
    %v1925 = vpack.c.b16 %v1911, %v1910
    %v1926 = vpack.c.b16 %v1913, %v1912
    %v1927 = vpack.c.b16 %v1915, %v1914
    %v1928 = vpack.c.b16 %v1917, %v1916
    %v1929 = vpack.c.b16 %v1919, %v1918
    %v1930 = vpack.c.b16 %v1921, %v1920
    %v1931 = vpack.c.b16 %v1923, %v1922
    %1940 = vmatprep.subr.bf16.mxu0 0
    %1941 = vmatpush1.bf16.msra.mxu0 %v1931
    %1942 = vmatprep.subr.bf16.mxu0 0
    %1943 = vmatpush1.bf16.msra.mxu0 %v1930
    %1944 = vmatprep.subr.bf16.mxu0 0
    %1945 = vmatpush1.bf16.msra.mxu0 %v1929
    %1946 = vmatprep.subr.bf16.mxu0 0
    %1947 = vmatpush1.bf16.msra.mxu0 %v1928
    %1948 = vmatprep.subr.bf16.mxu0 0
    %1949 = vmatpush1.bf16.msra.mxu0 %v1927
    %1950 = vmatprep.subr.bf16.mxu0 0
    %1951 = vmatpush1.bf16.msra.mxu0 %v1926
    %1952 = vmatprep.subr.bf16.mxu0 0
    %1953 = vmatpush1.bf16.msra.mxu0 %v1925
    %1954 = vmatprep.subr.bf16.mxu0 0
    %1955 = vmatpush1.bf16.msra.mxu0 %v1924
    %1956 = vmatprep.subr.bf16.mxu0 0
    %1957 = vmatpush2.bf16.msra.mxu0 0
    %1958 = vmatprep.subr.bf16.mxu0 0
    %1959 = vmatpush2.bf16.msra.mxu0 0
    %1960 = vmatprep.subr.bf16.mxu0 0
    %1961 = vmatpush2.bf16.msra.mxu0 0
    %1962 = vmatprep.subr.bf16.mxu0 0
    %1963 = vmatpush2.bf16.msra.mxu0 0
    %1964 = vmatprep.subr.bf16.mxu0 0
    %1965 = vmatpush2.bf16.msra.mxu0 0
    %1966 = vmatprep.subr.bf16.mxu0 0
    %1967 = vmatpush2.bf16.msra.mxu0 0
    %1968 = vmatprep.subr.bf16.mxu0 0
    %1969 = vmatpush2.bf16.msra.mxu0 0
    %1970 = vmatprep.subr.bf16.mxu0 0
    %1971 = vmatpush2.bf16.msra.mxu0 0
    %1972 = vmatprep.mubr.bf16.mxu0 0
    %1973 = vmatmul.mubr.bf16.gmra.mxu0 %v1874
    %v1974 = vpop.f32.mrf.mxu0
    %v1975 = vadd.f32 0.0, %v1974
    %v1976 = vpop.f32.mrf.mxu0
    %v1977 = vpop.f32.mrf.mxu0
    %v1978 = vadd.f32 0.0, %v1977
    %v1979 = vpop.f32.mrf.mxu0
    %1980 = vdwg.mxu0
    %v1982 = vlaneseq
    %v1983 = vshrl.u32 %v1982, 7
    %v1984 = vsub.s32 0, %v1983
    %v1985 = vrot.slane %v1875, %v1984
    %v1987 = vadd.f32 %v1985, %v1975
    %v1988 = vadd.f32 %v1985, %v1978
    %v1989 = vtanh.pop %v1987
    %v1990 = vtanh.pop %v1988
    %v1991 = vpack.c.bf16 %v1990, %v1989
    %v1992 = vld [vmem:[#allocation11] sm:$0xf]
    %v1993 = vld [vmem:[#allocation11 + $0x4] sm:$0xf]
    %v1994 = vld [vmem:[#allocation11 + $0x8] sm:$0xf]
    %v1995 = vld [vmem:[#allocation11 + $0xc] sm:$0xf]
    %v1996 = vld [vmem:[#allocation11 + $0x10] sm:$0xf]
    %v1997 = vld [vmem:[#allocation11 + $0x14] sm:$0xf]
    %v1998 = vld [vmem:[#allocation11 + $0x18] sm:$0xf]
    %v1999 = vld [vmem:[#allocation11 + $0x1c] sm:$0xf]
    %v2000 = vld [vmem:[#allocation11 + $0x20] sm:$0xf]
    %v2001 = vld [vmem:[#allocation11 + $0x24] sm:$0xf]
    %v2002 = vld [vmem:[#allocation11 + $0x28] sm:$0xf]
    %v2003 = vld [vmem:[#allocation11 + $0x2c] sm:$0xf]
    %v2004 = vld [vmem:[#allocation11 + $0x30] sm:$0xf]
    %v2005 = vld [vmem:[#allocation11 + $0x34] sm:$0xf]
    %v2006 = vld [vmem:[#allocation11 + $0x38] sm:$0xf]
    %v2007 = vld [vmem:[#allocation11 + $0x3c] sm:$0xf]
    %v2008 = vld [vmem:[%s10] sm:$0x1]
    %v2010 = vlaneseq
    %v2011 = vshrl.u32 %v2010, 7
    %v2012 = vsub.s32 0, %v2011
    %v2013 = vrot.slane %v2008, %v2012
    %v2031 = vunpack.c.l.b16 %v1992
    %v2032 = vunpack.c.l.b16 %v1993
    %v2033 = vunpack.c.l.b16 %v1994
    %v2034 = vunpack.c.l.b16 %v1995
    %v2035 = vunpack.c.l.b16 %v1996
    %v2036 = vunpack.c.l.b16 %v1997
    %v2037 = vunpack.c.l.b16 %v1998
    %v2038 = vunpack.c.l.b16 %v1999
    %v2039 = vunpack.c.l.b16 %v2000
    %v2040 = vunpack.c.l.b16 %v2001
    %v2041 = vunpack.c.l.b16 %v2002
    %v2042 = vunpack.c.l.b16 %v2003
    %v2043 = vunpack.c.l.b16 %v2004
    %v2044 = vunpack.c.l.b16 %v2005
    %v2045 = vunpack.c.l.b16 %v2006
    %v2046 = vunpack.c.l.b16 %v2007
    %v2047 = vpack.c.b16 %v2032, %v2031
    %v2048 = vpack.c.b16 %v2034, %v2033
    %v2049 = vpack.c.b16 %v2036, %v2035
    %v2050 = vpack.c.b16 %v2038, %v2037
    %v2051 = vpack.c.b16 %v2040, %v2039
    %v2052 = vpack.c.b16 %v2042, %v2041
    %v2053 = vpack.c.b16 %v2044, %v2043
    %v2054 = vpack.c.b16 %v2046, %v2045
    %2063 = vmatprep.subr.bf16.mxu0 0
    %2064 = vmatpush1.bf16.msra.mxu0 %v2054
    %2065 = vmatprep.subr.bf16.mxu0 0
    %2066 = vmatpush1.bf16.msra.mxu0 %v2053
    %2067 = vmatprep.subr.bf16.mxu0 0
    %2068 = vmatpush1.bf16.msra.mxu0 %v2052
    %2069 = vmatprep.subr.bf16.mxu0 0
    %2070 = vmatpush1.bf16.msra.mxu0 %v2051
    %2071 = vmatprep.subr.bf16.mxu0 0
    %2072 = vmatpush1.bf16.msra.mxu0 %v2050
    %2073 = vmatprep.subr.bf16.mxu0 0
    %2074 = vmatpush1.bf16.msra.mxu0 %v2049
    %2075 = vmatprep.subr.bf16.mxu0 0
    %2076 = vmatpush1.bf16.msra.mxu0 %v2048
    %2077 = vmatprep.subr.bf16.mxu0 0
    %2078 = vmatpush1.bf16.msra.mxu0 %v2047
    %2079 = vmatprep.subr.bf16.mxu0 0
    %2080 = vmatpush2.bf16.msra.mxu0 0
    %2081 = vmatprep.subr.bf16.mxu0 0
    %2082 = vmatpush2.bf16.msra.mxu0 0
    %2083 = vmatprep.subr.bf16.mxu0 0
    %2084 = vmatpush2.bf16.msra.mxu0 0
    %2085 = vmatprep.subr.bf16.mxu0 0
    %2086 = vmatpush2.bf16.msra.mxu0 0
    %2087 = vmatprep.subr.bf16.mxu0 0
    %2088 = vmatpush2.bf16.msra.mxu0 0
    %2089 = vmatprep.subr.bf16.mxu0 0
    %2090 = vmatpush2.bf16.msra.mxu0 0
    %2091 = vmatprep.subr.bf16.mxu0 0
    %2092 = vmatpush2.bf16.msra.mxu0 0
    %2093 = vmatprep.subr.bf16.mxu0 0
    %2094 = vmatpush2.bf16.msra.mxu0 0
    %2095 = vmatprep.mubr.bf16.mxu0 0
    %2096 = vmatmul.mubr.bf16.gmra.mxu0 %v1991
    %v2097 = vpop.f32.mrf.mxu0
    %v2098 = vadd.f32 %v2013, %v2097
    %v2099 = vpop.f32.mrf.mxu0
    %v2100 = vpop.f32.mrf.mxu0
    %v2101 = vadd.f32 %v2013, %v2100
    %v2102 = vpop.f32.mrf.mxu0
    %2103 = vdwg.mxu0
    %v2104 = vlaneseq
    %v2105 = vand.u32 %v2104, 127
    %vm2106 = vcmp.lt.s32.totalorder %v2105, 5
    %v2107 = vsel %vm2106, %v2098, -1e+30
    %v2108 = vsel %vm2106, %v2101, -1e+30
    %2109 = vmax.xlane.f32.xlu0 %v2107
    %v2110 = vpop.xlane.xlu0 %2109
    %2111 = vmax.xlane.f32.xlu0 %v2108
    %v2112 = vpop.xlane.xlu0 %2111
    %v2113 = vsub.f32 %v2107, %v2110
    %v2114 = vsub.f32 %v2108, %v2112
    %v2115 = vmul.f32 %v2113, 1.442695
    %v2116 = vpow.pop %v2115
    %v2117 = vmul.f32 %v2114, 1.442695
    %v2118 = vpow.pop %v2117
    %2119 = vadd.xlane.f32.xlu0 %v2116
    %v2120 = vpop.xlane.xlu0 %2119
    %2121 = vadd.xlane.f32.xlu0 %v2118
    %v2122 = vpop.xlane.xlu0 %2121
    %v2123 = vrcp.pop %v2120
    %v2124 = vmul.f32 1.0, %v2123
    %v2125 = vrcp.pop %v2122
    %v2126 = vmul.f32 1.0, %v2125
    %v2127 = vmul.f32 %v2116, %v2124
    %v2128 = vmul.f32 %v2118, %v2126
    %vm2129 = vcmp.eq.s32.totalorder %v2105, 5
    %v2130 = vsel %vm2129, %v2098, 0.0
    %v2131 = vsel %vm2129, %v2101, 0.0
    %v2132 = vsel %vm2106, %v2127, %v2130
    %v2133 = vsel %vm2106, %v2128, %v2131
    %2134 = vst [vmem:[#allocation13] sm:$0xff] %v2132
    %2135 = vst [vmem:[#allocation13 + $0x8] sm:$0xff] %v2133
    // Predicated region
    $region70: #{tpu_custom_call.1} parent=1 // pred_check
      _
    $region71: #{tpu_custom_call.1} parent=1 // pred_check_branch
      %2137 = sbr.rel (0) target = $region73
    $region72: #{tpu_custom_call.1} parent=1 // pred_region
      %s2139 = ssub.s32 256, 256
      %2140 = vsyncadd [#allocation4], %s2139
      %s2141 = sshll.u32 [#allocation13], 4
      %s2142 = int_to_ptr.vmem [resolvable:$true] %s2141
      %2147 = dma.vmem_to_hbm [thread:$0]  %s2142, 256, %s11, [#allocation4], 128, 128, 8
    $region73: #{tpu_custom_call.1} parent=1 // pred_fallthru
      _
    // Predicated region
    $region74: #{tpu_custom_call.1} parent=1 // pred_check
      _
    $region75: #{tpu_custom_call.1} parent=1 // pred_check_branch
      %2149 = sbr.rel (0) target = $region77
    $region76: #{tpu_custom_call.1} parent=1 // pred_region
      %2150 = dma.done [#allocation4], 256
    $region77: #{tpu_custom_call.1} parent=1 // pred_fallthru
      _
    %2151 = vsyncpa [#allocation3], 1
    %2152 = vsyncpa [#allocation6], 1
    %2153 = vsyncpa [#allocation9], 1
    %2154 = vsyncpa [#allocation12], 1
    %2155 = vsyncpa [#allocation4], 1

</llo_original>
